<compile_context>
chip_gen: v7x
topology: tpu7x:2x2x1
jax: 0.10.0
libtpu: 0.0.40
codegen_flags: <defaults>
</compile_context>

<pallas_src>
import functools

import jax
import jax.numpy as jnp
from jax.experimental import pallas as pl
from jax.experimental.pallas import tpu as pltpu

LANE = 128


def _round_up(n, m):
    return ((n + m - 1) // m) * m


def _pad2d(a, rows, cols):
    return jnp.pad(a, ((0, rows - a.shape[0]), (0, cols - a.shape[1])))


def _pick_row_tile(m, target=512):
    """Largest row tile <= target that is a multiple of 8 and divides m
    (falls back to the full extent, which is always a legal block)."""
    if m <= target:
        return m
    t = (target // 8) * 8
    while t >= 8:
        if m % t == 0:
            return t
        t -= 8
    return m


# ----------------------------- Pallas kernels ------------------------------

def _conv_pool_kernel(c0_ref, c1_ref, c2_ref, c3_ref, w_ref, b_ref, o_ref):
    """relu(maxpool2x2(conv+bias)) for one M-tile of pooled output rows.

    c{q}_ref : (tm, Kp)   im2col rows for pooling parity q, (ki,kj,c) columns
    w_ref    : (Kp, OCp)  zero-padded weight matrix (resident across the grid)
    b_ref    : (1, OCp)   zero-padded bias
    o_ref    : (tm, OCp)  pooled + ReLU output, lane-dense (OCp = 128)
    """
    w = w_ref[...]
    d0 = jnp.dot(c0_ref[...], w, preferred_element_type=jnp.float32)
    d1 = jnp.dot(c1_ref[...], w, preferred_element_type=jnp.float32)
    d2 = jnp.dot(c2_ref[...], w, preferred_element_type=jnp.float32)
    d3 = jnp.dot(c3_ref[...], w, preferred_element_type=jnp.float32)
    m = jnp.maximum(jnp.maximum(d0, d1), jnp.maximum(d2, d3)) + b_ref[...]
    o_ref[...] = jnp.maximum(m, 0.0).astype(o_ref.dtype)


def _fc_chain_kernel(x_ref, w1_ref, b1_ref, w2_ref, b2_ref, w3_ref, b3_ref,
                     o_ref):
    """fc3(relu(fc2(relu(fc1(x))))) fused in one kernel; widths padded to 128."""
    h = jnp.dot(x_ref[...], w1_ref[...], preferred_element_type=jnp.float32)
    h = jnp.maximum(h + b1_ref[...], 0.0)
    h = jnp.dot(h, w2_ref[...], preferred_element_type=jnp.float32)
    h = jnp.maximum(h + b2_ref[...], 0.0)
    h = jnp.dot(h, w3_ref[...], preferred_element_type=jnp.float32)
    o_ref[...] = (h + b3_ref[...]).astype(o_ref.dtype)


# --------------------------- wrappers / JAX glue ----------------------------

def _im2col_pooled(x, kh, kw, di, dj):
    """NHWC im2col restricted to conv-output positions (2*i2+di, 2*j2+dj).

    Returns (B*oh2*ow2, kh*kw*C); rows ordered (b, i2, j2), columns ordered
    (ki, kj, c) to match the (ki,kj,c)-ordered weight rows."""
    B, H, W, C = x.shape
    oh, ow = H - kh + 1, W - kw + 1
    oh2, ow2 = oh // 2, ow // 2
    cols = []
    for ki in range(kh):
        for kj in range(kw):
            cols.append(x[:, di + ki: di + ki + 2 * oh2: 2,
                          dj + kj: dj + kj + 2 * ow2: 2, :])
    patches = jnp.concatenate(cols, axis=-1)          # (B, oh2, ow2, kh*kw*C)
    return patches.reshape(B * oh2 * ow2, kh * kw * C), oh2, ow2


def conv_relu_pool(x_nhwc, wmat, bias, kh=5, kw=5):
    """Fused valid 5x5 conv + bias + ReLU + 2x2/2 max-pool, NHWC in/out.

    x_nhwc: (B, H, W, C) f32; wmat: (Kp, OCp) padded; bias: (1, OCp) padded.
    Returns (B, oh//2, ow//2, OCp); channels >= true OC are exactly zero.
    """
    B = x_nhwc.shape[0]
    Kp, OCp = wmat.shape
    mats = []
    oh2 = ow2 = None
    for di in (0, 1):
        for dj in (0, 1):
            c, oh2, ow2 = _im2col_pooled(x_nhwc, kh, kw, di, dj)
            mats.append(jnp.pad(c, ((0, 0), (0, Kp - c.shape[1]))))
    Mp = B * oh2 * ow2
    tm = _pick_row_tile(Mp)
    grid = (Mp // tm,)
    col_spec = pl.BlockSpec((tm, Kp), lambda i: (i, 0))
    out = pl.pallas_call(
        _conv_pool_kernel,
        out_shape=jax.ShapeDtypeStruct((Mp, OCp), jnp.float32),
        grid=grid,
        in_specs=[col_spec, col_spec, col_spec, col_spec,
                  pl.BlockSpec((Kp, OCp), lambda i: (0, 0)),
                  pl.BlockSpec((1, OCp), lambda i: (0, 0))],
        out_specs=pl.BlockSpec((tm, OCp), lambda i: (i, 0)),
        compiler_params=pltpu.CompilerParams(
            dimension_semantics=("parallel",),
            vmem_limit_bytes=32 * 1024 * 1024),
    )(*mats, wmat, bias)
    return out.reshape(B, oh2, ow2, OCp)


def fc_chain(feats, w1, b1, w2, b2, w3, b3):
    """Fused fc1->relu->fc2->relu->fc3 on lane-dense padded matrices."""
    B, K1 = feats.shape
    N1, N2, N3 = w1.shape[1], w2.shape[1], w3.shape[1]
    tm = _pick_row_tile(B)
    grid = (B // tm,)
    return pl.pallas_call(
        _fc_chain_kernel,
        out_shape=jax.ShapeDtypeStruct((B, N3), jnp.float32),
        grid=grid,
        in_specs=[pl.BlockSpec((tm, K1), lambda i: (i, 0)),
                  pl.BlockSpec((K1, N1), lambda i: (0, 0)),
                  pl.BlockSpec((1, N1), lambda i: (0, 0)),
                  pl.BlockSpec((N1, N2), lambda i: (0, 0)),
                  pl.BlockSpec((1, N2), lambda i: (0, 0)),
                  pl.BlockSpec((N2, N3), lambda i: (0, 0)),
                  pl.BlockSpec((1, N3), lambda i: (0, 0))],
        out_specs=pl.BlockSpec((tm, N3), lambda i: (i, 0)),
        compiler_params=pltpu.CompilerParams(
            dimension_semantics=("parallel",),
            vmem_limit_bytes=32 * 1024 * 1024),
    )(feats, w1, b1, w2, b2, w3, b3)


# ------------------------------ parameters ----------------------------------

def init_params(key, in_channels=3, n_kernels=16, out_dim=10):
    """PyTorch-layout parameters with the default U(-1/sqrt(fan_in), ..) init."""
    def uniform(k, shape, fan_in):
        bound = 1.0 / float(fan_in) ** 0.5
        return jax.random.uniform(k, shape, jnp.float32, -bound, bound)

    keys = jax.random.split(key, 10)
    p = {}
    p["conv1_w"] = uniform(keys[0], (n_kernels, in_channels, 5, 5), in_channels * 25)
    p["conv1_b"] = uniform(keys[1], (n_kernels,), in_channels * 25)
    p["conv2_w"] = uniform(keys[2], (2 * n_kernels, n_kernels, 5, 5), n_kernels * 25)
    p["conv2_b"] = uniform(keys[3], (2 * n_kernels,), n_kernels * 25)
    # fc weights stored (in, out); fc1 rows follow torch's NCHW flatten (c, h, w).
    p["fc1_w"] = uniform(keys[4], (2 * n_kernels * 25, 120), 2 * n_kernels * 25)
    p["fc1_b"] = uniform(keys[5], (120,), 2 * n_kernels * 25)
    p["fc2_w"] = uniform(keys[6], (120, 84), 120)
    p["fc2_b"] = uniform(keys[7], (84,), 120)
    p["fc3_w"] = uniform(keys[8], (84, out_dim), 84)
    p["fc3_b"] = uniform(keys[9], (out_dim,), 84)
    return p


def prepare_params(p, in_channels=3, n_kernels=16, out_dim=10):
    """One-time, exact repack of torch-layout params into lane-dense kernel layout."""
    C2 = 2 * n_kernels
    oc2p = _round_up(C2, LANE)
    kp = {}

    def conv_pack(w, b):                       # w: (OC, C, 5, 5)
        oc, c, kh, kw = w.shape
        wm = w.transpose(2, 3, 1, 0).reshape(kh * kw * c, oc)  # rows (ki,kj,c)
        wm = _pad2d(wm, _round_up(wm.shape[0], LANE), _round_up(oc, LANE))
        bm = _pad2d(b.reshape(1, -1), 1, _round_up(oc, LANE))
        return wm, bm

    kp["conv1_w"], kp["conv1_b"] = conv_pack(p["conv1_w"], p["conv1_b"])
    kp["conv2_w"], kp["conv2_b"] = conv_pack(p["conv2_w"], p["conv2_b"])

    # fc1: torch rows are (c, h, w); kernel features are (h, w, c padded to 128).
    f1 = p["fc1_w"].reshape(C2, 5, 5, 120).transpose(1, 2, 0, 3)   # (5,5,C2,120)
    f1 = jnp.pad(f1, ((0, 0), (0, 0), (0, oc2p - C2), (0, 0)))
    f1 = f1.reshape(5 * 5 * oc2p, 120)
    kp["fc1_w"] = _pad2d(f1, f1.shape[0], LANE)
    kp["fc1_b"] = _pad2d(p["fc1_b"].reshape(1, -1), 1, LANE)
    kp["fc2_w"] = _pad2d(p["fc2_w"], LANE, LANE)
    kp["fc2_b"] = _pad2d(p["fc2_b"].reshape(1, -1), 1, LANE)
    kp["fc3_w"] = _pad2d(p["fc3_w"], LANE, _round_up(max(p["fc3_w"].shape[1], 1), LANE))
    kp["fc3_b"] = _pad2d(p["fc3_b"].reshape(1, -1), 1, _round_up(max(out_dim, 1), LANE))
    return kp


# ------------------------------- forward ------------------------------------

@functools.partial(jax.jit, static_argnames=("n_kernels", "out_dim"))
def cnn_target_forward(kp, x, n_kernels=16, out_dim=10):
    """x: (B, in_channels, 32, 32) NCHW float32 (PyTorch convention)."""
    C1 = n_kernels
    x = jnp.transpose(x, (0, 2, 3, 1)).astype(jnp.float32)     # NCHW -> NHWC once
    a1 = conv_relu_pool(x, kp["conv1_w"], kp["conv1_b"])        # (B,14,14,128)
    a1 = a1[..., :C1]                                           # drop pad channels
    a2 = conv_relu_pool(a1, kp["conv2_w"], kp["conv2_b"])       # (B,5,5,128)
    feats = a2.reshape(a2.shape[0], -1)                         # (B, 5*5*128)
    logits = fc_chain(feats, kp["fc1_w"], kp["fc1_b"],
                      kp["fc2_w"], kp["fc2_b"],
                      kp["fc3_w"], kp["fc3_b"])                 # (B, 128)
    return logits[:, :out_dim]


if __name__ == "__main__":
    key = jax.random.PRNGKey(0)
    pkey, xkey = jax.random.split(key)
    params = init_params(pkey, in_channels=3, n_kernels=16, out_dim=10)
    kparams = prepare_params(params, in_channels=3, n_kernels=16, out_dim=10)
    x = jax.random.normal(xkey, (2, 3, 32, 32), jnp.float32)
    out = cnn_target_forward(kparams, x)
    out = jax.block_until_ready(out)
    assert out.shape == (2, 10) and out.dtype == jnp.float32
    print("KERNEL_OK")
</pallas_src>

<mosaic_0001>
module attributes {stable_mosaic.version = 11 : i64} {
  func.func @_conv_pool_kernel(%arg0: i32, %arg1: memref<392x128xf32, #tpu.memory_space<vmem>>, %arg2: memref<392x128xf32, #tpu.memory_space<vmem>>, %arg3: memref<392x128xf32, #tpu.memory_space<vmem>>, %arg4: memref<392x128xf32, #tpu.memory_space<vmem>>, %arg5: memref<128x128xf32, #tpu.memory_space<vmem>>, %arg6: memref<1x128xf32, #tpu.memory_space<vmem>>, %arg7: memref<392x128xf32, #tpu.memory_space<vmem>>) attributes {dimension_semantics = [#tpu.dimension_semantics<parallel>], iteration_bounds = array<i64: 1>, scalar_prefetch = 0 : i64, scratch_operands = 0 : i64, tpu.core_type = #tpu.core_type<tc>, window_params = [{transform_indices = @transform_0, window_bounds = array<i64: 392, 128>}, {transform_indices = @transform_1, window_bounds = array<i64: 392, 128>}, {transform_indices = @transform_2, window_bounds = array<i64: 392, 128>}, {transform_indices = @transform_3, window_bounds = array<i64: 392, 128>}, {pipeline_mode = #tpu.pipeline_mode<synchronous>, transform_indices = @transform_4, window_bounds = array<i64: 128, 128>}, {pipeline_mode = #tpu.pipeline_mode<synchronous>, transform_indices = @transform_5, window_bounds = array<i64: 1, 128>}, {transform_indices = @transform_6, window_bounds = array<i64: 392, 128>}]} {
    %c0 = arith.constant 0 : index
    %c0_0 = arith.constant 0 : index
    %0 = vector.load %arg5[%c0, %c0_0] : memref<128x128xf32, #tpu.memory_space<vmem>>, vector<128x128xf32>
    %c0_1 = arith.constant 0 : index
    %c0_2 = arith.constant 0 : index
    %1 = vector.load %arg1[%c0_1, %c0_2] : memref<392x128xf32, #tpu.memory_space<vmem>>, vector<392x128xf32>
    %cst = arith.constant dense<0.000000e+00> : vector<392x128xf32>
    %2 = tpu.matmul %1, %0, %cst {dimension_numbers = #tpu.dot_dimension_numbers<[1], [0], [0], [1], [0, 0, 1, 1], [], []>} : vector<392x128xf32>, vector<128x128xf32>, vector<392x128xf32> -> vector<392x128xf32>
    %c0_3 = arith.constant 0 : index
    %c0_4 = arith.constant 0 : index
    %3 = vector.load %arg2[%c0_3, %c0_4] : memref<392x128xf32, #tpu.memory_space<vmem>>, vector<392x128xf32>
    %cst_5 = arith.constant dense<0.000000e+00> : vector<392x128xf32>
    %4 = tpu.matmul %3, %0, %cst_5 {dimension_numbers = #tpu.dot_dimension_numbers<[1], [0], [0], [1], [0, 0, 1, 1], [], []>} : vector<392x128xf32>, vector<128x128xf32>, vector<392x128xf32> -> vector<392x128xf32>
    %c0_6 = arith.constant 0 : index
    %c0_7 = arith.constant 0 : index
    %5 = vector.load %arg3[%c0_6, %c0_7] : memref<392x128xf32, #tpu.memory_space<vmem>>, vector<392x128xf32>
    %cst_8 = arith.constant dense<0.000000e+00> : vector<392x128xf32>
    %6 = tpu.matmul %5, %0, %cst_8 {dimension_numbers = #tpu.dot_dimension_numbers<[1], [0], [0], [1], [0, 0, 1, 1], [], []>} : vector<392x128xf32>, vector<128x128xf32>, vector<392x128xf32> -> vector<392x128xf32>
    %c0_9 = arith.constant 0 : index
    %c0_10 = arith.constant 0 : index
    %7 = vector.load %arg4[%c0_9, %c0_10] : memref<392x128xf32, #tpu.memory_space<vmem>>, vector<392x128xf32>
    %cst_11 = arith.constant dense<0.000000e+00> : vector<392x128xf32>
    %8 = tpu.matmul %7, %0, %cst_11 {dimension_numbers = #tpu.dot_dimension_numbers<[1], [0], [0], [1], [0, 0, 1, 1], [], []>} : vector<392x128xf32>, vector<128x128xf32>, vector<392x128xf32> -> vector<392x128xf32>
    %9 = arith.maximumf %2, %4 : vector<392x128xf32>
    %10 = arith.maximumf %6, %8 : vector<392x128xf32>
    %11 = arith.maximumf %9, %10 : vector<392x128xf32>
    %c0_12 = arith.constant 0 : index
    %c0_13 = arith.constant 0 : index
    %12 = vector.load %arg6[%c0_12, %c0_13] : memref<1x128xf32, #tpu.memory_space<vmem>>, vector<1x128xf32>
    %13 = vector.broadcast %12 : vector<1x128xf32> to vector<392x128xf32>
    %14 = arith.addf %11, %13 : vector<392x128xf32>
    %cst_14 = arith.constant 0.000000e+00 : f32
    %15 = vector.broadcast %cst_14 : f32 to vector<392x128xf32>
    %16 = arith.maximumf %14, %15 : vector<392x128xf32>
    %c0_15 = arith.constant 0 : index
    %c0_16 = arith.constant 0 : index
    %17 = vector.load %arg7[%c0_15, %c0_16] : memref<392x128xf32, #tpu.memory_space<vmem>>, vector<392x128xf32>
    tpu.vector_store %arg7[%c0_15, %c0_16], %16 {strides = array<i32>} : memref<392x128xf32, #tpu.memory_space<vmem>>, vector<392x128xf32>,
    return
  }
  func.func @transform_0(%arg0: i32) -> (i32, i32) {
    %c0_i32 = arith.constant 0 : i32
    %c0_i32_0 = arith.constant 0 : i32
    return %arg0, %c0_i32 : i32, i32
  }
  func.func @transform_1(%arg0: i32) -> (i32, i32) {
    %c0_i32 = arith.constant 0 : i32
    %c0_i32_0 = arith.constant 0 : i32
    return %arg0, %c0_i32 : i32, i32
  }
  func.func @transform_2(%arg0: i32) -> (i32, i32) {
    %c0_i32 = arith.constant 0 : i32
    %c0_i32_0 = arith.constant 0 : i32
    return %arg0, %c0_i32 : i32, i32
  }
  func.func @transform_3(%arg0: i32) -> (i32, i32) {
    %c0_i32 = arith.constant 0 : i32
    %c0_i32_0 = arith.constant 0 : i32
    return %arg0, %c0_i32 : i32, i32
  }
  func.func @transform_4(%arg0: i32) -> (i32, i32) {
    %c0_i32 = arith.constant 0 : i32
    %c0_i32_0 = arith.constant 0 : i32
    %c0_i32_1 = arith.constant 0 : i32
    return %c0_i32, %c0_i32_0 : i32, i32
  }
  func.func @transform_5(%arg0: i32) -> (i32, i32) {
    %c0_i32 = arith.constant 0 : i32
    %c0_i32_0 = arith.constant 0 : i32
    %c0_i32_1 = arith.constant 0 : i32
    return %c0_i32, %c0_i32_0 : i32, i32
  }
  func.func @transform_6(%arg0: i32) -> (i32, i32) {
    %c0_i32 = arith.constant 0 : i32
    %c0_i32_0 = arith.constant 0 : i32
    return %arg0, %c0_i32 : i32, i32
  }
}

module attributes {stable_mosaic.version = 11 : i64} {
  func.func @_conv_pool_kernel(%arg0: i32, %arg1: memref<50x512xf32, #tpu.memory_space<vmem>>, %arg2: memref<50x512xf32, #tpu.memory_space<vmem>>, %arg3: memref<50x512xf32, #tpu.memory_space<vmem>>, %arg4: memref<50x512xf32, #tpu.memory_space<vmem>>, %arg5: memref<512x128xf32, #tpu.memory_space<vmem>>, %arg6: memref<1x128xf32, #tpu.memory_space<vmem>>, %arg7: memref<50x128xf32, #tpu.memory_space<vmem>>) attributes {dimension_semantics = [#tpu.dimension_semantics<parallel>], iteration_bounds = array<i64: 1>, scalar_prefetch = 0 : i64, scratch_operands = 0 : i64, tpu.core_type = #tpu.core_type<tc>, window_params = [{transform_indices = @transform_0, window_bounds = array<i64: 50, 512>}, {transform_indices = @transform_1, window_bounds = array<i64: 50, 512>}, {transform_indices = @transform_2, window_bounds = array<i64: 50, 512>}, {transform_indices = @transform_3, window_bounds = array<i64: 50, 512>}, {pipeline_mode = #tpu.pipeline_mode<synchronous>, transform_indices = @transform_4, window_bounds = array<i64: 512, 128>}, {pipeline_mode = #tpu.pipeline_mode<synchronous>, transform_indices = @transform_5, window_bounds = array<i64: 1, 128>}, {transform_indices = @transform_6, window_bounds = array<i64: 50, 128>}]} {
    %c0 = arith.constant 0 : index
    %c0_0 = arith.constant 0 : index
    %0 = vector.load %arg5[%c0, %c0_0] : memref<512x128xf32, #tpu.memory_space<vmem>>, vector<512x128xf32>
    %c0_1 = arith.constant 0 : index
    %c0_2 = arith.constant 0 : index
    %1 = vector.load %arg1[%c0_1, %c0_2] : memref<50x512xf32, #tpu.memory_space<vmem>>, vector<50x512xf32>
    %cst = arith.constant dense<0.000000e+00> : vector<50x128xf32>
    %2 = tpu.matmul %1, %0, %cst {dimension_numbers = #tpu.dot_dimension_numbers<[1], [0], [0], [1], [0, 0, 1, 1], [], []>} : vector<50x512xf32>, vector<512x128xf32>, vector<50x128xf32> -> vector<50x128xf32>
    %c0_3 = arith.constant 0 : index
    %c0_4 = arith.constant 0 : index
    %3 = vector.load %arg2[%c0_3, %c0_4] : memref<50x512xf32, #tpu.memory_space<vmem>>, vector<50x512xf32>
    %cst_5 = arith.constant dense<0.000000e+00> : vector<50x128xf32>
    %4 = tpu.matmul %3, %0, %cst_5 {dimension_numbers = #tpu.dot_dimension_numbers<[1], [0], [0], [1], [0, 0, 1, 1], [], []>} : vector<50x512xf32>, vector<512x128xf32>, vector<50x128xf32> -> vector<50x128xf32>
    %c0_6 = arith.constant 0 : index
    %c0_7 = arith.constant 0 : index
    %5 = vector.load %arg3[%c0_6, %c0_7] : memref<50x512xf32, #tpu.memory_space<vmem>>, vector<50x512xf32>
    %cst_8 = arith.constant dense<0.000000e+00> : vector<50x128xf32>
    %6 = tpu.matmul %5, %0, %cst_8 {dimension_numbers = #tpu.dot_dimension_numbers<[1], [0], [0], [1], [0, 0, 1, 1], [], []>} : vector<50x512xf32>, vector<512x128xf32>, vector<50x128xf32> -> vector<50x128xf32>
    %c0_9 = arith.constant 0 : index
    %c0_10 = arith.constant 0 : index
    %7 = vector.load %arg4[%c0_9, %c0_10] : memref<50x512xf32, #tpu.memory_space<vmem>>, vector<50x512xf32>
    %cst_11 = arith.constant dense<0.000000e+00> : vector<50x128xf32>
    %8 = tpu.matmul %7, %0, %cst_11 {dimension_numbers = #tpu.dot_dimension_numbers<[1], [0], [0], [1], [0, 0, 1, 1], [], []>} : vector<50x512xf32>, vector<512x128xf32>, vector<50x128xf32> -> vector<50x128xf32>
    %9 = arith.maximumf %2, %4 : vector<50x128xf32>
    %10 = arith.maximumf %6, %8 : vector<50x128xf32>
    %11 = arith.maximumf %9, %10 : vector<50x128xf32>
    %c0_12 = arith.constant 0 : index
    %c0_13 = arith.constant 0 : index
    %12 = vector.load %arg6[%c0_12, %c0_13] : memref<1x128xf32, #tpu.memory_space<vmem>>, vector<1x128xf32>
    %13 = vector.broadcast %12 : vector<1x128xf32> to vector<50x128xf32>
    %14 = arith.addf %11, %13 : vector<50x128xf32>
    %cst_14 = arith.constant 0.000000e+00 : f32
    %15 = vector.broadcast %cst_14 : f32 to vector<50x128xf32>
    %16 = arith.maximumf %14, %15 : vector<50x128xf32>
    %c0_15 = arith.constant 0 : index
    %c0_16 = arith.constant 0 : index
    %17 = vector.load %arg7[%c0_15, %c0_16] : memref<50x128xf32, #tpu.memory_space<vmem>>, vector<50x128xf32>
    tpu.vector_store %arg7[%c0_15, %c0_16], %16 {strides = array<i32>} : memref<50x128xf32, #tpu.memory_space<vmem>>, vector<50x128xf32>,
    return
  }
  func.func @transform_0(%arg0: i32) -> (i32, i32) {
    %c0_i32 = arith.constant 0 : i32
    %c0_i32_0 = arith.constant 0 : i32
    return %arg0, %c0_i32 : i32, i32
  }
  func.func @transform_1(%arg0: i32) -> (i32, i32) {
    %c0_i32 = arith.constant 0 : i32
    %c0_i32_0 = arith.constant 0 : i32
    return %arg0, %c0_i32 : i32, i32
  }
  func.func @transform_2(%arg0: i32) -> (i32, i32) {
    %c0_i32 = arith.constant 0 : i32
    %c0_i32_0 = arith.constant 0 : i32
    return %arg0, %c0_i32 : i32, i32
  }
  func.func @transform_3(%arg0: i32) -> (i32, i32) {
    %c0_i32 = arith.constant 0 : i32
    %c0_i32_0 = arith.constant 0 : i32
    return %arg0, %c0_i32 : i32, i32
  }
  func.func @transform_4(%arg0: i32) -> (i32, i32) {
    %c0_i32 = arith.constant 0 : i32
    %c0_i32_0 = arith.constant 0 : i32
    %c0_i32_1 = arith.constant 0 : i32
    return %c0_i32, %c0_i32_0 : i32, i32
  }
  func.func @transform_5(%arg0: i32) -> (i32, i32) {
    %c0_i32 = arith.constant 0 : i32
    %c0_i32_0 = arith.constant 0 : i32
    %c0_i32_1 = arith.constant 0 : i32
    return %c0_i32, %c0_i32_0 : i32, i32
  }
  func.func @transform_6(%arg0: i32) -> (i32, i32) {
    %c0_i32 = arith.constant 0 : i32
    %c0_i32_0 = arith.constant 0 : i32
    return %arg0, %c0_i32 : i32, i32
  }
}

module attributes {stable_mosaic.version = 11 : i64} {
  func.func @_fc_chain_kernel(%arg0: i32, %arg1: memref<2x3200xf32, #tpu.memory_space<vmem>>, %arg2: memref<3200x128xf32, #tpu.memory_space<vmem>>, %arg3: memref<1x128xf32, #tpu.memory_space<vmem>>, %arg4: memref<128x128xf32, #tpu.memory_space<vmem>>, %arg5: memref<1x128xf32, #tpu.memory_space<vmem>>, %arg6: memref<128x128xf32, #tpu.memory_space<vmem>>, %arg7: memref<1x128xf32, #tpu.memory_space<vmem>>, %arg8: memref<2x128xf32, #tpu.memory_space<vmem>>) attributes {dimension_semantics = [#tpu.dimension_semantics<parallel>], iteration_bounds = array<i64: 1>, scalar_prefetch = 0 : i64, scratch_operands = 0 : i64, tpu.core_type = #tpu.core_type<tc>, window_params = [{transform_indices = @transform_0, window_bounds = array<i64: 2, 3200>}, {pipeline_mode = #tpu.pipeline_mode<synchronous>, transform_indices = @transform_1, window_bounds = array<i64: 3200, 128>}, {pipeline_mode = #tpu.pipeline_mode<synchronous>, transform_indices = @transform_2, window_bounds = array<i64: 1, 128>}, {pipeline_mode = #tpu.pipeline_mode<synchronous>, transform_indices = @transform_3, window_bounds = array<i64: 128, 128>}, {pipeline_mode = #tpu.pipeline_mode<synchronous>, transform_indices = @transform_4, window_bounds = array<i64: 1, 128>}, {pipeline_mode = #tpu.pipeline_mode<synchronous>, transform_indices = @transform_5, window_bounds = array<i64: 128, 128>}, {pipeline_mode = #tpu.pipeline_mode<synchronous>, transform_indices = @transform_6, window_bounds = array<i64: 1, 128>}, {transform_indices = @transform_7, window_bounds = array<i64: 2, 128>}]} {
    %c0 = arith.constant 0 : index
    %c0_0 = arith.constant 0 : index
    %0 = vector.load %arg1[%c0, %c0_0] : memref<2x3200xf32, #tpu.memory_space<vmem>>, vector<2x3200xf32>
    %c0_1 = arith.constant 0 : index
    %c0_2 = arith.constant 0 : index
    %1 = vector.load %arg2[%c0_1, %c0_2] : memref<3200x128xf32, #tpu.memory_space<vmem>>, vector<3200x128xf32>
    %cst = arith.constant dense<0.000000e+00> : vector<2x128xf32>
    %2 = tpu.matmul %0, %1, %cst {dimension_numbers = #tpu.dot_dimension_numbers<[1], [0], [0], [1], [0, 0, 1, 1], [], []>} : vector<2x3200xf32>, vector<3200x128xf32>, vector<2x128xf32> -> vector<2x128xf32>
    %c0_3 = arith.constant 0 : index
    %c0_4 = arith.constant 0 : index
    %3 = vector.load %arg3[%c0_3, %c0_4] : memref<1x128xf32, #tpu.memory_space<vmem>>, vector<1x128xf32>
    %4 = vector.broadcast %3 : vector<1x128xf32> to vector<2x128xf32>
    %5 = arith.addf %2, %4 : vector<2x128xf32>
    %cst_5 = arith.constant 0.000000e+00 : f32
    %6 = vector.broadcast %cst_5 : f32 to vector<2x128xf32>
    %7 = arith.maximumf %5, %6 : vector<2x128xf32>
    %c0_6 = arith.constant 0 : index
    %c0_7 = arith.constant 0 : index
    %8 = vector.load %arg4[%c0_6, %c0_7] : memref<128x128xf32, #tpu.memory_space<vmem>>, vector<128x128xf32>
    %cst_8 = arith.constant dense<0.000000e+00> : vector<2x128xf32>
    %9 = tpu.matmul %7, %8, %cst_8 {dimension_numbers = #tpu.dot_dimension_numbers<[1], [0], [0], [1], [0, 0, 1, 1], [], []>} : vector<2x128xf32>, vector<128x128xf32>, vector<2x128xf32> -> vector<2x128xf32>
    %c0_9 = arith.constant 0 : index
    %c0_10 = arith.constant 0 : index
    %10 = vector.load %arg5[%c0_9, %c0_10] : memref<1x128xf32, #tpu.memory_space<vmem>>, vector<1x128xf32>
    %11 = vector.broadcast %10 : vector<1x128xf32> to vector<2x128xf32>
    %12 = arith.addf %9, %11 : vector<2x128xf32>
    %cst_11 = arith.constant 0.000000e+00 : f32
    %13 = vector.broadcast %cst_11 : f32 to vector<2x128xf32>
    %14 = arith.maximumf %12, %13 : vector<2x128xf32>
    %c0_12 = arith.constant 0 : index
    %c0_13 = arith.constant 0 : index
    %15 = vector.load %arg6[%c0_12, %c0_13] : memref<128x128xf32, #tpu.memory_space<vmem>>, vector<128x128xf32>
    %cst_14 = arith.constant dense<0.000000e+00> : vector<2x128xf32>
    %16 = tpu.matmul %14, %15, %cst_14 {dimension_numbers = #tpu.dot_dimension_numbers<[1], [0], [0], [1], [0, 0, 1, 1], [], []>} : vector<2x128xf32>, vector<128x128xf32>, vector<2x128xf32> -> vector<2x128xf32>
    %c0_15 = arith.constant 0 : index
    %c0_16 = arith.constant 0 : index
    %17 = vector.load %arg7[%c0_15, %c0_16] : memref<1x128xf32, #tpu.memory_space<vmem>>, vector<1x128xf32>
    %18 = vector.broadcast %17 : vector<1x128xf32> to vector<2x128xf32>
    %19 = arith.addf %16, %18 : vector<2x128xf32>
    %c0_17 = arith.constant 0 : index
    %c0_18 = arith.constant 0 : index
    %20 = vector.load %arg8[%c0_17, %c0_18] : memref<2x128xf32, #tpu.memory_space<vmem>>, vector<2x128xf32>
    tpu.vector_store %arg8[%c0_17, %c0_18], %19 {strides = array<i32>} : memref<2x128xf32, #tpu.memory_space<vmem>>, vector<2x128xf32>,
    return
  }
  func.func @transform_0(%arg0: i32) -> (i32, i32) {
    %c0_i32 = arith.constant 0 : i32
    %c0_i32_0 = arith.constant 0 : i32
    return %arg0, %c0_i32 : i32, i32
  }
  func.func @transform_1(%arg0: i32) -> (i32, i32) {
    %c0_i32 = arith.constant 0 : i32
    %c0_i32_0 = arith.constant 0 : i32
    %c0_i32_1 = arith.constant 0 : i32
    return %c0_i32, %c0_i32_0 : i32, i32
  }
  func.func @transform_2(%arg0: i32) -> (i32, i32) {
    %c0_i32 = arith.constant 0 : i32
    %c0_i32_0 = arith.constant 0 : i32
    %c0_i32_1 = arith.constant 0 : i32
    return %c0_i32, %c0_i32_0 : i32, i32
  }
  func.func @transform_3(%arg0: i32) -> (i32, i32) {
    %c0_i32 = arith.constant 0 : i32
    %c0_i32_0 = arith.constant 0 : i32
    %c0_i32_1 = arith.constant 0 : i32
    return %c0_i32, %c0_i32_0 : i32, i32
  }
  func.func @transform_4(%arg0: i32) -> (i32, i32) {
    %c0_i32 = arith.constant 0 : i32
    %c0_i32_0 = arith.constant 0 : i32
    %c0_i32_1 = arith.constant 0 : i32
    return %c0_i32, %c0_i32_0 : i32, i32
  }
  func.func @transform_5(%arg0: i32) -> (i32, i32) {
    %c0_i32 = arith.constant 0 : i32
    %c0_i32_0 = arith.constant 0 : i32
    %c0_i32_1 = arith.constant 0 : i32
    return %c0_i32, %c0_i32_0 : i32, i32
  }
  func.func @transform_6(%arg0: i32) -> (i32, i32) {
    %c0_i32 = arith.constant 0 : i32
    %c0_i32_0 = arith.constant 0 : i32
    %c0_i32_1 = arith.constant 0 : i32
    return %c0_i32, %c0_i32_0 : i32, i32
  }
  func.func @transform_7(%arg0: i32) -> (i32, i32) {
    %c0_i32 = arith.constant 0 : i32
    %c0_i32_0 = arith.constant 0 : i32
    return %arg0, %c0_i32 : i32, i32
  }
}

</mosaic_0001>

<llo_original>
// kernel: cnn_target_forward.3
$region0: #{cnn_target_forward.3}
  #allocation0 [shape = 'u32[]', space=smem, size = 0x4, offset = 0x4, fixed_abs, tag = 'smem constant byte address 0x4 - core index']
  #allocation1 [shape = 'u32[144,128]{1,0:T(1,128)}', space=vmem, size = 0x12000, scoped, tag = 'internal scratch']
  %s0 = inlined_call_operand.vmem [shape: f32[392,128], index: 0, kind: input, shape index: {}]
  %s1 = inlined_call_operand.vmem [shape: f32[392,128], index: 1, kind: input, shape index: {}]
  %s2 = inlined_call_operand.vmem [shape: f32[392,128], index: 2, kind: input, shape index: {}]
  %s3 = inlined_call_operand.vmem [shape: f32[392,128], index: 3, kind: input, shape index: {}]
  %s4 = inlined_call_operand.vmem [shape: f32[128,128], index: 4, kind: input, shape index: {}]
  %s5 = inlined_call_operand.vmem [shape: f32[1,128], index: 5, kind: input, shape index: {}]
  %s6 = inlined_call_operand.vmem [shape: f32[392,128], index: 6, kind: output, shape index: {}]
  %s7 = sld [smem:[#allocation0]]
  $region34: #{cnn_target_forward.3} parent=0
    _
  %s9 = ssub.s32 1, %s7
  %s10 = scalar_select 0, %s9, %s7
  // Predicated region
  $region2: #{cnn_target_forward.3} parent=0 // pred_check
    _
  $region3: #{cnn_target_forward.3} parent=0 // pred_check_branch
    %12 = sbr.rel (0) target = $region5
  $region4: #{cnn_target_forward.3} parent=0 // pred_region
    _
  $region5: #{cnn_target_forward.3} parent=0 // pred_fallthru
    _
  // Predicated region
  $region6: #{cnn_target_forward.3} parent=0 // pred_check
    _
  $region7: #{cnn_target_forward.3} parent=0 // pred_check_branch
    %14 = sbr.rel (0) target = $region9
  $region8: #{cnn_target_forward.3} parent=0 // pred_region
    _
  $region9: #{cnn_target_forward.3} parent=0 // pred_fallthru
    _
  // Predicated region
  $region10: #{cnn_target_forward.3} parent=0 // pred_check
    _
  $region11: #{cnn_target_forward.3} parent=0 // pred_check_branch
    %16 = sbr.rel (0) target = $region13
  $region12: #{cnn_target_forward.3} parent=0 // pred_region
    _
  $region13: #{cnn_target_forward.3} parent=0 // pred_fallthru
    _
  // Predicated region
  $region14: #{cnn_target_forward.3} parent=0 // pred_check
    _
  $region15: #{cnn_target_forward.3} parent=0 // pred_check_branch
    %18 = sbr.rel (0) target = $region17
  $region16: #{cnn_target_forward.3} parent=0 // pred_region
    _
  $region17: #{cnn_target_forward.3} parent=0 // pred_fallthru
    _
  // Predicated region
  $region18: #{cnn_target_forward.3} parent=0 // pred_check
    _
  $region19: #{cnn_target_forward.3} parent=0 // pred_check_branch
    %20 = sbr.rel (0) target = $region21
  $region20: #{cnn_target_forward.3} parent=0 // pred_region
    _
  $region21: #{cnn_target_forward.3} parent=0 // pred_fallthru
    _
  // Predicated region
  $region22: #{cnn_target_forward.3} parent=0 // pred_check
    _
  $region23: #{cnn_target_forward.3} parent=0 // pred_check_branch
    %22 = sbr.rel (0) target = $region25
  $region24: #{cnn_target_forward.3} parent=0 // pred_region
    _
  $region25: #{cnn_target_forward.3} parent=0 // pred_fallthru
    _
  %v23 = vld [vmem:[%s4] sm:$0xff]
  %v24 = vld [vmem:[%s4 + $0x8] sm:$0xff]
  %v25 = vld [vmem:[%s4 + $0x10] sm:$0xff]
  %v26 = vld [vmem:[%s4 + $0x18] sm:$0xff]
  %v27 = vld [vmem:[%s4 + $0x20] sm:$0xff]
  %v28 = vld [vmem:[%s4 + $0x28] sm:$0xff]
  %v29 = vld [vmem:[%s4 + $0x30] sm:$0xff]
  %v30 = vld [vmem:[%s4 + $0x38] sm:$0xff]
  %v31 = vld [vmem:[%s4 + $0x40] sm:$0xff]
  %v32 = vld [vmem:[%s4 + $0x48] sm:$0xff]
  %v33 = vld [vmem:[%s4 + $0x50] sm:$0xff]
  %v34 = vld [vmem:[%s4 + $0x58] sm:$0xff]
  %v35 = vld [vmem:[%s4 + $0x60] sm:$0xff]
  %v36 = vld [vmem:[%s4 + $0x68] sm:$0xff]
  %v37 = vld [vmem:[%s4 + $0x70] sm:$0xff]
  %v38 = vld [vmem:[%s4 + $0x78] sm:$0xff]
  %v39 = vld [vmem:[%s0] sm:$0xff]
  %v40 = vld [vmem:[%s0 + $0x8] sm:$0xff]
  %v41 = vld [vmem:[%s0 + $0x10] sm:$0xff]
  %v42 = vld [vmem:[%s0 + $0x18] sm:$0xff]
  %v43 = vld [vmem:[%s0 + $0x20] sm:$0xff]
  %v44 = vld [vmem:[%s0 + $0x28] sm:$0xff]
  %v45 = vld [vmem:[%s0 + $0x30] sm:$0xff]
  %v46 = vld [vmem:[%s0 + $0x38] sm:$0xff]
  %v47 = vld [vmem:[%s0 + $0x40] sm:$0xff]
  %v48 = vld [vmem:[%s0 + $0x48] sm:$0xff]
  %v49 = vld [vmem:[%s0 + $0x50] sm:$0xff]
  %v50 = vld [vmem:[%s0 + $0x58] sm:$0xff]
  %v51 = vld [vmem:[%s0 + $0x60] sm:$0xff]
  %v52 = vld [vmem:[%s0 + $0x68] sm:$0xff]
  %v53 = vld [vmem:[%s0 + $0x70] sm:$0xff]
  %v54 = vld [vmem:[%s0 + $0x78] sm:$0xff]
  %v55 = vld [vmem:[%s0 + $0x80] sm:$0xff]
  %v56 = vld [vmem:[%s0 + $0x88] sm:$0xff]
  %v57 = vld [vmem:[%s0 + $0x90] sm:$0xff]
  %v58 = vld [vmem:[%s0 + $0x98] sm:$0xff]
  %v59 = vld [vmem:[%s0 + $0xa0] sm:$0xff]
  %v60 = vld [vmem:[%s0 + $0xa8] sm:$0xff]
  %v61 = vld [vmem:[%s0 + $0xb0] sm:$0xff]
  %v62 = vld [vmem:[%s0 + $0xb8] sm:$0xff]
  %v63 = vld [vmem:[%s0 + $0xc0] sm:$0xff]
  %v64 = vld [vmem:[%s0 + $0xc8] sm:$0xff]
  %v65 = vld [vmem:[%s0 + $0xd0] sm:$0xff]
  %v66 = vld [vmem:[%s0 + $0xd8] sm:$0xff]
  %v67 = vld [vmem:[%s0 + $0xe0] sm:$0xff]
  %v68 = vld [vmem:[%s0 + $0xe8] sm:$0xff]
  %v69 = vld [vmem:[%s0 + $0xf0] sm:$0xff]
  %v70 = vld [vmem:[%s0 + $0xf8] sm:$0xff]
  %v71 = vld [vmem:[%s0 + $0x100] sm:$0xff]
  %v72 = vld [vmem:[%s0 + $0x108] sm:$0xff]
  %v73 = vld [vmem:[%s0 + $0x110] sm:$0xff]
  %v74 = vld [vmem:[%s0 + $0x118] sm:$0xff]
  %v75 = vld [vmem:[%s0 + $0x120] sm:$0xff]
  %v76 = vld [vmem:[%s0 + $0x128] sm:$0xff]
  %v77 = vld [vmem:[%s0 + $0x130] sm:$0xff]
  %v78 = vld [vmem:[%s0 + $0x138] sm:$0xff]
  %v79 = vld [vmem:[%s0 + $0x140] sm:$0xff]
  %v80 = vld [vmem:[%s0 + $0x148] sm:$0xff]
  %v81 = vld [vmem:[%s0 + $0x150] sm:$0xff]
  %v82 = vld [vmem:[%s0 + $0x158] sm:$0xff]
  %v83 = vld [vmem:[%s0 + $0x160] sm:$0xff]
  %v84 = vld [vmem:[%s0 + $0x168] sm:$0xff]
  %v85 = vld [vmem:[%s0 + $0x170] sm:$0xff]
  %v86 = vld [vmem:[%s0 + $0x178] sm:$0xff]
  %v87 = vld [vmem:[%s0 + $0x180] sm:$0xff]
  %88 = vmatprep.subr.mxu0 0.0
  %89 = vmatpush1.msra.mxu0 %v23
  %90 = vmatprep.subr.mxu0 0.0
  %91 = vmatpush1.msra.mxu0 %v24
  %92 = vmatprep.subr.mxu0 0.0
  %93 = vmatpush1.msra.mxu0 %v25
  %94 = vmatprep.subr.mxu0 0.0
  %95 = vmatpush1.msra.mxu0 %v26
  %96 = vmatprep.subr.mxu0 0.0
  %97 = vmatpush1.msra.mxu0 %v27
  %98 = vmatprep.subr.mxu0 0.0
  %99 = vmatpush1.msra.mxu0 %v28
  %100 = vmatprep.subr.mxu0 0.0
  %101 = vmatpush1.msra.mxu0 %v29
  %102 = vmatprep.subr.mxu0 0.0
  %103 = vmatpush1.msra.mxu0 %v30
  %104 = vmatprep.subr.mxu0 0.0
  %105 = vmatpush1.msra.mxu0 %v31
  %106 = vmatprep.subr.mxu0 0.0
  %107 = vmatpush1.msra.mxu0 %v32
  %108 = vmatprep.subr.mxu0 0.0
  %109 = vmatpush1.msra.mxu0 %v33
  %110 = vmatprep.subr.mxu0 0.0
  %111 = vmatpush1.msra.mxu0 %v34
  %112 = vmatprep.subr.mxu0 0.0
  %113 = vmatpush1.msra.mxu0 %v35
  %114 = vmatprep.subr.mxu0 0.0
  %115 = vmatpush1.msra.mxu0 %v36
  %116 = vmatprep.subr.mxu0 0.0
  %117 = vmatpush1.msra.mxu0 %v37
  %118 = vmatprep.subr.mxu0 0.0
  %119 = vmatpush1.msra.mxu0 %v38
  %120 = vmatprep.subr.mxu0 0.0
  %121 = vmatpush1.msra.mxu0 0.0
  %122 = vmatprep.subr.mxu0 0.0
  %123 = vmatpush1.msra.mxu0 0.0
  %124 = vmatprep.subr.mxu0 0.0
  %125 = vmatpush1.msra.mxu0 0.0
  %126 = vmatprep.subr.mxu0 0.0
  %127 = vmatpush1.msra.mxu0 0.0
  %128 = vmatprep.subr.mxu0 0.0
  %129 = vmatpush1.msra.mxu0 0.0
  %130 = vmatprep.subr.mxu0 0.0
  %131 = vmatpush1.msra.mxu0 0.0
  %132 = vmatprep.subr.mxu0 0.0
  %133 = vmatpush1.msra.mxu0 0.0
  %134 = vmatprep.subr.mxu0 0.0
  %135 = vmatpush1.msra.mxu0 0.0
  %136 = vmatprep.subr.mxu0 0.0
  %137 = vmatpush1.msra.mxu0 0.0
  %138 = vmatprep.subr.mxu0 0.0
  %139 = vmatpush1.msra.mxu0 0.0
  %140 = vmatprep.subr.mxu0 0.0
  %141 = vmatpush1.msra.mxu0 0.0
  %142 = vmatprep.subr.mxu0 0.0
  %143 = vmatpush1.msra.mxu0 0.0
  %144 = vmatprep.subr.mxu0 0.0
  %145 = vmatpush1.msra.mxu0 0.0
  %146 = vmatprep.subr.mxu0 0.0
  %147 = vmatpush1.msra.mxu0 0.0
  %148 = vmatprep.subr.mxu0 0.0
  %149 = vmatpush1.msra.mxu0 0.0
  %150 = vmatprep.subr.mxu0 0.0
  %151 = vmatpush1.msra.mxu0 0.0
  %152 = vmatprep.mubr.f32.mxu0 0.0
  %153 = vmatmul.mubr.f32.gmra.mrb[0].mxu0 %v39
  %v154 = vpop.f32.mrb[0].mxu0
  %v155 = vadd.f32 0.0, %v154
  %v156 = vpop.f32.mrb[0].mxu0
  %157 = vmatprep.mubr.f32.mxu0 0.0
  %158 = vmatmul.mubr.f32.gmra.mrb[0].mxu0 %v40
  %v159 = vpop.f32.mrb[0].mxu0
  %v160 = vadd.f32 0.0, %v159
  %v161 = vpop.f32.mrb[0].mxu0
  %162 = vmatprep.mubr.f32.mxu0 0.0
  %163 = vmatmul.mubr.f32.gmra.mrb[0].mxu0 %v41
  %v164 = vpop.f32.mrb[0].mxu0
  %v165 = vadd.f32 0.0, %v164
  %v166 = vpop.f32.mrb[0].mxu0
  %167 = vmatprep.mubr.f32.mxu0 0.0
  %168 = vmatmul.mubr.f32.gmra.mrb[0].mxu0 %v42
  %v169 = vpop.f32.mrb[0].mxu0
  %v170 = vadd.f32 0.0, %v169
  %v171 = vpop.f32.mrb[0].mxu0
  %172 = vmatprep.mubr.f32.mxu0 0.0
  %173 = vmatmul.mubr.f32.gmra.mrb[0].mxu0 %v43
  %v174 = vpop.f32.mrb[0].mxu0
  %v175 = vadd.f32 0.0, %v174
  %v176 = vpop.f32.mrb[0].mxu0
  %177 = vmatprep.mubr.f32.mxu0 0.0
  %178 = vmatmul.mubr.f32.gmra.mrb[0].mxu0 %v44
  %v179 = vpop.f32.mrb[0].mxu0
  %v180 = vadd.f32 0.0, %v179
  %v181 = vpop.f32.mrb[0].mxu0
  %182 = vmatprep.mubr.f32.mxu0 0.0
  %183 = vmatmul.mubr.f32.gmra.mrb[0].mxu0 %v45
  %v184 = vpop.f32.mrb[0].mxu0
  %v185 = vadd.f32 0.0, %v184
  %v186 = vpop.f32.mrb[0].mxu0
  %187 = vmatprep.mubr.f32.mxu0 0.0
  %188 = vmatmul.mubr.f32.gmra.mrb[0].mxu0 %v46
  %v189 = vpop.f32.mrb[0].mxu0
  %v190 = vadd.f32 0.0, %v189
  %v191 = vpop.f32.mrb[0].mxu0
  %192 = vmatprep.mubr.f32.mxu0 0.0
  %193 = vmatmul.mubr.f32.gmra.mrb[0].mxu0 %v47
  %v194 = vpop.f32.mrb[0].mxu0
  %v195 = vadd.f32 0.0, %v194
  %v196 = vpop.f32.mrb[0].mxu0
  %197 = vmatprep.mubr.f32.mxu0 0.0
  %198 = vmatmul.mubr.f32.gmra.mrb[0].mxu0 %v48
  %v199 = vpop.f32.mrb[0].mxu0
  %v200 = vadd.f32 0.0, %v199
  %v201 = vpop.f32.mrb[0].mxu0
  %202 = vmatprep.mubr.f32.mxu0 0.0
  %203 = vmatmul.mubr.f32.gmra.mrb[0].mxu0 %v49
  %v204 = vpop.f32.mrb[0].mxu0
  %v205 = vadd.f32 0.0, %v204
  %v206 = vpop.f32.mrb[0].mxu0
  %207 = vmatprep.mubr.f32.mxu0 0.0
  %208 = vmatmul.mubr.f32.gmra.mrb[0].mxu0 %v50
  %v209 = vpop.f32.mrb[0].mxu0
  %v210 = vadd.f32 0.0, %v209
  %v211 = vpop.f32.mrb[0].mxu0
  %212 = vmatprep.mubr.f32.mxu0 0.0
  %213 = vmatmul.mubr.f32.gmra.mrb[0].mxu0 %v51
  %v214 = vpop.f32.mrb[0].mxu0
  %v215 = vadd.f32 0.0, %v214
  %v216 = vpop.f32.mrb[0].mxu0
  %217 = vmatprep.mubr.f32.mxu0 0.0
  %218 = vmatmul.mubr.f32.gmra.mrb[0].mxu0 %v52
  %v219 = vpop.f32.mrb[0].mxu0
  %v220 = vadd.f32 0.0, %v219
  %v221 = vpop.f32.mrb[0].mxu0
  %222 = vmatprep.mubr.f32.mxu0 0.0
  %223 = vmatmul.mubr.f32.gmra.mrb[0].mxu0 %v53
  %v224 = vpop.f32.mrb[0].mxu0
  %v225 = vadd.f32 0.0, %v224
  %v226 = vpop.f32.mrb[0].mxu0
  %227 = vmatprep.mubr.f32.mxu0 0.0
  %228 = vmatmul.mubr.f32.gmra.mrb[0].mxu0 %v54
  %v229 = vpop.f32.mrb[0].mxu0
  %v230 = vadd.f32 0.0, %v229
  %v231 = vpop.f32.mrb[0].mxu0
  %232 = vmatprep.mubr.f32.mxu0 0.0
  %233 = vmatmul.mubr.f32.gmra.mrb[0].mxu0 %v55
  %v234 = vpop.f32.mrb[0].mxu0
  %v235 = vadd.f32 0.0, %v234
  %v236 = vpop.f32.mrb[0].mxu0
  %237 = vmatprep.mubr.f32.mxu0 0.0
  %238 = vmatmul.mubr.f32.gmra.mrb[0].mxu0 %v56
  %v239 = vpop.f32.mrb[0].mxu0
  %v240 = vadd.f32 0.0, %v239
  %v241 = vpop.f32.mrb[0].mxu0
  %242 = vmatprep.mubr.f32.mxu0 0.0
  %243 = vmatmul.mubr.f32.gmra.mrb[0].mxu0 %v57
  %v244 = vpop.f32.mrb[0].mxu0
  %v245 = vadd.f32 0.0, %v244
  %v246 = vpop.f32.mrb[0].mxu0
  %247 = vmatprep.mubr.f32.mxu0 0.0
  %248 = vmatmul.mubr.f32.gmra.mrb[0].mxu0 %v58
  %v249 = vpop.f32.mrb[0].mxu0
  %v250 = vadd.f32 0.0, %v249
  %v251 = vpop.f32.mrb[0].mxu0
  %252 = vmatprep.mubr.f32.mxu0 0.0
  %253 = vmatmul.mubr.f32.gmra.mrb[0].mxu0 %v59
  %v254 = vpop.f32.mrb[0].mxu0
  %v255 = vadd.f32 0.0, %v254
  %v256 = vpop.f32.mrb[0].mxu0
  %257 = vmatprep.mubr.f32.mxu0 0.0
  %258 = vmatmul.mubr.f32.gmra.mrb[0].mxu0 %v60
  %v259 = vpop.f32.mrb[0].mxu0
  %v260 = vadd.f32 0.0, %v259
  %v261 = vpop.f32.mrb[0].mxu0
  %262 = vmatprep.mubr.f32.mxu0 0.0
  %263 = vmatmul.mubr.f32.gmra.mrb[0].mxu0 %v61
  %v264 = vpop.f32.mrb[0].mxu0
  %v265 = vadd.f32 0.0, %v264
  %v266 = vpop.f32.mrb[0].mxu0
  %267 = vmatprep.mubr.f32.mxu0 0.0
  %268 = vmatmul.mubr.f32.gmra.mrb[0].mxu0 %v62
  %v269 = vpop.f32.mrb[0].mxu0
  %v270 = vadd.f32 0.0, %v269
  %v271 = vpop.f32.mrb[0].mxu0
  %272 = vmatprep.mubr.f32.mxu0 0.0
  %273 = vmatmul.mubr.f32.gmra.mrb[0].mxu0 %v63
  %v274 = vpop.f32.mrb[0].mxu0
  %v275 = vadd.f32 0.0, %v274
  %v276 = vpop.f32.mrb[0].mxu0
  %277 = vmatprep.mubr.f32.mxu0 0.0
  %278 = vmatmul.mubr.f32.gmra.mrb[0].mxu0 %v64
  %v279 = vpop.f32.mrb[0].mxu0
  %v280 = vadd.f32 0.0, %v279
  %v281 = vpop.f32.mrb[0].mxu0
  %282 = vmatprep.mubr.f32.mxu0 0.0
  %283 = vmatmul.mubr.f32.gmra.mrb[0].mxu0 %v65
  %v284 = vpop.f32.mrb[0].mxu0
  %v285 = vadd.f32 0.0, %v284
  %v286 = vpop.f32.mrb[0].mxu0
  %287 = vmatprep.mubr.f32.mxu0 0.0
  %288 = vmatmul.mubr.f32.gmra.mrb[0].mxu0 %v66
  %v289 = vpop.f32.mrb[0].mxu0
  %v290 = vadd.f32 0.0, %v289
  %v291 = vpop.f32.mrb[0].mxu0
  %292 = vmatprep.mubr.f32.mxu0 0.0
  %293 = vmatmul.mubr.f32.gmra.mrb[0].mxu0 %v67
  %v294 = vpop.f32.mrb[0].mxu0
  %v295 = vadd.f32 0.0, %v294
  %v296 = vpop.f32.mrb[0].mxu0
  %297 = vmatprep.mubr.f32.mxu0 0.0
  %298 = vmatmul.mubr.f32.gmra.mrb[0].mxu0 %v68
  %v299 = vpop.f32.mrb[0].mxu0
  %v300 = vadd.f32 0.0, %v299
  %v301 = vpop.f32.mrb[0].mxu0
  %302 = vmatprep.mubr.f32.mxu0 0.0
  %303 = vmatmul.mubr.f32.gmra.mrb[0].mxu0 %v69
  %v304 = vpop.f32.mrb[0].mxu0
  %v305 = vadd.f32 0.0, %v304
  %v306 = vpop.f32.mrb[0].mxu0
  %307 = vmatprep.mubr.f32.mxu0 0.0
  %308 = vmatmul.mubr.f32.gmra.mrb[0].mxu0 %v70
  %v309 = vpop.f32.mrb[0].mxu0
  %v310 = vadd.f32 0.0, %v309
  %v311 = vpop.f32.mrb[0].mxu0
  %312 = vmatprep.mubr.f32.mxu0 0.0
  %313 = vmatmul.mubr.f32.gmra.mrb[0].mxu0 %v71
  %v314 = vpop.f32.mrb[0].mxu0
  %v315 = vadd.f32 0.0, %v314
  %v316 = vpop.f32.mrb[0].mxu0
  %317 = vmatprep.mubr.f32.mxu0 0.0
  %318 = vmatmul.mubr.f32.gmra.mrb[0].mxu0 %v72
  %v319 = vpop.f32.mrb[0].mxu0
  %v320 = vadd.f32 0.0, %v319
  %v321 = vpop.f32.mrb[0].mxu0
  %322 = vmatprep.mubr.f32.mxu0 0.0
  %323 = vmatmul.mubr.f32.gmra.mrb[0].mxu0 %v73
  %v324 = vpop.f32.mrb[0].mxu0
  %v325 = vadd.f32 0.0, %v324
  %v326 = vpop.f32.mrb[0].mxu0
  %327 = vmatprep.mubr.f32.mxu0 0.0
  %328 = vmatmul.mubr.f32.gmra.mrb[0].mxu0 %v74
  %v329 = vpop.f32.mrb[0].mxu0
  %v330 = vadd.f32 0.0, %v329
  %v331 = vpop.f32.mrb[0].mxu0
  %332 = vmatprep.mubr.f32.mxu0 0.0
  %333 = vmatmul.mubr.f32.gmra.mrb[0].mxu0 %v75
  %v334 = vpop.f32.mrb[0].mxu0
  %v335 = vadd.f32 0.0, %v334
  %v336 = vpop.f32.mrb[0].mxu0
  %337 = vmatprep.mubr.f32.mxu0 0.0
  %338 = vmatmul.mubr.f32.gmra.mrb[0].mxu0 %v76
  %v339 = vpop.f32.mrb[0].mxu0
  %v340 = vadd.f32 0.0, %v339
  %v341 = vpop.f32.mrb[0].mxu0
  %342 = vmatprep.mubr.f32.mxu0 0.0
  %343 = vmatmul.mubr.f32.gmra.mrb[0].mxu0 %v77
  %v344 = vpop.f32.mrb[0].mxu0
  %v345 = vadd.f32 0.0, %v344
  %v346 = vpop.f32.mrb[0].mxu0
  %347 = vmatprep.mubr.f32.mxu0 0.0
  %348 = vmatmul.mubr.f32.gmra.mrb[0].mxu0 %v78
  %v349 = vpop.f32.mrb[0].mxu0
  %v350 = vadd.f32 0.0, %v349
  %v351 = vpop.f32.mrb[0].mxu0
  %352 = vmatprep.mubr.f32.mxu0 0.0
  %353 = vmatmul.mubr.f32.gmra.mrb[0].mxu0 %v79
  %v354 = vpop.f32.mrb[0].mxu0
  %v355 = vadd.f32 0.0, %v354
  %v356 = vpop.f32.mrb[0].mxu0
  %357 = vmatprep.mubr.f32.mxu0 0.0
  %358 = vmatmul.mubr.f32.gmra.mrb[0].mxu0 %v80
  %v359 = vpop.f32.mrb[0].mxu0
  %v360 = vadd.f32 0.0, %v359
  %v361 = vpop.f32.mrb[0].mxu0
  %362 = vmatprep.mubr.f32.mxu0 0.0
  %363 = vmatmul.mubr.f32.gmra.mrb[0].mxu0 %v81
  %v364 = vpop.f32.mrb[0].mxu0
  %v365 = vadd.f32 0.0, %v364
  %v366 = vpop.f32.mrb[0].mxu0
  %367 = vmatprep.mubr.f32.mxu0 0.0
  %368 = vmatmul.mubr.f32.gmra.mrb[0].mxu0 %v82
  %v369 = vpop.f32.mrb[0].mxu0
  %v370 = vadd.f32 0.0, %v369
  %v371 = vpop.f32.mrb[0].mxu0
  %372 = vmatprep.mubr.f32.mxu0 0.0
  %373 = vmatmul.mubr.f32.gmra.mrb[0].mxu0 %v83
  %v374 = vpop.f32.mrb[0].mxu0
  %v375 = vadd.f32 0.0, %v374
  %v376 = vpop.f32.mrb[0].mxu0
  %377 = vmatprep.mubr.f32.mxu0 0.0
  %378 = vmatmul.mubr.f32.gmra.mrb[0].mxu0 %v84
  %v379 = vpop.f32.mrb[0].mxu0
  %v380 = vadd.f32 0.0, %v379
  %v381 = vpop.f32.mrb[0].mxu0
  %382 = vmatprep.mubr.f32.mxu0 0.0
  %383 = vmatmul.mubr.f32.gmra.mrb[0].mxu0 %v85
  %v384 = vpop.f32.mrb[0].mxu0
  %v385 = vadd.f32 0.0, %v384
  %v386 = vpop.f32.mrb[0].mxu0
  %387 = vmatprep.mubr.f32.mxu0 0.0
  %388 = vmatmul.mubr.f32.gmra.mrb[0].mxu0 %v86
  %v389 = vpop.f32.mrb[0].mxu0
  %v390 = vadd.f32 0.0, %v389
  %v391 = vpop.f32.mrb[0].mxu0
  %392 = vmatprep.mubr.f32.mxu0 0.0
  %393 = vmatmul.mubr.f32.gmra.mrb[0].mxu0 %v87
  %v394 = vpop.f32.mrb[0].mxu0
  %v395 = vadd.f32 0.0, %v394
  %v396 = vpop.f32.mrb[0].mxu0
  %397 = vdwg.mxu0
  %v398 = vld [vmem:[%s1] sm:$0xff]
  %v399 = vld [vmem:[%s1 + $0x8] sm:$0xff]
  %v400 = vld [vmem:[%s1 + $0x10] sm:$0xff]
  %v401 = vld [vmem:[%s1 + $0x18] sm:$0xff]
  %v402 = vld [vmem:[%s1 + $0x20] sm:$0xff]
  %v403 = vld [vmem:[%s1 + $0x28] sm:$0xff]
  %v404 = vld [vmem:[%s1 + $0x30] sm:$0xff]
  %v405 = vld [vmem:[%s1 + $0x38] sm:$0xff]
  %v406 = vld [vmem:[%s1 + $0x40] sm:$0xff]
  %v407 = vld [vmem:[%s1 + $0x48] sm:$0xff]
  %v408 = vld [vmem:[%s1 + $0x50] sm:$0xff]
  %v409 = vld [vmem:[%s1 + $0x58] sm:$0xff]
  %v410 = vld [vmem:[%s1 + $0x60] sm:$0xff]
  %v411 = vld [vmem:[%s1 + $0x68] sm:$0xff]
  %v412 = vld [vmem:[%s1 + $0x70] sm:$0xff]
  %v413 = vld [vmem:[%s1 + $0x78] sm:$0xff]
  %v414 = vld [vmem:[%s1 + $0x80] sm:$0xff]
  %v415 = vld [vmem:[%s1 + $0x88] sm:$0xff]
  %v416 = vld [vmem:[%s1 + $0x90] sm:$0xff]
  %v417 = vld [vmem:[%s1 + $0x98] sm:$0xff]
  %v418 = vld [vmem:[%s1 + $0xa0] sm:$0xff]
  %v419 = vld [vmem:[%s1 + $0xa8] sm:$0xff]
  %v420 = vld [vmem:[%s1 + $0xb0] sm:$0xff]
  %v421 = vld [vmem:[%s1 + $0xb8] sm:$0xff]
  %v422 = vld [vmem:[%s1 + $0xc0] sm:$0xff]
  %v423 = vld [vmem:[%s1 + $0xc8] sm:$0xff]
  %v424 = vld [vmem:[%s1 + $0xd0] sm:$0xff]
  %v425 = vld [vmem:[%s1 + $0xd8] sm:$0xff]
  %v426 = vld [vmem:[%s1 + $0xe0] sm:$0xff]
  %v427 = vld [vmem:[%s1 + $0xe8] sm:$0xff]
  %v428 = vld [vmem:[%s1 + $0xf0] sm:$0xff]
  %v429 = vld [vmem:[%s1 + $0xf8] sm:$0xff]
  %v430 = vld [vmem:[%s1 + $0x100] sm:$0xff]
  %v431 = vld [vmem:[%s1 + $0x108] sm:$0xff]
  %v432 = vld [vmem:[%s1 + $0x110] sm:$0xff]
  %v433 = vld [vmem:[%s1 + $0x118] sm:$0xff]
  %v434 = vld [vmem:[%s1 + $0x120] sm:$0xff]
  %v435 = vld [vmem:[%s1 + $0x128] sm:$0xff]
  %v436 = vld [vmem:[%s1 + $0x130] sm:$0xff]
  %v437 = vld [vmem:[%s1 + $0x138] sm:$0xff]
  %v438 = vld [vmem:[%s1 + $0x140] sm:$0xff]
  %v439 = vld [vmem:[%s1 + $0x148] sm:$0xff]
  %v440 = vld [vmem:[%s1 + $0x150] sm:$0xff]
  %v441 = vld [vmem:[%s1 + $0x158] sm:$0xff]
  %v442 = vld [vmem:[%s1 + $0x160] sm:$0xff]
  %v443 = vld [vmem:[%s1 + $0x168] sm:$0xff]
  %v444 = vld [vmem:[%s1 + $0x170] sm:$0xff]
  %v445 = vld [vmem:[%s1 + $0x178] sm:$0xff]
  %v446 = vld [vmem:[%s1 + $0x180] sm:$0xff]
  %447 = vmatprep.subr.mxu0 0.0
  %448 = vmatpush1.msra.mxu0 %v23
  %449 = vmatprep.subr.mxu0 0.0
  %450 = vmatpush1.msra.mxu0 %v24
  %451 = vmatprep.subr.mxu0 0.0
  %452 = vmatpush1.msra.mxu0 %v25
  %453 = vmatprep.subr.mxu0 0.0
  %454 = vmatpush1.msra.mxu0 %v26
  %455 = vmatprep.subr.mxu0 0.0
  %456 = vmatpush1.msra.mxu0 %v27
  %457 = vmatprep.subr.mxu0 0.0
  %458 = vmatpush1.msra.mxu0 %v28
  %459 = vmatprep.subr.mxu0 0.0
  %460 = vmatpush1.msra.mxu0 %v29
  %461 = vmatprep.subr.mxu0 0.0
  %462 = vmatpush1.msra.mxu0 %v30
  %463 = vmatprep.subr.mxu0 0.0
  %464 = vmatpush1.msra.mxu0 %v31
  %465 = vmatprep.subr.mxu0 0.0
  %466 = vmatpush1.msra.mxu0 %v32
  %467 = vmatprep.subr.mxu0 0.0
  %468 = vmatpush1.msra.mxu0 %v33
  %469 = vmatprep.subr.mxu0 0.0
  %470 = vmatpush1.msra.mxu0 %v34
  %471 = vmatprep.subr.mxu0 0.0
  %472 = vmatpush1.msra.mxu0 %v35
  %473 = vmatprep.subr.mxu0 0.0
  %474 = vmatpush1.msra.mxu0 %v36
  %475 = vmatprep.subr.mxu0 0.0
  %476 = vmatpush1.msra.mxu0 %v37
  %477 = vmatprep.subr.mxu0 0.0
  %478 = vmatpush1.msra.mxu0 %v38
  %479 = vmatprep.subr.mxu0 0.0
  %480 = vmatpush1.msra.mxu0 0.0
  %481 = vmatprep.subr.mxu0 0.0
  %482 = vmatpush1.msra.mxu0 0.0
  %483 = vmatprep.subr.mxu0 0.0
  %484 = vmatpush1.msra.mxu0 0.0
  %485 = vmatprep.subr.mxu0 0.0
  %486 = vmatpush1.msra.mxu0 0.0
  %487 = vmatprep.subr.mxu0 0.0
  %488 = vmatpush1.msra.mxu0 0.0
  %489 = vmatprep.subr.mxu0 0.0
  %490 = vmatpush1.msra.mxu0 0.0
  %491 = vmatprep.subr.mxu0 0.0
  %492 = vmatpush1.msra.mxu0 0.0
  %493 = vmatprep.subr.mxu0 0.0
  %494 = vmatpush1.msra.mxu0 0.0
  %495 = vmatprep.subr.mxu0 0.0
  %496 = vmatpush1.msra.mxu0 0.0
  %497 = vmatprep.subr.mxu0 0.0
  %498 = vmatpush1.msra.mxu0 0.0
  %499 = vmatprep.subr.mxu0 0.0
  %500 = vmatpush1.msra.mxu0 0.0
  %501 = vmatprep.subr.mxu0 0.0
  %502 = vmatpush1.msra.mxu0 0.0
  %503 = vmatprep.subr.mxu0 0.0
  %504 = vmatpush1.msra.mxu0 0.0
  %505 = vmatprep.subr.mxu0 0.0
  %506 = vmatpush1.msra.mxu0 0.0
  %507 = vmatprep.subr.mxu0 0.0
  %508 = vmatpush1.msra.mxu0 0.0
  %509 = vmatprep.subr.mxu0 0.0
  %510 = vmatpush1.msra.mxu0 0.0
  %511 = vmatprep.mubr.f32.mxu0 0.0
  %512 = vmatmul.mubr.f32.gmra.mrb[0].mxu0 %v398
  %v513 = vpop.f32.mrb[0].mxu0
  %v514 = vadd.f32 0.0, %v513
  %v515 = vpop.f32.mrb[0].mxu0
  %516 = vmatprep.mubr.f32.mxu0 0.0
  %517 = vmatmul.mubr.f32.gmra.mrb[0].mxu0 %v399
  %v518 = vpop.f32.mrb[0].mxu0
  %v519 = vadd.f32 0.0, %v518
  %v520 = vpop.f32.mrb[0].mxu0
  %521 = vmatprep.mubr.f32.mxu0 0.0
  %522 = vmatmul.mubr.f32.gmra.mrb[0].mxu0 %v400
  %v523 = vpop.f32.mrb[0].mxu0
  %v524 = vadd.f32 0.0, %v523
  %v525 = vpop.f32.mrb[0].mxu0
  %526 = vmatprep.mubr.f32.mxu0 0.0
  %527 = vmatmul.mubr.f32.gmra.mrb[0].mxu0 %v401
  %v528 = vpop.f32.mrb[0].mxu0
  %v529 = vadd.f32 0.0, %v528
  %v530 = vpop.f32.mrb[0].mxu0
  %531 = vmatprep.mubr.f32.mxu0 0.0
  %532 = vmatmul.mubr.f32.gmra.mrb[0].mxu0 %v402
  %v533 = vpop.f32.mrb[0].mxu0
  %v534 = vadd.f32 0.0, %v533
  %v535 = vpop.f32.mrb[0].mxu0
  %536 = vmatprep.mubr.f32.mxu0 0.0
  %537 = vmatmul.mubr.f32.gmra.mrb[0].mxu0 %v403
  %v538 = vpop.f32.mrb[0].mxu0
  %v539 = vadd.f32 0.0, %v538
  %v540 = vpop.f32.mrb[0].mxu0
  %541 = vmatprep.mubr.f32.mxu0 0.0
  %542 = vmatmul.mubr.f32.gmra.mrb[0].mxu0 %v404
  %v543 = vpop.f32.mrb[0].mxu0
  %v544 = vadd.f32 0.0, %v543
  %v545 = vpop.f32.mrb[0].mxu0
  %546 = vmatprep.mubr.f32.mxu0 0.0
  %547 = vmatmul.mubr.f32.gmra.mrb[0].mxu0 %v405
  %v548 = vpop.f32.mrb[0].mxu0
  %v549 = vadd.f32 0.0, %v548
  %v550 = vpop.f32.mrb[0].mxu0
  %551 = vmatprep.mubr.f32.mxu0 0.0
  %552 = vmatmul.mubr.f32.gmra.mrb[0].mxu0 %v406
  %v553 = vpop.f32.mrb[0].mxu0
  %v554 = vadd.f32 0.0, %v553
  %v555 = vpop.f32.mrb[0].mxu0
  %556 = vmatprep.mubr.f32.mxu0 0.0
  %557 = vmatmul.mubr.f32.gmra.mrb[0].mxu0 %v407
  %v558 = vpop.f32.mrb[0].mxu0
  %v559 = vadd.f32 0.0, %v558
  %v560 = vpop.f32.mrb[0].mxu0
  %561 = vmatprep.mubr.f32.mxu0 0.0
  %562 = vmatmul.mubr.f32.gmra.mrb[0].mxu0 %v408
  %v563 = vpop.f32.mrb[0].mxu0
  %v564 = vadd.f32 0.0, %v563
  %v565 = vpop.f32.mrb[0].mxu0
  %566 = vmatprep.mubr.f32.mxu0 0.0
  %567 = vmatmul.mubr.f32.gmra.mrb[0].mxu0 %v409
  %v568 = vpop.f32.mrb[0].mxu0
  %v569 = vadd.f32 0.0, %v568
  %v570 = vpop.f32.mrb[0].mxu0
  %571 = vmatprep.mubr.f32.mxu0 0.0
  %572 = vmatmul.mubr.f32.gmra.mrb[0].mxu0 %v410
  %v573 = vpop.f32.mrb[0].mxu0
  %v574 = vadd.f32 0.0, %v573
  %v575 = vpop.f32.mrb[0].mxu0
  %576 = vmatprep.mubr.f32.mxu0 0.0
  %577 = vmatmul.mubr.f32.gmra.mrb[0].mxu0 %v411
  %v578 = vpop.f32.mrb[0].mxu0
  %v579 = vadd.f32 0.0, %v578
  %v580 = vpop.f32.mrb[0].mxu0
  %581 = vmatprep.mubr.f32.mxu0 0.0
  %582 = vmatmul.mubr.f32.gmra.mrb[0].mxu0 %v412
  %v583 = vpop.f32.mrb[0].mxu0
  %v584 = vadd.f32 0.0, %v583
  %v585 = vpop.f32.mrb[0].mxu0
  %586 = vmatprep.mubr.f32.mxu0 0.0
  %587 = vmatmul.mubr.f32.gmra.mrb[0].mxu0 %v413
  %v588 = vpop.f32.mrb[0].mxu0
  %v589 = vadd.f32 0.0, %v588
  %v590 = vpop.f32.mrb[0].mxu0
  %591 = vmatprep.mubr.f32.mxu0 0.0
  %592 = vmatmul.mubr.f32.gmra.mrb[0].mxu0 %v414
  %v593 = vpop.f32.mrb[0].mxu0
  %v594 = vadd.f32 0.0, %v593
  %v595 = vpop.f32.mrb[0].mxu0
  %596 = vmatprep.mubr.f32.mxu0 0.0
  %597 = vmatmul.mubr.f32.gmra.mrb[0].mxu0 %v415
  %v598 = vpop.f32.mrb[0].mxu0
  %v599 = vadd.f32 0.0, %v598
  %v600 = vpop.f32.mrb[0].mxu0
  %601 = vmatprep.mubr.f32.mxu0 0.0
  %602 = vmatmul.mubr.f32.gmra.mrb[0].mxu0 %v416
  %v603 = vpop.f32.mrb[0].mxu0
  %v604 = vadd.f32 0.0, %v603
  %v605 = vpop.f32.mrb[0].mxu0
  %606 = vmatprep.mubr.f32.mxu0 0.0
  %607 = vmatmul.mubr.f32.gmra.mrb[0].mxu0 %v417
  %v608 = vpop.f32.mrb[0].mxu0
  %v609 = vadd.f32 0.0, %v608
  %v610 = vpop.f32.mrb[0].mxu0
  %611 = vmatprep.mubr.f32.mxu0 0.0
  %612 = vmatmul.mubr.f32.gmra.mrb[0].mxu0 %v418
  %v613 = vpop.f32.mrb[0].mxu0
  %v614 = vadd.f32 0.0, %v613
  %v615 = vpop.f32.mrb[0].mxu0
  %616 = vmatprep.mubr.f32.mxu0 0.0
  %617 = vmatmul.mubr.f32.gmra.mrb[0].mxu0 %v419
  %v618 = vpop.f32.mrb[0].mxu0
  %v619 = vadd.f32 0.0, %v618
  %v620 = vpop.f32.mrb[0].mxu0
  %621 = vmatprep.mubr.f32.mxu0 0.0
  %622 = vmatmul.mubr.f32.gmra.mrb[0].mxu0 %v420
  %v623 = vpop.f32.mrb[0].mxu0
  %v624 = vadd.f32 0.0, %v623
  %v625 = vpop.f32.mrb[0].mxu0
  %626 = vmatprep.mubr.f32.mxu0 0.0
  %627 = vmatmul.mubr.f32.gmra.mrb[0].mxu0 %v421
  %v628 = vpop.f32.mrb[0].mxu0
  %v629 = vadd.f32 0.0, %v628
  %v630 = vpop.f32.mrb[0].mxu0
  %631 = vmatprep.mubr.f32.mxu0 0.0
  %632 = vmatmul.mubr.f32.gmra.mrb[0].mxu0 %v422
  %v633 = vpop.f32.mrb[0].mxu0
  %v634 = vadd.f32 0.0, %v633
  %v635 = vpop.f32.mrb[0].mxu0
  %636 = vmatprep.mubr.f32.mxu0 0.0
  %637 = vmatmul.mubr.f32.gmra.mrb[0].mxu0 %v423
  %v638 = vpop.f32.mrb[0].mxu0
  %v639 = vadd.f32 0.0, %v638
  %v640 = vpop.f32.mrb[0].mxu0
  %641 = vmatprep.mubr.f32.mxu0 0.0
  %642 = vmatmul.mubr.f32.gmra.mrb[0].mxu0 %v424
  %v643 = vpop.f32.mrb[0].mxu0
  %v644 = vadd.f32 0.0, %v643
  %v645 = vpop.f32.mrb[0].mxu0
  %646 = vmatprep.mubr.f32.mxu0 0.0
  %647 = vmatmul.mubr.f32.gmra.mrb[0].mxu0 %v425
  %v648 = vpop.f32.mrb[0].mxu0
  %v649 = vadd.f32 0.0, %v648
  %v650 = vpop.f32.mrb[0].mxu0
  %651 = vmatprep.mubr.f32.mxu0 0.0
  %652 = vmatmul.mubr.f32.gmra.mrb[0].mxu0 %v426
  %v653 = vpop.f32.mrb[0].mxu0
  %v654 = vadd.f32 0.0, %v653
  %v655 = vpop.f32.mrb[0].mxu0
  %656 = vmatprep.mubr.f32.mxu0 0.0
  %657 = vmatmul.mubr.f32.gmra.mrb[0].mxu0 %v427
  %v658 = vpop.f32.mrb[0].mxu0
  %v659 = vadd.f32 0.0, %v658
  %v660 = vpop.f32.mrb[0].mxu0
  %661 = vmatprep.mubr.f32.mxu0 0.0
  %662 = vmatmul.mubr.f32.gmra.mrb[0].mxu0 %v428
  %v663 = vpop.f32.mrb[0].mxu0
  %v664 = vadd.f32 0.0, %v663
  %v665 = vpop.f32.mrb[0].mxu0
  %666 = vmatprep.mubr.f32.mxu0 0.0
  %667 = vmatmul.mubr.f32.gmra.mrb[0].mxu0 %v429
  %v668 = vpop.f32.mrb[0].mxu0
  %v669 = vadd.f32 0.0, %v668
  %v670 = vpop.f32.mrb[0].mxu0
  %671 = vmatprep.mubr.f32.mxu0 0.0
  %672 = vmatmul.mubr.f32.gmra.mrb[0].mxu0 %v430
  %v673 = vpop.f32.mrb[0].mxu0
  %v674 = vadd.f32 0.0, %v673
  %v675 = vpop.f32.mrb[0].mxu0
  %676 = vmatprep.mubr.f32.mxu0 0.0
  %677 = vmatmul.mubr.f32.gmra.mrb[0].mxu0 %v431
  %v678 = vpop.f32.mrb[0].mxu0
  %v679 = vadd.f32 0.0, %v678
  %v680 = vpop.f32.mrb[0].mxu0
  %681 = vmatprep.mubr.f32.mxu0 0.0
  %682 = vmatmul.mubr.f32.gmra.mrb[0].mxu0 %v432
  %v683 = vpop.f32.mrb[0].mxu0
  %v684 = vadd.f32 0.0, %v683
  %v685 = vpop.f32.mrb[0].mxu0
  %686 = vmatprep.mubr.f32.mxu0 0.0
  %687 = vmatmul.mubr.f32.gmra.mrb[0].mxu0 %v433
  %v688 = vpop.f32.mrb[0].mxu0
  %v689 = vadd.f32 0.0, %v688
  %v690 = vpop.f32.mrb[0].mxu0
  %691 = vmatprep.mubr.f32.mxu0 0.0
  %692 = vmatmul.mubr.f32.gmra.mrb[0].mxu0 %v434
  %v693 = vpop.f32.mrb[0].mxu0
  %v694 = vadd.f32 0.0, %v693
  %v695 = vpop.f32.mrb[0].mxu0
  %696 = vmatprep.mubr.f32.mxu0 0.0
  %697 = vmatmul.mubr.f32.gmra.mrb[0].mxu0 %v435
  %v698 = vpop.f32.mrb[0].mxu0
  %v699 = vadd.f32 0.0, %v698
  %v700 = vpop.f32.mrb[0].mxu0
  %701 = vmatprep.mubr.f32.mxu0 0.0
  %702 = vmatmul.mubr.f32.gmra.mrb[0].mxu0 %v436
  %v703 = vpop.f32.mrb[0].mxu0
  %v704 = vadd.f32 0.0, %v703
  %v705 = vpop.f32.mrb[0].mxu0
  %706 = vmatprep.mubr.f32.mxu0 0.0
  %707 = vmatmul.mubr.f32.gmra.mrb[0].mxu0 %v437
  %v708 = vpop.f32.mrb[0].mxu0
  %v709 = vadd.f32 0.0, %v708
  %v710 = vpop.f32.mrb[0].mxu0
  %711 = vmatprep.mubr.f32.mxu0 0.0
  %712 = vmatmul.mubr.f32.gmra.mrb[0].mxu0 %v438
  %v713 = vpop.f32.mrb[0].mxu0
  %v714 = vadd.f32 0.0, %v713
  %v715 = vpop.f32.mrb[0].mxu0
  %716 = vmatprep.mubr.f32.mxu0 0.0
  %717 = vmatmul.mubr.f32.gmra.mrb[0].mxu0 %v439
  %v718 = vpop.f32.mrb[0].mxu0
  %v719 = vadd.f32 0.0, %v718
  %v720 = vpop.f32.mrb[0].mxu0
  %721 = vmatprep.mubr.f32.mxu0 0.0
  %722 = vmatmul.mubr.f32.gmra.mrb[0].mxu0 %v440
  %v723 = vpop.f32.mrb[0].mxu0
  %v724 = vadd.f32 0.0, %v723
  %v725 = vpop.f32.mrb[0].mxu0
  %726 = vmatprep.mubr.f32.mxu0 0.0
  %727 = vmatmul.mubr.f32.gmra.mrb[0].mxu0 %v441
  %v728 = vpop.f32.mrb[0].mxu0
  %v729 = vadd.f32 0.0, %v728
  %v730 = vpop.f32.mrb[0].mxu0
  %731 = vmatprep.mubr.f32.mxu0 0.0
  %732 = vmatmul.mubr.f32.gmra.mrb[0].mxu0 %v442
  %v733 = vpop.f32.mrb[0].mxu0
  %v734 = vadd.f32 0.0, %v733
  %v735 = vpop.f32.mrb[0].mxu0
  %736 = vmatprep.mubr.f32.mxu0 0.0
  %737 = vmatmul.mubr.f32.gmra.mrb[0].mxu0 %v443
  %v738 = vpop.f32.mrb[0].mxu0
  %v739 = vadd.f32 0.0, %v738
  %v740 = vpop.f32.mrb[0].mxu0
  %741 = vmatprep.mubr.f32.mxu0 0.0
  %742 = vmatmul.mubr.f32.gmra.mrb[0].mxu0 %v444
  %v743 = vpop.f32.mrb[0].mxu0
  %v744 = vadd.f32 0.0, %v743
  %v745 = vpop.f32.mrb[0].mxu0
  %746 = vmatprep.mubr.f32.mxu0 0.0
  %747 = vmatmul.mubr.f32.gmra.mrb[0].mxu0 %v445
  %v748 = vpop.f32.mrb[0].mxu0
  %v749 = vadd.f32 0.0, %v748
  %v750 = vpop.f32.mrb[0].mxu0
  %751 = vmatprep.mubr.f32.mxu0 0.0
  %752 = vmatmul.mubr.f32.gmra.mrb[0].mxu0 %v446
  %v753 = vpop.f32.mrb[0].mxu0
  %v754 = vadd.f32 0.0, %v753
  %v755 = vpop.f32.mrb[0].mxu0
  %756 = vdwg.mxu0
  %v757 = vld [vmem:[%s2] sm:$0xff]
  %v758 = vld [vmem:[%s2 + $0x8] sm:$0xff]
  %v759 = vld [vmem:[%s2 + $0x10] sm:$0xff]
  %v760 = vld [vmem:[%s2 + $0x18] sm:$0xff]
  %v761 = vld [vmem:[%s2 + $0x20] sm:$0xff]
  %v762 = vld [vmem:[%s2 + $0x28] sm:$0xff]
  %v763 = vld [vmem:[%s2 + $0x30] sm:$0xff]
  %v764 = vld [vmem:[%s2 + $0x38] sm:$0xff]
  %v765 = vld [vmem:[%s2 + $0x40] sm:$0xff]
  %v766 = vld [vmem:[%s2 + $0x48] sm:$0xff]
  %v767 = vld [vmem:[%s2 + $0x50] sm:$0xff]
  %v768 = vld [vmem:[%s2 + $0x58] sm:$0xff]
  %v769 = vld [vmem:[%s2 + $0x60] sm:$0xff]
  %v770 = vld [vmem:[%s2 + $0x68] sm:$0xff]
  %v771 = vld [vmem:[%s2 + $0x70] sm:$0xff]
  %v772 = vld [vmem:[%s2 + $0x78] sm:$0xff]
  %v773 = vld [vmem:[%s2 + $0x80] sm:$0xff]
  %v774 = vld [vmem:[%s2 + $0x88] sm:$0xff]
  %v775 = vld [vmem:[%s2 + $0x90] sm:$0xff]
  %v776 = vld [vmem:[%s2 + $0x98] sm:$0xff]
  %v777 = vld [vmem:[%s2 + $0xa0] sm:$0xff]
  %v778 = vld [vmem:[%s2 + $0xa8] sm:$0xff]
  %v779 = vld [vmem:[%s2 + $0xb0] sm:$0xff]
  %v780 = vld [vmem:[%s2 + $0xb8] sm:$0xff]
  %v781 = vld [vmem:[%s2 + $0xc0] sm:$0xff]
  %v782 = vld [vmem:[%s2 + $0xc8] sm:$0xff]
  %v783 = vld [vmem:[%s2 + $0xd0] sm:$0xff]
  %v784 = vld [vmem:[%s2 + $0xd8] sm:$0xff]
  %v785 = vld [vmem:[%s2 + $0xe0] sm:$0xff]
  %v786 = vld [vmem:[%s2 + $0xe8] sm:$0xff]
  %v787 = vld [vmem:[%s2 + $0xf0] sm:$0xff]
  %v788 = vld [vmem:[%s2 + $0xf8] sm:$0xff]
  %v789 = vld [vmem:[%s2 + $0x100] sm:$0xff]
  %v790 = vld [vmem:[%s2 + $0x108] sm:$0xff]
  %v791 = vld [vmem:[%s2 + $0x110] sm:$0xff]
  %v792 = vld [vmem:[%s2 + $0x118] sm:$0xff]
  %v793 = vld [vmem:[%s2 + $0x120] sm:$0xff]
  %v794 = vld [vmem:[%s2 + $0x128] sm:$0xff]
  %v795 = vld [vmem:[%s2 + $0x130] sm:$0xff]
  %v796 = vld [vmem:[%s2 + $0x138] sm:$0xff]
  %v797 = vld [vmem:[%s2 + $0x140] sm:$0xff]
  %v798 = vld [vmem:[%s2 + $0x148] sm:$0xff]
  %v799 = vld [vmem:[%s2 + $0x150] sm:$0xff]
  %v800 = vld [vmem:[%s2 + $0x158] sm:$0xff]
  %v801 = vld [vmem:[%s2 + $0x160] sm:$0xff]
  %v802 = vld [vmem:[%s2 + $0x168] sm:$0xff]
  %v803 = vld [vmem:[%s2 + $0x170] sm:$0xff]
  %v804 = vld [vmem:[%s2 + $0x178] sm:$0xff]
  %v805 = vld [vmem:[%s2 + $0x180] sm:$0xff]
  %806 = vmatprep.subr.mxu0 0.0
  %807 = vmatpush1.msra.mxu0 %v23
  %808 = vmatprep.subr.mxu0 0.0
  %809 = vmatpush1.msra.mxu0 %v24
  %810 = vmatprep.subr.mxu0 0.0
  %811 = vmatpush1.msra.mxu0 %v25
  %812 = vmatprep.subr.mxu0 0.0
  %813 = vmatpush1.msra.mxu0 %v26
  %814 = vmatprep.subr.mxu0 0.0
  %815 = vmatpush1.msra.mxu0 %v27
  %816 = vmatprep.subr.mxu0 0.0
  %817 = vmatpush1.msra.mxu0 %v28
  %818 = vmatprep.subr.mxu0 0.0
  %819 = vmatpush1.msra.mxu0 %v29
  %820 = vmatprep.subr.mxu0 0.0
  %821 = vmatpush1.msra.mxu0 %v30
  %822 = vmatprep.subr.mxu0 0.0
  %823 = vmatpush1.msra.mxu0 %v31
  %824 = vmatprep.subr.mxu0 0.0
  %825 = vmatpush1.msra.mxu0 %v32
  %826 = vmatprep.subr.mxu0 0.0
  %827 = vmatpush1.msra.mxu0 %v33
  %828 = vmatprep.subr.mxu0 0.0
  %829 = vmatpush1.msra.mxu0 %v34
  %830 = vmatprep.subr.mxu0 0.0
  %831 = vmatpush1.msra.mxu0 %v35
  %832 = vmatprep.subr.mxu0 0.0
  %833 = vmatpush1.msra.mxu0 %v36
  %834 = vmatprep.subr.mxu0 0.0
  %835 = vmatpush1.msra.mxu0 %v37
  %836 = vmatprep.subr.mxu0 0.0
  %837 = vmatpush1.msra.mxu0 %v38
  %838 = vmatprep.subr.mxu0 0.0
  %839 = vmatpush1.msra.mxu0 0.0
  %840 = vmatprep.subr.mxu0 0.0
  %841 = vmatpush1.msra.mxu0 0.0
  %842 = vmatprep.subr.mxu0 0.0
  %843 = vmatpush1.msra.mxu0 0.0
  %844 = vmatprep.subr.mxu0 0.0
  %845 = vmatpush1.msra.mxu0 0.0
  %846 = vmatprep.subr.mxu0 0.0
  %847 = vmatpush1.msra.mxu0 0.0
  %848 = vmatprep.subr.mxu0 0.0
  %849 = vmatpush1.msra.mxu0 0.0
  %850 = vmatprep.subr.mxu0 0.0
  %851 = vmatpush1.msra.mxu0 0.0
  %852 = vmatprep.subr.mxu0 0.0
  %853 = vmatpush1.msra.mxu0 0.0
  %854 = vmatprep.subr.mxu0 0.0
  %855 = vmatpush1.msra.mxu0 0.0
  %856 = vmatprep.subr.mxu0 0.0
  %857 = vmatpush1.msra.mxu0 0.0
  %858 = vmatprep.subr.mxu0 0.0
  %859 = vmatpush1.msra.mxu0 0.0
  %860 = vmatprep.subr.mxu0 0.0
  %861 = vmatpush1.msra.mxu0 0.0
  %862 = vmatprep.subr.mxu0 0.0
  %863 = vmatpush1.msra.mxu0 0.0
  %864 = vmatprep.subr.mxu0 0.0
  %865 = vmatpush1.msra.mxu0 0.0
  %866 = vmatprep.subr.mxu0 0.0
  %867 = vmatpush1.msra.mxu0 0.0
  %868 = vmatprep.subr.mxu0 0.0
  %869 = vmatpush1.msra.mxu0 0.0
  %870 = vmatprep.mubr.f32.mxu0 0.0
  %871 = vmatmul.mubr.f32.gmra.mrb[0].mxu0 %v757
  %v872 = vpop.f32.mrb[0].mxu0
  %v873 = vadd.f32 0.0, %v872
  %v874 = vpop.f32.mrb[0].mxu0
  %875 = vmatprep.mubr.f32.mxu0 0.0
  %876 = vmatmul.mubr.f32.gmra.mrb[0].mxu0 %v758
  %v877 = vpop.f32.mrb[0].mxu0
  %v878 = vadd.f32 0.0, %v877
  %v879 = vpop.f32.mrb[0].mxu0
  %880 = vmatprep.mubr.f32.mxu0 0.0
  %881 = vmatmul.mubr.f32.gmra.mrb[0].mxu0 %v759
  %v882 = vpop.f32.mrb[0].mxu0
  %v883 = vadd.f32 0.0, %v882
  %v884 = vpop.f32.mrb[0].mxu0
  %885 = vmatprep.mubr.f32.mxu0 0.0
  %886 = vmatmul.mubr.f32.gmra.mrb[0].mxu0 %v760
  %v887 = vpop.f32.mrb[0].mxu0
  %v888 = vadd.f32 0.0, %v887
  %v889 = vpop.f32.mrb[0].mxu0
  %890 = vmatprep.mubr.f32.mxu0 0.0
  %891 = vmatmul.mubr.f32.gmra.mrb[0].mxu0 %v761
  %v892 = vpop.f32.mrb[0].mxu0
  %v893 = vadd.f32 0.0, %v892
  %v894 = vpop.f32.mrb[0].mxu0
  %895 = vmatprep.mubr.f32.mxu0 0.0
  %896 = vmatmul.mubr.f32.gmra.mrb[0].mxu0 %v762
  %v897 = vpop.f32.mrb[0].mxu0
  %v898 = vadd.f32 0.0, %v897
  %v899 = vpop.f32.mrb[0].mxu0
  %900 = vmatprep.mubr.f32.mxu0 0.0
  %901 = vmatmul.mubr.f32.gmra.mrb[0].mxu0 %v763
  %v902 = vpop.f32.mrb[0].mxu0
  %v903 = vadd.f32 0.0, %v902
  %v904 = vpop.f32.mrb[0].mxu0
  %905 = vmatprep.mubr.f32.mxu0 0.0
  %906 = vmatmul.mubr.f32.gmra.mrb[0].mxu0 %v764
  %v907 = vpop.f32.mrb[0].mxu0
  %v908 = vadd.f32 0.0, %v907
  %v909 = vpop.f32.mrb[0].mxu0
  %910 = vmatprep.mubr.f32.mxu0 0.0
  %911 = vmatmul.mubr.f32.gmra.mrb[0].mxu0 %v765
  %v912 = vpop.f32.mrb[0].mxu0
  %v913 = vadd.f32 0.0, %v912
  %v914 = vpop.f32.mrb[0].mxu0
  %915 = vmatprep.mubr.f32.mxu0 0.0
  %916 = vmatmul.mubr.f32.gmra.mrb[0].mxu0 %v766
  %v917 = vpop.f32.mrb[0].mxu0
  %v918 = vadd.f32 0.0, %v917
  %v919 = vpop.f32.mrb[0].mxu0
  %920 = vmatprep.mubr.f32.mxu0 0.0
  %921 = vmatmul.mubr.f32.gmra.mrb[0].mxu0 %v767
  %v922 = vpop.f32.mrb[0].mxu0
  %v923 = vadd.f32 0.0, %v922
  %v924 = vpop.f32.mrb[0].mxu0
  %925 = vmatprep.mubr.f32.mxu0 0.0
  %926 = vmatmul.mubr.f32.gmra.mrb[0].mxu0 %v768
  %v927 = vpop.f32.mrb[0].mxu0
  %v928 = vadd.f32 0.0, %v927
  %v929 = vpop.f32.mrb[0].mxu0
  %930 = vmatprep.mubr.f32.mxu0 0.0
  %931 = vmatmul.mubr.f32.gmra.mrb[0].mxu0 %v769
  %v932 = vpop.f32.mrb[0].mxu0
  %v933 = vadd.f32 0.0, %v932
  %v934 = vpop.f32.mrb[0].mxu0
  %935 = vmatprep.mubr.f32.mxu0 0.0
  %936 = vmatmul.mubr.f32.gmra.mrb[0].mxu0 %v770
  %v937 = vpop.f32.mrb[0].mxu0
  %v938 = vadd.f32 0.0, %v937
  %v939 = vpop.f32.mrb[0].mxu0
  %940 = vmatprep.mubr.f32.mxu0 0.0
  %941 = vmatmul.mubr.f32.gmra.mrb[0].mxu0 %v771
  %v942 = vpop.f32.mrb[0].mxu0
  %v943 = vadd.f32 0.0, %v942
  %v944 = vpop.f32.mrb[0].mxu0
  %945 = vmatprep.mubr.f32.mxu0 0.0
  %946 = vmatmul.mubr.f32.gmra.mrb[0].mxu0 %v772
  %v947 = vpop.f32.mrb[0].mxu0
  %v948 = vadd.f32 0.0, %v947
  %v949 = vpop.f32.mrb[0].mxu0
  %950 = vmatprep.mubr.f32.mxu0 0.0
  %951 = vmatmul.mubr.f32.gmra.mrb[0].mxu0 %v773
  %v952 = vpop.f32.mrb[0].mxu0
  %v953 = vadd.f32 0.0, %v952
  %v954 = vpop.f32.mrb[0].mxu0
  %955 = vmatprep.mubr.f32.mxu0 0.0
  %956 = vmatmul.mubr.f32.gmra.mrb[0].mxu0 %v774
  %v957 = vpop.f32.mrb[0].mxu0
  %v958 = vadd.f32 0.0, %v957
  %v959 = vpop.f32.mrb[0].mxu0
  %960 = vmatprep.mubr.f32.mxu0 0.0
  %961 = vmatmul.mubr.f32.gmra.mrb[0].mxu0 %v775
  %v962 = vpop.f32.mrb[0].mxu0
  %v963 = vadd.f32 0.0, %v962
  %v964 = vpop.f32.mrb[0].mxu0
  %965 = vmatprep.mubr.f32.mxu0 0.0
  %966 = vmatmul.mubr.f32.gmra.mrb[0].mxu0 %v776
  %v967 = vpop.f32.mrb[0].mxu0
  %v968 = vadd.f32 0.0, %v967
  %v969 = vpop.f32.mrb[0].mxu0
  %970 = vmatprep.mubr.f32.mxu0 0.0
  %971 = vmatmul.mubr.f32.gmra.mrb[0].mxu0 %v777
  %v972 = vpop.f32.mrb[0].mxu0
  %v973 = vadd.f32 0.0, %v972
  %v974 = vpop.f32.mrb[0].mxu0
  %975 = vmatprep.mubr.f32.mxu0 0.0
  %976 = vmatmul.mubr.f32.gmra.mrb[0].mxu0 %v778
  %v977 = vpop.f32.mrb[0].mxu0
  %v978 = vadd.f32 0.0, %v977
  %v979 = vpop.f32.mrb[0].mxu0
  %980 = vmatprep.mubr.f32.mxu0 0.0
  %981 = vmatmul.mubr.f32.gmra.mrb[0].mxu0 %v779
  %v982 = vpop.f32.mrb[0].mxu0
  %v983 = vadd.f32 0.0, %v982
  %v984 = vpop.f32.mrb[0].mxu0
  %985 = vmatprep.mubr.f32.mxu0 0.0
  %986 = vmatmul.mubr.f32.gmra.mrb[0].mxu0 %v780
  %v987 = vpop.f32.mrb[0].mxu0
  %v988 = vadd.f32 0.0, %v987
  %v989 = vpop.f32.mrb[0].mxu0
  %990 = vmatprep.mubr.f32.mxu0 0.0
  %991 = vmatmul.mubr.f32.gmra.mrb[0].mxu0 %v781
  %v992 = vpop.f32.mrb[0].mxu0
  %v993 = vadd.f32 0.0, %v992
  %v994 = vpop.f32.mrb[0].mxu0
  %995 = vmatprep.mubr.f32.mxu0 0.0
  %996 = vmatmul.mubr.f32.gmra.mrb[0].mxu0 %v782
  %v997 = vpop.f32.mrb[0].mxu0
  %v998 = vadd.f32 0.0, %v997
  %v999 = vpop.f32.mrb[0].mxu0
  %1000 = vmatprep.mubr.f32.mxu0 0.0
  %1001 = vmatmul.mubr.f32.gmra.mrb[0].mxu0 %v783
  %v1002 = vpop.f32.mrb[0].mxu0
  %v1003 = vadd.f32 0.0, %v1002
  %v1004 = vpop.f32.mrb[0].mxu0
  %1005 = vmatprep.mubr.f32.mxu0 0.0
  %1006 = vmatmul.mubr.f32.gmra.mrb[0].mxu0 %v784
  %v1007 = vpop.f32.mrb[0].mxu0
  %v1008 = vadd.f32 0.0, %v1007
  %v1009 = vpop.f32.mrb[0].mxu0
  %1010 = vmatprep.mubr.f32.mxu0 0.0
  %1011 = vmatmul.mubr.f32.gmra.mrb[0].mxu0 %v785
  %v1012 = vpop.f32.mrb[0].mxu0
  %v1013 = vadd.f32 0.0, %v1012
  %v1014 = vpop.f32.mrb[0].mxu0
  %1015 = vmatprep.mubr.f32.mxu0 0.0
  %1016 = vmatmul.mubr.f32.gmra.mrb[0].mxu0 %v786
  %v1017 = vpop.f32.mrb[0].mxu0
  %v1018 = vadd.f32 0.0, %v1017
  %v1019 = vpop.f32.mrb[0].mxu0
  %1020 = vmatprep.mubr.f32.mxu0 0.0
  %1021 = vmatmul.mubr.f32.gmra.mrb[0].mxu0 %v787
  %v1022 = vpop.f32.mrb[0].mxu0
  %v1023 = vadd.f32 0.0, %v1022
  %v1024 = vpop.f32.mrb[0].mxu0
  %1025 = vmatprep.mubr.f32.mxu0 0.0
  %1026 = vmatmul.mubr.f32.gmra.mrb[0].mxu0 %v788
  %v1027 = vpop.f32.mrb[0].mxu0
  %v1028 = vadd.f32 0.0, %v1027
  %v1029 = vpop.f32.mrb[0].mxu0
  %1030 = vmatprep.mubr.f32.mxu0 0.0
  %1031 = vmatmul.mubr.f32.gmra.mrb[0].mxu0 %v789
  %v1032 = vpop.f32.mrb[0].mxu0
  %v1033 = vadd.f32 0.0, %v1032
  %v1034 = vpop.f32.mrb[0].mxu0
  %1035 = vmatprep.mubr.f32.mxu0 0.0
  %1036 = vmatmul.mubr.f32.gmra.mrb[0].mxu0 %v790
  %v1037 = vpop.f32.mrb[0].mxu0
  %v1038 = vadd.f32 0.0, %v1037
  %v1039 = vpop.f32.mrb[0].mxu0
  %1040 = vmatprep.mubr.f32.mxu0 0.0
  %1041 = vmatmul.mubr.f32.gmra.mrb[0].mxu0 %v791
  %v1042 = vpop.f32.mrb[0].mxu0
  %v1043 = vadd.f32 0.0, %v1042
  %v1044 = vpop.f32.mrb[0].mxu0
  %1045 = vmatprep.mubr.f32.mxu0 0.0
  %1046 = vmatmul.mubr.f32.gmra.mrb[0].mxu0 %v792
  %v1047 = vpop.f32.mrb[0].mxu0
  %v1048 = vadd.f32 0.0, %v1047
  %v1049 = vpop.f32.mrb[0].mxu0
  %1050 = vmatprep.mubr.f32.mxu0 0.0
  %1051 = vmatmul.mubr.f32.gmra.mrb[0].mxu0 %v793
  %v1052 = vpop.f32.mrb[0].mxu0
  %v1053 = vadd.f32 0.0, %v1052
  %v1054 = vpop.f32.mrb[0].mxu0
  %1055 = vmatprep.mubr.f32.mxu0 0.0
  %1056 = vmatmul.mubr.f32.gmra.mrb[0].mxu0 %v794
  %v1057 = vpop.f32.mrb[0].mxu0
  %v1058 = vadd.f32 0.0, %v1057
  %v1059 = vpop.f32.mrb[0].mxu0
  %1060 = vmatprep.mubr.f32.mxu0 0.0
  %1061 = vmatmul.mubr.f32.gmra.mrb[0].mxu0 %v795
  %v1062 = vpop.f32.mrb[0].mxu0
  %v1063 = vadd.f32 0.0, %v1062
  %v1064 = vpop.f32.mrb[0].mxu0
  %1065 = vmatprep.mubr.f32.mxu0 0.0
  %1066 = vmatmul.mubr.f32.gmra.mrb[0].mxu0 %v796
  %v1067 = vpop.f32.mrb[0].mxu0
  %v1068 = vadd.f32 0.0, %v1067
  %v1069 = vpop.f32.mrb[0].mxu0
  %1070 = vmatprep.mubr.f32.mxu0 0.0
  %1071 = vmatmul.mubr.f32.gmra.mrb[0].mxu0 %v797
  %v1072 = vpop.f32.mrb[0].mxu0
  %v1073 = vadd.f32 0.0, %v1072
  %v1074 = vpop.f32.mrb[0].mxu0
  %1075 = vmatprep.mubr.f32.mxu0 0.0
  %1076 = vmatmul.mubr.f32.gmra.mrb[0].mxu0 %v798
  %v1077 = vpop.f32.mrb[0].mxu0
  %v1078 = vadd.f32 0.0, %v1077
  %v1079 = vpop.f32.mrb[0].mxu0
  %1080 = vmatprep.mubr.f32.mxu0 0.0
  %1081 = vmatmul.mubr.f32.gmra.mrb[0].mxu0 %v799
  %v1082 = vpop.f32.mrb[0].mxu0
  %v1083 = vadd.f32 0.0, %v1082
  %v1084 = vpop.f32.mrb[0].mxu0
  %1085 = vmatprep.mubr.f32.mxu0 0.0
  %1086 = vmatmul.mubr.f32.gmra.mrb[0].mxu0 %v800
  %v1087 = vpop.f32.mrb[0].mxu0
  %v1088 = vadd.f32 0.0, %v1087
  %v1089 = vpop.f32.mrb[0].mxu0
  %1090 = vmatprep.mubr.f32.mxu0 0.0
  %1091 = vmatmul.mubr.f32.gmra.mrb[0].mxu0 %v801
  %v1092 = vpop.f32.mrb[0].mxu0
  %v1093 = vadd.f32 0.0, %v1092
  %v1094 = vpop.f32.mrb[0].mxu0
  %1095 = vmatprep.mubr.f32.mxu0 0.0
  %1096 = vmatmul.mubr.f32.gmra.mrb[0].mxu0 %v802
  %v1097 = vpop.f32.mrb[0].mxu0
  %v1098 = vadd.f32 0.0, %v1097
  %v1099 = vpop.f32.mrb[0].mxu0
  %1100 = vmatprep.mubr.f32.mxu0 0.0
  %1101 = vmatmul.mubr.f32.gmra.mrb[0].mxu0 %v803
  %v1102 = vpop.f32.mrb[0].mxu0
  %v1103 = vadd.f32 0.0, %v1102
  %v1104 = vpop.f32.mrb[0].mxu0
  %1105 = vmatprep.mubr.f32.mxu0 0.0
  %1106 = vmatmul.mubr.f32.gmra.mrb[0].mxu0 %v804
  %v1107 = vpop.f32.mrb[0].mxu0
  %v1108 = vadd.f32 0.0, %v1107
  %v1109 = vpop.f32.mrb[0].mxu0
  %1110 = vmatprep.mubr.f32.mxu0 0.0
  %1111 = vmatmul.mubr.f32.gmra.mrb[0].mxu0 %v805
  %v1112 = vpop.f32.mrb[0].mxu0
  %v1113 = vadd.f32 0.0, %v1112
  %v1114 = vpop.f32.mrb[0].mxu0
  %1115 = vdwg.mxu0
  %v1116 = vld [vmem:[%s3] sm:$0xff]
  %v1117 = vld [vmem:[%s3 + $0x8] sm:$0xff]
  %v1118 = vld [vmem:[%s3 + $0x10] sm:$0xff]
  %v1119 = vld [vmem:[%s3 + $0x18] sm:$0xff]
  %v1120 = vld [vmem:[%s3 + $0x20] sm:$0xff]
  %v1121 = vld [vmem:[%s3 + $0x28] sm:$0xff]
  %v1122 = vld [vmem:[%s3 + $0x30] sm:$0xff]
  %v1123 = vld [vmem:[%s3 + $0x38] sm:$0xff]
  %v1124 = vld [vmem:[%s3 + $0x40] sm:$0xff]
  %v1125 = vld [vmem:[%s3 + $0x48] sm:$0xff]
  %v1126 = vld [vmem:[%s3 + $0x50] sm:$0xff]
  %v1127 = vld [vmem:[%s3 + $0x58] sm:$0xff]
  %v1128 = vld [vmem:[%s3 + $0x60] sm:$0xff]
  %v1129 = vld [vmem:[%s3 + $0x68] sm:$0xff]
  %v1130 = vld [vmem:[%s3 + $0x70] sm:$0xff]
  %v1131 = vld [vmem:[%s3 + $0x78] sm:$0xff]
  %v1132 = vld [vmem:[%s3 + $0x80] sm:$0xff]
  %v1133 = vld [vmem:[%s3 + $0x88] sm:$0xff]
  %v1134 = vld [vmem:[%s3 + $0x90] sm:$0xff]
  %v1135 = vld [vmem:[%s3 + $0x98] sm:$0xff]
  %v1136 = vld [vmem:[%s3 + $0xa0] sm:$0xff]
  %v1137 = vld [vmem:[%s3 + $0xa8] sm:$0xff]
  %v1138 = vld [vmem:[%s3 + $0xb0] sm:$0xff]
  %v1139 = vld [vmem:[%s3 + $0xb8] sm:$0xff]
  %v1140 = vld [vmem:[%s3 + $0xc0] sm:$0xff]
  %v1141 = vld [vmem:[%s3 + $0xc8] sm:$0xff]
  %v1142 = vld [vmem:[%s3 + $0xd0] sm:$0xff]
  %v1143 = vld [vmem:[%s3 + $0xd8] sm:$0xff]
  %v1144 = vld [vmem:[%s3 + $0xe0] sm:$0xff]
  %v1145 = vld [vmem:[%s3 + $0xe8] sm:$0xff]
  %v1146 = vld [vmem:[%s3 + $0xf0] sm:$0xff]
  %v1147 = vld [vmem:[%s3 + $0xf8] sm:$0xff]
  %v1148 = vld [vmem:[%s3 + $0x100] sm:$0xff]
  %v1149 = vld [vmem:[%s3 + $0x108] sm:$0xff]
  %v1150 = vld [vmem:[%s3 + $0x110] sm:$0xff]
  %v1151 = vld [vmem:[%s3 + $0x118] sm:$0xff]
  %v1152 = vld [vmem:[%s3 + $0x120] sm:$0xff]
  %v1153 = vld [vmem:[%s3 + $0x128] sm:$0xff]
  %v1154 = vld [vmem:[%s3 + $0x130] sm:$0xff]
  %v1155 = vld [vmem:[%s3 + $0x138] sm:$0xff]
  %v1156 = vld [vmem:[%s3 + $0x140] sm:$0xff]
  %v1157 = vld [vmem:[%s3 + $0x148] sm:$0xff]
  %v1158 = vld [vmem:[%s3 + $0x150] sm:$0xff]
  %v1159 = vld [vmem:[%s3 + $0x158] sm:$0xff]
  %v1160 = vld [vmem:[%s3 + $0x160] sm:$0xff]
  %v1161 = vld [vmem:[%s3 + $0x168] sm:$0xff]
  %v1162 = vld [vmem:[%s3 + $0x170] sm:$0xff]
  %v1163 = vld [vmem:[%s3 + $0x178] sm:$0xff]
  %v1164 = vld [vmem:[%s3 + $0x180] sm:$0xff]
  %1165 = vmatprep.subr.mxu0 0.0
  %1166 = vmatpush1.msra.mxu0 %v23
  %1167 = vmatprep.subr.mxu0 0.0
  %1168 = vmatpush1.msra.mxu0 %v24
  %1169 = vmatprep.subr.mxu0 0.0
  %1170 = vmatpush1.msra.mxu0 %v25
  %1171 = vmatprep.subr.mxu0 0.0
  %1172 = vmatpush1.msra.mxu0 %v26
  %1173 = vmatprep.subr.mxu0 0.0
  %1174 = vmatpush1.msra.mxu0 %v27
  %1175 = vmatprep.subr.mxu0 0.0
  %1176 = vmatpush1.msra.mxu0 %v28
  %1177 = vmatprep.subr.mxu0 0.0
  %1178 = vmatpush1.msra.mxu0 %v29
  %1179 = vmatprep.subr.mxu0 0.0
  %1180 = vmatpush1.msra.mxu0 %v30
  %1181 = vmatprep.subr.mxu0 0.0
  %1182 = vmatpush1.msra.mxu0 %v31
  %1183 = vmatprep.subr.mxu0 0.0
  %1184 = vmatpush1.msra.mxu0 %v32
  %1185 = vmatprep.subr.mxu0 0.0
  %1186 = vmatpush1.msra.mxu0 %v33
  %1187 = vmatprep.subr.mxu0 0.0
  %1188 = vmatpush1.msra.mxu0 %v34
  %1189 = vmatprep.subr.mxu0 0.0
  %1190 = vmatpush1.msra.mxu0 %v35
  %1191 = vmatprep.subr.mxu0 0.0
  %1192 = vmatpush1.msra.mxu0 %v36
  %1193 = vmatprep.subr.mxu0 0.0
  %1194 = vmatpush1.msra.mxu0 %v37
  %1195 = vmatprep.subr.mxu0 0.0
  %1196 = vmatpush1.msra.mxu0 %v38
  %1197 = vmatprep.subr.mxu0 0.0
  %1198 = vmatpush1.msra.mxu0 0.0
  %1199 = vmatprep.subr.mxu0 0.0
  %1200 = vmatpush1.msra.mxu0 0.0
  %1201 = vmatprep.subr.mxu0 0.0
  %1202 = vmatpush1.msra.mxu0 0.0
  %1203 = vmatprep.subr.mxu0 0.0
  %1204 = vmatpush1.msra.mxu0 0.0
  %1205 = vmatprep.subr.mxu0 0.0
  %1206 = vmatpush1.msra.mxu0 0.0
  %1207 = vmatprep.subr.mxu0 0.0
  %1208 = vmatpush1.msra.mxu0 0.0
  %1209 = vmatprep.subr.mxu0 0.0
  %1210 = vmatpush1.msra.mxu0 0.0
  %1211 = vmatprep.subr.mxu0 0.0
  %1212 = vmatpush1.msra.mxu0 0.0
  %1213 = vmatprep.subr.mxu0 0.0
  %1214 = vmatpush1.msra.mxu0 0.0
  %1215 = vmatprep.subr.mxu0 0.0
  %1216 = vmatpush1.msra.mxu0 0.0
  %1217 = vmatprep.subr.mxu0 0.0
  %1218 = vmatpush1.msra.mxu0 0.0
  %1219 = vmatprep.subr.mxu0 0.0
  %1220 = vmatpush1.msra.mxu0 0.0
  %1221 = vmatprep.subr.mxu0 0.0
  %1222 = vmatpush1.msra.mxu0 0.0
  %1223 = vmatprep.subr.mxu0 0.0
  %1224 = vmatpush1.msra.mxu0 0.0
  %1225 = vmatprep.subr.mxu0 0.0
  %1226 = vmatpush1.msra.mxu0 0.0
  %1227 = vmatprep.subr.mxu0 0.0
  %1228 = vmatpush1.msra.mxu0 0.0
  %1229 = vmatprep.mubr.f32.mxu0 0.0
  %1230 = vmatmul.mubr.f32.gmra.mrb[0].mxu0 %v1116
  %v1231 = vpop.f32.mrb[0].mxu0
  %v1232 = vadd.f32 0.0, %v1231
  %v1233 = vpop.f32.mrb[0].mxu0
  %1234 = vmatprep.mubr.f32.mxu0 0.0
  %1235 = vmatmul.mubr.f32.gmra.mrb[0].mxu0 %v1117
  %v1236 = vpop.f32.mrb[0].mxu0
  %v1237 = vadd.f32 0.0, %v1236
  %v1238 = vpop.f32.mrb[0].mxu0
  %1239 = vmatprep.mubr.f32.mxu0 0.0
  %1240 = vmatmul.mubr.f32.gmra.mrb[0].mxu0 %v1118
  %v1241 = vpop.f32.mrb[0].mxu0
  %v1242 = vadd.f32 0.0, %v1241
  %v1243 = vpop.f32.mrb[0].mxu0
  %1244 = vmatprep.mubr.f32.mxu0 0.0
  %1245 = vmatmul.mubr.f32.gmra.mrb[0].mxu0 %v1119
  %v1246 = vpop.f32.mrb[0].mxu0
  %v1247 = vadd.f32 0.0, %v1246
  %v1248 = vpop.f32.mrb[0].mxu0
  %1249 = vmatprep.mubr.f32.mxu0 0.0
  %1250 = vmatmul.mubr.f32.gmra.mrb[0].mxu0 %v1120
  %v1251 = vpop.f32.mrb[0].mxu0
  %v1252 = vadd.f32 0.0, %v1251
  %v1253 = vpop.f32.mrb[0].mxu0
  %1254 = vmatprep.mubr.f32.mxu0 0.0
  %1255 = vmatmul.mubr.f32.gmra.mrb[0].mxu0 %v1121
  %v1256 = vpop.f32.mrb[0].mxu0
  %v1257 = vadd.f32 0.0, %v1256
  %v1258 = vpop.f32.mrb[0].mxu0
  %1259 = vmatprep.mubr.f32.mxu0 0.0
  %1260 = vmatmul.mubr.f32.gmra.mrb[0].mxu0 %v1122
  %v1261 = vpop.f32.mrb[0].mxu0
  %v1262 = vadd.f32 0.0, %v1261
  %v1263 = vpop.f32.mrb[0].mxu0
  %1264 = vmatprep.mubr.f32.mxu0 0.0
  %1265 = vmatmul.mubr.f32.gmra.mrb[0].mxu0 %v1123
  %v1266 = vpop.f32.mrb[0].mxu0
  %v1267 = vadd.f32 0.0, %v1266
  %v1268 = vpop.f32.mrb[0].mxu0
  %1269 = vmatprep.mubr.f32.mxu0 0.0
  %1270 = vmatmul.mubr.f32.gmra.mrb[0].mxu0 %v1124
  %v1271 = vpop.f32.mrb[0].mxu0
  %v1272 = vadd.f32 0.0, %v1271
  %v1273 = vpop.f32.mrb[0].mxu0
  %1274 = vmatprep.mubr.f32.mxu0 0.0
  %1275 = vmatmul.mubr.f32.gmra.mrb[0].mxu0 %v1125
  %v1276 = vpop.f32.mrb[0].mxu0
  %v1277 = vadd.f32 0.0, %v1276
  %v1278 = vpop.f32.mrb[0].mxu0
  %1279 = vmatprep.mubr.f32.mxu0 0.0
  %1280 = vmatmul.mubr.f32.gmra.mrb[0].mxu0 %v1126
  %v1281 = vpop.f32.mrb[0].mxu0
  %v1282 = vadd.f32 0.0, %v1281
  %v1283 = vpop.f32.mrb[0].mxu0
  %1284 = vmatprep.mubr.f32.mxu0 0.0
  %1285 = vmatmul.mubr.f32.gmra.mrb[0].mxu0 %v1127
  %v1286 = vpop.f32.mrb[0].mxu0
  %v1287 = vadd.f32 0.0, %v1286
  %v1288 = vpop.f32.mrb[0].mxu0
  %1289 = vmatprep.mubr.f32.mxu0 0.0
  %1290 = vmatmul.mubr.f32.gmra.mrb[0].mxu0 %v1128
  %v1291 = vpop.f32.mrb[0].mxu0
  %v1292 = vadd.f32 0.0, %v1291
  %v1293 = vpop.f32.mrb[0].mxu0
  %1294 = vmatprep.mubr.f32.mxu0 0.0
  %1295 = vmatmul.mubr.f32.gmra.mrb[0].mxu0 %v1129
  %v1296 = vpop.f32.mrb[0].mxu0
  %v1297 = vadd.f32 0.0, %v1296
  %v1298 = vpop.f32.mrb[0].mxu0
  %1299 = vmatprep.mubr.f32.mxu0 0.0
  %1300 = vmatmul.mubr.f32.gmra.mrb[0].mxu0 %v1130
  %v1301 = vpop.f32.mrb[0].mxu0
  %v1302 = vadd.f32 0.0, %v1301
  %v1303 = vpop.f32.mrb[0].mxu0
  %1304 = vmatprep.mubr.f32.mxu0 0.0
  %1305 = vmatmul.mubr.f32.gmra.mrb[0].mxu0 %v1131
  %v1306 = vpop.f32.mrb[0].mxu0
  %v1307 = vadd.f32 0.0, %v1306
  %v1308 = vpop.f32.mrb[0].mxu0
  %1309 = vmatprep.mubr.f32.mxu0 0.0
  %1310 = vmatmul.mubr.f32.gmra.mrb[0].mxu0 %v1132
  %v1311 = vpop.f32.mrb[0].mxu0
  %v1312 = vadd.f32 0.0, %v1311
  %v1313 = vpop.f32.mrb[0].mxu0
  %1314 = vmatprep.mubr.f32.mxu0 0.0
  %1315 = vmatmul.mubr.f32.gmra.mrb[0].mxu0 %v1133
  %v1316 = vpop.f32.mrb[0].mxu0
  %v1317 = vadd.f32 0.0, %v1316
  %v1318 = vpop.f32.mrb[0].mxu0
  %1319 = vmatprep.mubr.f32.mxu0 0.0
  %1320 = vmatmul.mubr.f32.gmra.mrb[0].mxu0 %v1134
  %v1321 = vpop.f32.mrb[0].mxu0
  %v1322 = vadd.f32 0.0, %v1321
  %v1323 = vpop.f32.mrb[0].mxu0
  %1324 = vmatprep.mubr.f32.mxu0 0.0
  %1325 = vmatmul.mubr.f32.gmra.mrb[0].mxu0 %v1135
  %v1326 = vpop.f32.mrb[0].mxu0
  %v1327 = vadd.f32 0.0, %v1326
  %v1328 = vpop.f32.mrb[0].mxu0
  %1329 = vmatprep.mubr.f32.mxu0 0.0
  %1330 = vmatmul.mubr.f32.gmra.mrb[0].mxu0 %v1136
  %v1331 = vpop.f32.mrb[0].mxu0
  %v1332 = vadd.f32 0.0, %v1331
  %v1333 = vpop.f32.mrb[0].mxu0
  %1334 = vmatprep.mubr.f32.mxu0 0.0
  %1335 = vmatmul.mubr.f32.gmra.mrb[0].mxu0 %v1137
  %v1336 = vpop.f32.mrb[0].mxu0
  %v1337 = vadd.f32 0.0, %v1336
  %v1338 = vpop.f32.mrb[0].mxu0
  %1339 = vmatprep.mubr.f32.mxu0 0.0
  %1340 = vmatmul.mubr.f32.gmra.mrb[0].mxu0 %v1138
  %v1341 = vpop.f32.mrb[0].mxu0
  %v1342 = vadd.f32 0.0, %v1341
  %v1343 = vpop.f32.mrb[0].mxu0
  %1344 = vmatprep.mubr.f32.mxu0 0.0
  %1345 = vmatmul.mubr.f32.gmra.mrb[0].mxu0 %v1139
  %v1346 = vpop.f32.mrb[0].mxu0
  %v1347 = vadd.f32 0.0, %v1346
  %v1348 = vpop.f32.mrb[0].mxu0
  %1349 = vmatprep.mubr.f32.mxu0 0.0
  %1350 = vmatmul.mubr.f32.gmra.mrb[0].mxu0 %v1140
  %v1351 = vpop.f32.mrb[0].mxu0
  %v1352 = vadd.f32 0.0, %v1351
  %v1353 = vpop.f32.mrb[0].mxu0
  %1354 = vmatprep.mubr.f32.mxu0 0.0
  %1355 = vmatmul.mubr.f32.gmra.mrb[0].mxu0 %v1141
  %v1356 = vpop.f32.mrb[0].mxu0
  %v1357 = vadd.f32 0.0, %v1356
  %v1358 = vpop.f32.mrb[0].mxu0
  %1359 = vmatprep.mubr.f32.mxu0 0.0
  %1360 = vmatmul.mubr.f32.gmra.mrb[0].mxu0 %v1142
  %v1361 = vpop.f32.mrb[0].mxu0
  %v1362 = vadd.f32 0.0, %v1361
  %v1363 = vpop.f32.mrb[0].mxu0
  %1364 = vmatprep.mubr.f32.mxu0 0.0
  %1365 = vmatmul.mubr.f32.gmra.mrb[0].mxu0 %v1143
  %v1366 = vpop.f32.mrb[0].mxu0
  %v1367 = vadd.f32 0.0, %v1366
  %v1368 = vpop.f32.mrb[0].mxu0
  %1369 = vmatprep.mubr.f32.mxu0 0.0
  %1370 = vmatmul.mubr.f32.gmra.mrb[0].mxu0 %v1144
  %v1371 = vpop.f32.mrb[0].mxu0
  %v1372 = vadd.f32 0.0, %v1371
  %v1373 = vpop.f32.mrb[0].mxu0
  %1374 = vmatprep.mubr.f32.mxu0 0.0
  %1375 = vmatmul.mubr.f32.gmra.mrb[0].mxu0 %v1145
  %v1376 = vpop.f32.mrb[0].mxu0
  %v1377 = vadd.f32 0.0, %v1376
  %v1378 = vpop.f32.mrb[0].mxu0
  %1379 = vmatprep.mubr.f32.mxu0 0.0
  %1380 = vmatmul.mubr.f32.gmra.mrb[0].mxu0 %v1146
  %v1381 = vpop.f32.mrb[0].mxu0
  %v1382 = vadd.f32 0.0, %v1381
  %v1383 = vpop.f32.mrb[0].mxu0
  %1384 = vmatprep.mubr.f32.mxu0 0.0
  %1385 = vmatmul.mubr.f32.gmra.mrb[0].mxu0 %v1147
  %v1386 = vpop.f32.mrb[0].mxu0
  %v1387 = vadd.f32 0.0, %v1386
  %v1388 = vpop.f32.mrb[0].mxu0
  %1389 = vmatprep.mubr.f32.mxu0 0.0
  %1390 = vmatmul.mubr.f32.gmra.mrb[0].mxu0 %v1148
  %v1391 = vpop.f32.mrb[0].mxu0
  %v1392 = vadd.f32 0.0, %v1391
  %v1393 = vpop.f32.mrb[0].mxu0
  %1394 = vmatprep.mubr.f32.mxu0 0.0
  %1395 = vmatmul.mubr.f32.gmra.mrb[0].mxu0 %v1149
  %v1396 = vpop.f32.mrb[0].mxu0
  %v1397 = vadd.f32 0.0, %v1396
  %v1398 = vpop.f32.mrb[0].mxu0
  %1399 = vmatprep.mubr.f32.mxu0 0.0
  %1400 = vmatmul.mubr.f32.gmra.mrb[0].mxu0 %v1150
  %v1401 = vpop.f32.mrb[0].mxu0
  %v1402 = vadd.f32 0.0, %v1401
  %v1403 = vpop.f32.mrb[0].mxu0
  %1404 = vmatprep.mubr.f32.mxu0 0.0
  %1405 = vmatmul.mubr.f32.gmra.mrb[0].mxu0 %v1151
  %v1406 = vpop.f32.mrb[0].mxu0
  %v1407 = vadd.f32 0.0, %v1406
  %v1408 = vpop.f32.mrb[0].mxu0
  %1409 = vmatprep.mubr.f32.mxu0 0.0
  %1410 = vmatmul.mubr.f32.gmra.mrb[0].mxu0 %v1152
  %v1411 = vpop.f32.mrb[0].mxu0
  %v1412 = vadd.f32 0.0, %v1411
  %v1413 = vpop.f32.mrb[0].mxu0
  %1414 = vmatprep.mubr.f32.mxu0 0.0
  %1415 = vmatmul.mubr.f32.gmra.mrb[0].mxu0 %v1153
  %v1416 = vpop.f32.mrb[0].mxu0
  %v1417 = vadd.f32 0.0, %v1416
  %v1418 = vpop.f32.mrb[0].mxu0
  %1419 = vmatprep.mubr.f32.mxu0 0.0
  %1420 = vmatmul.mubr.f32.gmra.mrb[0].mxu0 %v1154
  %v1421 = vpop.f32.mrb[0].mxu0
  %v1422 = vadd.f32 0.0, %v1421
  %v1423 = vpop.f32.mrb[0].mxu0
  %1424 = vmatprep.mubr.f32.mxu0 0.0
  %1425 = vmatmul.mubr.f32.gmra.mrb[0].mxu0 %v1155
  %v1426 = vpop.f32.mrb[0].mxu0
  %v1427 = vadd.f32 0.0, %v1426
  %v1428 = vpop.f32.mrb[0].mxu0
  %1429 = vmatprep.mubr.f32.mxu0 0.0
  %1430 = vmatmul.mubr.f32.gmra.mrb[0].mxu0 %v1156
  %v1431 = vpop.f32.mrb[0].mxu0
  %v1432 = vadd.f32 0.0, %v1431
  %v1433 = vpop.f32.mrb[0].mxu0
  %1434 = vmatprep.mubr.f32.mxu0 0.0
  %1435 = vmatmul.mubr.f32.gmra.mrb[0].mxu0 %v1157
  %v1436 = vpop.f32.mrb[0].mxu0
  %v1437 = vadd.f32 0.0, %v1436
  %v1438 = vpop.f32.mrb[0].mxu0
  %1439 = vmatprep.mubr.f32.mxu0 0.0
  %1440 = vmatmul.mubr.f32.gmra.mrb[0].mxu0 %v1158
  %v1441 = vpop.f32.mrb[0].mxu0
  %v1442 = vadd.f32 0.0, %v1441
  %v1443 = vpop.f32.mrb[0].mxu0
  %1444 = vmatprep.mubr.f32.mxu0 0.0
  %1445 = vmatmul.mubr.f32.gmra.mrb[0].mxu0 %v1159
  %v1446 = vpop.f32.mrb[0].mxu0
  %v1447 = vadd.f32 0.0, %v1446
  %v1448 = vpop.f32.mrb[0].mxu0
  %1449 = vmatprep.mubr.f32.mxu0 0.0
  %1450 = vmatmul.mubr.f32.gmra.mrb[0].mxu0 %v1160
  %v1451 = vpop.f32.mrb[0].mxu0
  %v1452 = vadd.f32 0.0, %v1451
  %v1453 = vpop.f32.mrb[0].mxu0
  %1454 = vmatprep.mubr.f32.mxu0 0.0
  %1455 = vmatmul.mubr.f32.gmra.mrb[0].mxu0 %v1161
  %v1456 = vpop.f32.mrb[0].mxu0
  %v1457 = vadd.f32 0.0, %v1456
  %v1458 = vpop.f32.mrb[0].mxu0
  %1459 = vmatprep.mubr.f32.mxu0 0.0
  %1460 = vmatmul.mubr.f32.gmra.mrb[0].mxu0 %v1162
  %v1461 = vpop.f32.mrb[0].mxu0
  %v1462 = vadd.f32 0.0, %v1461
  %v1463 = vpop.f32.mrb[0].mxu0
  %1464 = vmatprep.mubr.f32.mxu0 0.0
  %1465 = vmatmul.mubr.f32.gmra.mrb[0].mxu0 %v1163
  %v1466 = vpop.f32.mrb[0].mxu0
  %v1467 = vadd.f32 0.0, %v1466
  %v1468 = vpop.f32.mrb[0].mxu0
  %1469 = vmatprep.mubr.f32.mxu0 0.0
  %1470 = vmatmul.mubr.f32.gmra.mrb[0].mxu0 %v1164
  %v1471 = vpop.f32.mrb[0].mxu0
  %v1472 = vadd.f32 0.0, %v1471
  %v1473 = vpop.f32.mrb[0].mxu0
  %1474 = vdwg.mxu0
  %v1475 = vmax.f32 %v155, %v514
  %v1476 = vmax.f32 %v160, %v519
  %v1477 = vmax.f32 %v165, %v524
  %v1478 = vmax.f32 %v170, %v529
  %v1479 = vmax.f32 %v175, %v534
  %v1480 = vmax.f32 %v180, %v539
  %v1481 = vmax.f32 %v185, %v544
  %v1482 = vmax.f32 %v190, %v549
  %v1483 = vmax.f32 %v195, %v554
  %v1484 = vmax.f32 %v200, %v559
  %v1485 = vmax.f32 %v205, %v564
  %v1486 = vmax.f32 %v210, %v569
  %v1487 = vmax.f32 %v215, %v574
  %v1488 = vmax.f32 %v220, %v579
  %v1489 = vmax.f32 %v225, %v584
  %v1490 = vmax.f32 %v230, %v589
  %v1491 = vmax.f32 %v235, %v594
  %v1492 = vmax.f32 %v240, %v599
  %v1493 = vmax.f32 %v245, %v604
  %v1494 = vmax.f32 %v250, %v609
  %v1495 = vmax.f32 %v255, %v614
  %v1496 = vmax.f32 %v260, %v619
  %v1497 = vmax.f32 %v265, %v624
  %v1498 = vmax.f32 %v270, %v629
  %v1499 = vmax.f32 %v275, %v634
  %v1500 = vmax.f32 %v280, %v639
  %v1501 = vmax.f32 %v285, %v644
  %v1502 = vmax.f32 %v290, %v649
  %v1503 = vmax.f32 %v295, %v654
  %v1504 = vmax.f32 %v300, %v659
  %v1505 = vmax.f32 %v305, %v664
  %v1506 = vmax.f32 %v310, %v669
  %v1507 = vmax.f32 %v315, %v674
  %v1508 = vmax.f32 %v320, %v679
  %v1509 = vmax.f32 %v325, %v684
  %v1510 = vmax.f32 %v330, %v689
  %v1511 = vmax.f32 %v335, %v694
  %v1512 = vmax.f32 %v340, %v699
  %v1513 = vmax.f32 %v345, %v704
  %v1514 = vmax.f32 %v350, %v709
  %v1515 = vmax.f32 %v355, %v714
  %v1516 = vmax.f32 %v360, %v719
  %v1517 = vmax.f32 %v365, %v724
  %v1518 = vmax.f32 %v370, %v729
  %v1519 = vmax.f32 %v375, %v734
  %v1520 = vmax.f32 %v380, %v739
  %v1521 = vmax.f32 %v385, %v744
  %v1522 = vmax.f32 %v390, %v749
  %v1523 = vmax.f32 %v395, %v754
  %v1524 = vmax.f32 %v873, %v1232
  %v1525 = vmax.f32 %v878, %v1237
  %v1526 = vmax.f32 %v883, %v1242
  %v1527 = vmax.f32 %v888, %v1247
  %v1528 = vmax.f32 %v893, %v1252
  %v1529 = vmax.f32 %v898, %v1257
  %v1530 = vmax.f32 %v903, %v1262
  %v1531 = vmax.f32 %v908, %v1267
  %v1532 = vmax.f32 %v913, %v1272
  %v1533 = vmax.f32 %v918, %v1277
  %v1534 = vmax.f32 %v923, %v1282
  %v1535 = vmax.f32 %v928, %v1287
  %v1536 = vmax.f32 %v933, %v1292
  %v1537 = vmax.f32 %v938, %v1297
  %v1538 = vmax.f32 %v943, %v1302
  %v1539 = vmax.f32 %v948, %v1307
  %v1540 = vmax.f32 %v953, %v1312
  %v1541 = vmax.f32 %v958, %v1317
  %v1542 = vmax.f32 %v963, %v1322
  %v1543 = vmax.f32 %v968, %v1327
  %v1544 = vmax.f32 %v973, %v1332
  %v1545 = vmax.f32 %v978, %v1337
  %v1546 = vmax.f32 %v983, %v1342
  %v1547 = vmax.f32 %v988, %v1347
  %v1548 = vmax.f32 %v993, %v1352
  %v1549 = vmax.f32 %v998, %v1357
  %v1550 = vmax.f32 %v1003, %v1362
  %v1551 = vmax.f32 %v1008, %v1367
  %v1552 = vmax.f32 %v1013, %v1372
  %v1553 = vmax.f32 %v1018, %v1377
  %v1554 = vmax.f32 %v1023, %v1382
  %v1555 = vmax.f32 %v1028, %v1387
  %v1556 = vmax.f32 %v1033, %v1392
  %v1557 = vmax.f32 %v1038, %v1397
  %v1558 = vmax.f32 %v1043, %v1402
  %v1559 = vmax.f32 %v1048, %v1407
  %v1560 = vmax.f32 %v1053, %v1412
  %v1561 = vmax.f32 %v1058, %v1417
  %v1562 = vmax.f32 %v1063, %v1422
  %v1563 = vmax.f32 %v1068, %v1427
  %v1564 = vmax.f32 %v1073, %v1432
  %v1565 = vmax.f32 %v1078, %v1437
  %v1566 = vmax.f32 %v1083, %v1442
  %v1567 = vmax.f32 %v1088, %v1447
  %v1568 = vmax.f32 %v1093, %v1452
  %v1569 = vmax.f32 %v1098, %v1457
  %v1570 = vmax.f32 %v1103, %v1462
  %v1571 = vmax.f32 %v1108, %v1467
  %v1572 = vmax.f32 %v1113, %v1472
  %v1573 = vmax.f32 %v1475, %v1524
  %v1574 = vmax.f32 %v1476, %v1525
  %v1575 = vmax.f32 %v1477, %v1526
  %v1576 = vmax.f32 %v1478, %v1527
  %v1577 = vmax.f32 %v1479, %v1528
  %v1578 = vmax.f32 %v1480, %v1529
  %v1579 = vmax.f32 %v1481, %v1530
  %v1580 = vmax.f32 %v1482, %v1531
  %v1581 = vmax.f32 %v1483, %v1532
  %v1582 = vmax.f32 %v1484, %v1533
  %v1583 = vmax.f32 %v1485, %v1534
  %v1584 = vmax.f32 %v1486, %v1535
  %v1585 = vmax.f32 %v1487, %v1536
  %v1586 = vmax.f32 %v1488, %v1537
  %v1587 = vmax.f32 %v1489, %v1538
  %v1588 = vmax.f32 %v1490, %v1539
  %v1589 = vmax.f32 %v1491, %v1540
  %v1590 = vmax.f32 %v1492, %v1541
  %v1591 = vmax.f32 %v1493, %v1542
  %v1592 = vmax.f32 %v1494, %v1543
  %v1593 = vmax.f32 %v1495, %v1544
  %v1594 = vmax.f32 %v1496, %v1545
  %v1595 = vmax.f32 %v1497, %v1546
  %v1596 = vmax.f32 %v1498, %v1547
  %v1597 = vmax.f32 %v1499, %v1548
  %v1598 = vmax.f32 %v1500, %v1549
  %v1599 = vmax.f32 %v1501, %v1550
  %v1600 = vmax.f32 %v1502, %v1551
  %v1601 = vmax.f32 %v1503, %v1552
  %v1602 = vmax.f32 %v1504, %v1553
  %v1603 = vmax.f32 %v1505, %v1554
  %v1604 = vmax.f32 %v1506, %v1555
  %v1605 = vmax.f32 %v1507, %v1556
  %v1606 = vmax.f32 %v1508, %v1557
  %v1607 = vmax.f32 %v1509, %v1558
  %v1608 = vmax.f32 %v1510, %v1559
  %v1609 = vmax.f32 %v1511, %v1560
  %v1610 = vmax.f32 %v1512, %v1561
  %v1611 = vmax.f32 %v1513, %v1562
  %v1612 = vmax.f32 %v1514, %v1563
  %v1613 = vmax.f32 %v1515, %v1564
  %v1614 = vmax.f32 %v1516, %v1565
  %v1615 = vmax.f32 %v1517, %v1566
  %v1616 = vmax.f32 %v1518, %v1567
  %v1617 = vmax.f32 %v1519, %v1568
  %v1618 = vmax.f32 %v1520, %v1569
  %v1619 = vmax.f32 %v1521, %v1570
  %v1620 = vmax.f32 %v1522, %v1571
  %v1621 = vmax.f32 %v1523, %v1572
  %v1622 = vld [vmem:[%s5] sm:$0x1]
  %v1624 = vlaneseq
  %v1625 = vshrl.u32 %v1624, 7
  %v1626 = vsub.s32 0, %v1625
  %v1627 = vrot.slane %v1622, %v1626
  %v1629 = vadd.f32 %v1573, %v1627
  %v1630 = vadd.f32 %v1574, %v1627
  %v1631 = vadd.f32 %v1575, %v1627
  %v1632 = vadd.f32 %v1576, %v1627
  %v1633 = vadd.f32 %v1577, %v1627
  %v1634 = vadd.f32 %v1578, %v1627
  %v1635 = vadd.f32 %v1579, %v1627
  %v1636 = vadd.f32 %v1580, %v1627
  %v1637 = vadd.f32 %v1581, %v1627
  %v1638 = vadd.f32 %v1582, %v1627
  %v1639 = vadd.f32 %v1583, %v1627
  %v1640 = vadd.f32 %v1584, %v1627
  %v1641 = vadd.f32 %v1585, %v1627
  %v1642 = vadd.f32 %v1586, %v1627
  %v1643 = vadd.f32 %v1587, %v1627
  %v1644 = vadd.f32 %v1588, %v1627
  %v1645 = vadd.f32 %v1589, %v1627
  %v1646 = vadd.f32 %v1590, %v1627
  %v1647 = vadd.f32 %v1591, %v1627
  %v1648 = vadd.f32 %v1592, %v1627
  %v1649 = vadd.f32 %v1593, %v1627
  %v1650 = vadd.f32 %v1594, %v1627
  %v1651 = vadd.f32 %v1595, %v1627
  %v1652 = vadd.f32 %v1596, %v1627
  %v1653 = vadd.f32 %v1597, %v1627
  %v1654 = vadd.f32 %v1598, %v1627
  %v1655 = vadd.f32 %v1599, %v1627
  %v1656 = vadd.f32 %v1600, %v1627
  %v1657 = vadd.f32 %v1601, %v1627
  %v1658 = vadd.f32 %v1602, %v1627
  %v1659 = vadd.f32 %v1603, %v1627
  %v1660 = vadd.f32 %v1604, %v1627
  %v1661 = vadd.f32 %v1605, %v1627
  %v1662 = vadd.f32 %v1606, %v1627
  %v1663 = vadd.f32 %v1607, %v1627
  %v1664 = vadd.f32 %v1608, %v1627
  %v1665 = vadd.f32 %v1609, %v1627
  %v1666 = vadd.f32 %v1610, %v1627
  %v1667 = vadd.f32 %v1611, %v1627
  %v1668 = vadd.f32 %v1612, %v1627
  %v1669 = vadd.f32 %v1613, %v1627
  %v1670 = vadd.f32 %v1614, %v1627
  %v1671 = vadd.f32 %v1615, %v1627
  %v1672 = vadd.f32 %v1616, %v1627
  %v1673 = vadd.f32 %v1617, %v1627
  %v1674 = vadd.f32 %v1618, %v1627
  %v1675 = vadd.f32 %v1619, %v1627
  %v1676 = vadd.f32 %v1620, %v1627
  %v1677 = vadd.f32 %v1621, %v1627
  %v1678 = vmax.f32 %v1629, 0.0
  %v1679 = vmax.f32 %v1630, 0.0
  %v1680 = vmax.f32 %v1631, 0.0
  %v1681 = vmax.f32 %v1632, 0.0
  %v1682 = vmax.f32 %v1633, 0.0
  %v1683 = vmax.f32 %v1634, 0.0
  %v1684 = vmax.f32 %v1635, 0.0
  %v1685 = vmax.f32 %v1636, 0.0
  %v1686 = vmax.f32 %v1637, 0.0
  %v1687 = vmax.f32 %v1638, 0.0
  %v1688 = vmax.f32 %v1639, 0.0
  %v1689 = vmax.f32 %v1640, 0.0
  %v1690 = vmax.f32 %v1641, 0.0
  %v1691 = vmax.f32 %v1642, 0.0
  %v1692 = vmax.f32 %v1643, 0.0
  %v1693 = vmax.f32 %v1644, 0.0
  %v1694 = vmax.f32 %v1645, 0.0
  %v1695 = vmax.f32 %v1646, 0.0
  %v1696 = vmax.f32 %v1647, 0.0
  %v1697 = vmax.f32 %v1648, 0.0
  %v1698 = vmax.f32 %v1649, 0.0
  %v1699 = vmax.f32 %v1650, 0.0
  %v1700 = vmax.f32 %v1651, 0.0
  %v1701 = vmax.f32 %v1652, 0.0
  %v1702 = vmax.f32 %v1653, 0.0
  %v1703 = vmax.f32 %v1654, 0.0
  %v1704 = vmax.f32 %v1655, 0.0
  %v1705 = vmax.f32 %v1656, 0.0
  %v1706 = vmax.f32 %v1657, 0.0
  %v1707 = vmax.f32 %v1658, 0.0
  %v1708 = vmax.f32 %v1659, 0.0
  %v1709 = vmax.f32 %v1660, 0.0
  %v1710 = vmax.f32 %v1661, 0.0
  %v1711 = vmax.f32 %v1662, 0.0
  %v1712 = vmax.f32 %v1663, 0.0
  %v1713 = vmax.f32 %v1664, 0.0
  %v1714 = vmax.f32 %v1665, 0.0
  %v1715 = vmax.f32 %v1666, 0.0
  %v1716 = vmax.f32 %v1667, 0.0
  %v1717 = vmax.f32 %v1668, 0.0
  %v1718 = vmax.f32 %v1669, 0.0
  %v1719 = vmax.f32 %v1670, 0.0
  %v1720 = vmax.f32 %v1671, 0.0
  %v1721 = vmax.f32 %v1672, 0.0
  %v1722 = vmax.f32 %v1673, 0.0
  %v1723 = vmax.f32 %v1674, 0.0
  %v1724 = vmax.f32 %v1675, 0.0
  %v1725 = vmax.f32 %v1676, 0.0
  %v1726 = vmax.f32 %v1677, 0.0
  %1727 = vst [vmem:[%s6] sm:$0xff] %v1678
  %1728 = vst [vmem:[%s6 + $0x8] sm:$0xff] %v1679
  %1729 = vst [vmem:[%s6 + $0x10] sm:$0xff] %v1680
  %1730 = vst [vmem:[%s6 + $0x18] sm:$0xff] %v1681
  %1731 = vst [vmem:[%s6 + $0x20] sm:$0xff] %v1682
  %1732 = vst [vmem:[%s6 + $0x28] sm:$0xff] %v1683
  %1733 = vst [vmem:[%s6 + $0x30] sm:$0xff] %v1684
  %1734 = vst [vmem:[%s6 + $0x38] sm:$0xff] %v1685
  %1735 = vst [vmem:[%s6 + $0x40] sm:$0xff] %v1686
  %1736 = vst [vmem:[%s6 + $0x48] sm:$0xff] %v1687
  %1737 = vst [vmem:[%s6 + $0x50] sm:$0xff] %v1688
  %1738 = vst [vmem:[%s6 + $0x58] sm:$0xff] %v1689
  %1739 = vst [vmem:[%s6 + $0x60] sm:$0xff] %v1690
  %1740 = vst [vmem:[%s6 + $0x68] sm:$0xff] %v1691
  %1741 = vst [vmem:[%s6 + $0x70] sm:$0xff] %v1692
  %1742 = vst [vmem:[%s6 + $0x78] sm:$0xff] %v1693
  %1743 = vst [vmem:[%s6 + $0x80] sm:$0xff] %v1694
  %1744 = vst [vmem:[%s6 + $0x88] sm:$0xff] %v1695
  %1745 = vst [vmem:[%s6 + $0x90] sm:$0xff] %v1696
  %1746 = vst [vmem:[%s6 + $0x98] sm:$0xff] %v1697
  %1747 = vst [vmem:[%s6 + $0xa0] sm:$0xff] %v1698
  %1748 = vst [vmem:[%s6 + $0xa8] sm:$0xff] %v1699
  %1749 = vst [vmem:[%s6 + $0xb0] sm:$0xff] %v1700
  %1750 = vst [vmem:[%s6 + $0xb8] sm:$0xff] %v1701
  %1751 = vst [vmem:[%s6 + $0xc0] sm:$0xff] %v1702
  %1752 = vst [vmem:[%s6 + $0xc8] sm:$0xff] %v1703
  %1753 = vst [vmem:[%s6 + $0xd0] sm:$0xff] %v1704
  %1754 = vst [vmem:[%s6 + $0xd8] sm:$0xff] %v1705
  %1755 = vst [vmem:[%s6 + $0xe0] sm:$0xff] %v1706
  %1756 = vst [vmem:[%s6 + $0xe8] sm:$0xff] %v1707
  %1757 = vst [vmem:[%s6 + $0xf0] sm:$0xff] %v1708
  %1758 = vst [vmem:[%s6 + $0xf8] sm:$0xff] %v1709
  %1759 = vst [vmem:[%s6 + $0x100] sm:$0xff] %v1710
  %1760 = vst [vmem:[%s6 + $0x108] sm:$0xff] %v1711
  %1761 = vst [vmem:[%s6 + $0x110] sm:$0xff] %v1712
  %1762 = vst [vmem:[%s6 + $0x118] sm:$0xff] %v1713
  %1763 = vst [vmem:[%s6 + $0x120] sm:$0xff] %v1714
  %1764 = vst [vmem:[%s6 + $0x128] sm:$0xff] %v1715
  %1765 = vst [vmem:[%s6 + $0x130] sm:$0xff] %v1716
  %1766 = vst [vmem:[%s6 + $0x138] sm:$0xff] %v1717
  %1767 = vst [vmem:[%s6 + $0x140] sm:$0xff] %v1718
  %1768 = vst [vmem:[%s6 + $0x148] sm:$0xff] %v1719
  %1769 = vst [vmem:[%s6 + $0x150] sm:$0xff] %v1720
  %1770 = vst [vmem:[%s6 + $0x158] sm:$0xff] %v1721
  %1771 = vst [vmem:[%s6 + $0x160] sm:$0xff] %v1722
  %1772 = vst [vmem:[%s6 + $0x168] sm:$0xff] %v1723
  %1773 = vst [vmem:[%s6 + $0x170] sm:$0xff] %v1724
  %1774 = vst [vmem:[%s6 + $0x178] sm:$0xff] %v1725
  %1775 = vst [vmem:[%s6 + $0x180] sm:$0xff] %v1726
  // Predicated region
  $region26: #{cnn_target_forward.3} parent=0 // pred_check
    _
  $region27: #{cnn_target_forward.3} parent=0 // pred_check_branch
    %1777 = sbr.rel (0) target = $region29
  $region28: #{cnn_target_forward.3} parent=0 // pred_region
    _
  $region29: #{cnn_target_forward.3} parent=0 // pred_fallthru
    _
  // Predicated region
  $region30: #{cnn_target_forward.3} parent=0 // pred_check
    _
  $region31: #{cnn_target_forward.3} parent=0 // pred_check_branch
    %1779 = sbr.rel (0) target = $region33
  $region32: #{cnn_target_forward.3} parent=0 // pred_region
    _
  $region33: #{cnn_target_forward.3} parent=0 // pred_fallthru
    _

// kernel: cnn_target_forward.4
$region0: #{cnn_target_forward.4}
  #allocation0 [shape = 'u32[]', space=smem, size = 0x4, offset = 0x4, fixed_abs, tag = 'smem constant byte address 0x4 - core index']
  #allocation1 [shape = 'u32[144,128]{1,0:T(1,128)}', space=vmem, size = 0x12000, scoped, tag = 'internal scratch']
  %s0 = inlined_call_operand.vmem [shape: f32[50,512], index: 0, kind: input, shape index: {}]
  %s1 = inlined_call_operand.vmem [shape: f32[50,512], index: 1, kind: input, shape index: {}]
  %s2 = inlined_call_operand.vmem [shape: f32[50,512], index: 2, kind: input, shape index: {}]
  %s3 = inlined_call_operand.vmem [shape: f32[50,512], index: 3, kind: input, shape index: {}]
  %s4 = inlined_call_operand.vmem [shape: f32[512,128], index: 4, kind: input, shape index: {}]
  %s5 = inlined_call_operand.vmem [shape: f32[1,128], index: 5, kind: input, shape index: {}]
  %s6 = inlined_call_operand.vmem [shape: f32[50,128], index: 6, kind: output, shape index: {}]
  %s7 = sld [smem:[#allocation0]]
  $region34: #{cnn_target_forward.4} parent=0
    _
  %s9 = ssub.s32 1, %s7
  %s10 = scalar_select 0, %s9, %s7
  // Predicated region
  $region2: #{cnn_target_forward.4} parent=0 // pred_check
    _
  $region3: #{cnn_target_forward.4} parent=0 // pred_check_branch
    %12 = sbr.rel (0) target = $region5
  $region4: #{cnn_target_forward.4} parent=0 // pred_region
    _
  $region5: #{cnn_target_forward.4} parent=0 // pred_fallthru
    _
  // Predicated region
  $region6: #{cnn_target_forward.4} parent=0 // pred_check
    _
  $region7: #{cnn_target_forward.4} parent=0 // pred_check_branch
    %14 = sbr.rel (0) target = $region9
  $region8: #{cnn_target_forward.4} parent=0 // pred_region
    _
  $region9: #{cnn_target_forward.4} parent=0 // pred_fallthru
    _
  // Predicated region
  $region10: #{cnn_target_forward.4} parent=0 // pred_check
    _
  $region11: #{cnn_target_forward.4} parent=0 // pred_check_branch
    %16 = sbr.rel (0) target = $region13
  $region12: #{cnn_target_forward.4} parent=0 // pred_region
    _
  $region13: #{cnn_target_forward.4} parent=0 // pred_fallthru
    _
  // Predicated region
  $region14: #{cnn_target_forward.4} parent=0 // pred_check
    _
  $region15: #{cnn_target_forward.4} parent=0 // pred_check_branch
    %18 = sbr.rel (0) target = $region17
  $region16: #{cnn_target_forward.4} parent=0 // pred_region
    _
  $region17: #{cnn_target_forward.4} parent=0 // pred_fallthru
    _
  // Predicated region
  $region18: #{cnn_target_forward.4} parent=0 // pred_check
    _
  $region19: #{cnn_target_forward.4} parent=0 // pred_check_branch
    %20 = sbr.rel (0) target = $region21
  $region20: #{cnn_target_forward.4} parent=0 // pred_region
    _
  $region21: #{cnn_target_forward.4} parent=0 // pred_fallthru
    _
  // Predicated region
  $region22: #{cnn_target_forward.4} parent=0 // pred_check
    _
  $region23: #{cnn_target_forward.4} parent=0 // pred_check_branch
    %22 = sbr.rel (0) target = $region25
  $region24: #{cnn_target_forward.4} parent=0 // pred_region
    _
  $region25: #{cnn_target_forward.4} parent=0 // pred_fallthru
    _
  %v23 = vld [vmem:[%s4] sm:$0xff]
  %v24 = vld [vmem:[%s4 + $0x8] sm:$0xff]
  %v25 = vld [vmem:[%s4 + $0x10] sm:$0xff]
  %v26 = vld [vmem:[%s4 + $0x18] sm:$0xff]
  %v27 = vld [vmem:[%s4 + $0x20] sm:$0xff]
  %v28 = vld [vmem:[%s4 + $0x28] sm:$0xff]
  %v29 = vld [vmem:[%s4 + $0x30] sm:$0xff]
  %v30 = vld [vmem:[%s4 + $0x38] sm:$0xff]
  %v31 = vld [vmem:[%s4 + $0x40] sm:$0xff]
  %v32 = vld [vmem:[%s4 + $0x48] sm:$0xff]
  %v33 = vld [vmem:[%s4 + $0x50] sm:$0xff]
  %v34 = vld [vmem:[%s4 + $0x58] sm:$0xff]
  %v35 = vld [vmem:[%s4 + $0x60] sm:$0xff]
  %v36 = vld [vmem:[%s4 + $0x68] sm:$0xff]
  %v37 = vld [vmem:[%s4 + $0x70] sm:$0xff]
  %v38 = vld [vmem:[%s4 + $0x78] sm:$0xff]
  %v39 = vld [vmem:[%s4 + $0x80] sm:$0xff]
  %v40 = vld [vmem:[%s4 + $0x88] sm:$0xff]
  %v41 = vld [vmem:[%s4 + $0x90] sm:$0xff]
  %v42 = vld [vmem:[%s4 + $0x98] sm:$0xff]
  %v43 = vld [vmem:[%s4 + $0xa0] sm:$0xff]
  %v44 = vld [vmem:[%s4 + $0xa8] sm:$0xff]
  %v45 = vld [vmem:[%s4 + $0xb0] sm:$0xff]
  %v46 = vld [vmem:[%s4 + $0xb8] sm:$0xff]
  %v47 = vld [vmem:[%s4 + $0xc0] sm:$0xff]
  %v48 = vld [vmem:[%s4 + $0xc8] sm:$0xff]
  %v49 = vld [vmem:[%s4 + $0xd0] sm:$0xff]
  %v50 = vld [vmem:[%s4 + $0xd8] sm:$0xff]
  %v51 = vld [vmem:[%s4 + $0xe0] sm:$0xff]
  %v52 = vld [vmem:[%s4 + $0xe8] sm:$0xff]
  %v53 = vld [vmem:[%s4 + $0xf0] sm:$0xff]
  %v54 = vld [vmem:[%s4 + $0xf8] sm:$0xff]
  %v55 = vld [vmem:[%s4 + $0x100] sm:$0xff]
  %v56 = vld [vmem:[%s4 + $0x108] sm:$0xff]
  %v57 = vld [vmem:[%s4 + $0x110] sm:$0xff]
  %v58 = vld [vmem:[%s4 + $0x118] sm:$0xff]
  %v59 = vld [vmem:[%s4 + $0x120] sm:$0xff]
  %v60 = vld [vmem:[%s4 + $0x128] sm:$0xff]
  %v61 = vld [vmem:[%s4 + $0x130] sm:$0xff]
  %v62 = vld [vmem:[%s4 + $0x138] sm:$0xff]
  %v63 = vld [vmem:[%s4 + $0x140] sm:$0xff]
  %v64 = vld [vmem:[%s4 + $0x148] sm:$0xff]
  %v65 = vld [vmem:[%s4 + $0x150] sm:$0xff]
  %v66 = vld [vmem:[%s4 + $0x158] sm:$0xff]
  %v67 = vld [vmem:[%s4 + $0x160] sm:$0xff]
  %v68 = vld [vmem:[%s4 + $0x168] sm:$0xff]
  %v69 = vld [vmem:[%s4 + $0x170] sm:$0xff]
  %v70 = vld [vmem:[%s4 + $0x178] sm:$0xff]
  %v71 = vld [vmem:[%s4 + $0x180] sm:$0xff]
  %v72 = vld [vmem:[%s4 + $0x188] sm:$0xff]
  %v73 = vld [vmem:[%s4 + $0x190] sm:$0xff]
  %v74 = vld [vmem:[%s4 + $0x198] sm:$0xff]
  %v75 = vld [vmem:[%s4 + $0x1a0] sm:$0xff]
  %v76 = vld [vmem:[%s4 + $0x1a8] sm:$0xff]
  %v77 = vld [vmem:[%s4 + $0x1b0] sm:$0xff]
  %v78 = vld [vmem:[%s4 + $0x1b8] sm:$0xff]
  %v79 = vld [vmem:[%s4 + $0x1c0] sm:$0xff]
  %v80 = vld [vmem:[%s4 + $0x1c8] sm:$0xff]
  %v81 = vld [vmem:[%s4 + $0x1d0] sm:$0xff]
  %v82 = vld [vmem:[%s4 + $0x1d8] sm:$0xff]
  %v83 = vld [vmem:[%s4 + $0x1e0] sm:$0xff]
  %v84 = vld [vmem:[%s4 + $0x1e8] sm:$0xff]
  %v85 = vld [vmem:[%s4 + $0x1f0] sm:$0xff]
  %v86 = vld [vmem:[%s4 + $0x1f8] sm:$0xff]
  %v87 = vld [vmem:[%s0] sm:$0xff]
  %v88 = vld [vmem:[%s0 + $0x8] sm:$0xff]
  %v89 = vld [vmem:[%s0 + $0x10] sm:$0xff]
  %v90 = vld [vmem:[%s0 + $0x18] sm:$0xff]
  %v91 = vld [vmem:[%s0 + $0x20] sm:$0xff]
  %v92 = vld [vmem:[%s0 + $0x28] sm:$0xff]
  %v93 = vld [vmem:[%s0 + $0x30] sm:$0xff]
  %v94 = vld [vmem:[%s0 + $0x38] sm:$0xff]
  %v95 = vld [vmem:[%s0 + $0x40] sm:$0xff]
  %v96 = vld [vmem:[%s0 + $0x48] sm:$0xff]
  %v97 = vld [vmem:[%s0 + $0x50] sm:$0xff]
  %v98 = vld [vmem:[%s0 + $0x58] sm:$0xff]
  %v99 = vld [vmem:[%s0 + $0x60] sm:$0xff]
  %v100 = vld [vmem:[%s0 + $0x68] sm:$0xff]
  %v101 = vld [vmem:[%s0 + $0x70] sm:$0xff]
  %v102 = vld [vmem:[%s0 + $0x78] sm:$0xff]
  %v103 = vld [vmem:[%s0 + $0x80] sm:$0xff]
  %v104 = vld [vmem:[%s0 + $0x88] sm:$0xff]
  %v105 = vld [vmem:[%s0 + $0x90] sm:$0xff]
  %v106 = vld [vmem:[%s0 + $0x98] sm:$0xff]
  %v107 = vld [vmem:[%s0 + $0xa0] sm:$0xff]
  %v108 = vld [vmem:[%s0 + $0xa8] sm:$0xff]
  %v109 = vld [vmem:[%s0 + $0xb0] sm:$0xff]
  %v110 = vld [vmem:[%s0 + $0xb8] sm:$0xff]
  %v111 = vld [vmem:[%s0 + $0xc0] sm:$0x3]
  %v112 = vld [vmem:[%s0 + $0xc8] sm:$0x3]
  %v113 = vld [vmem:[%s0 + $0xd0] sm:$0x3]
  %v114 = vld [vmem:[%s0 + $0xd8] sm:$0x3]
  %115 = vmatprep.subr.mxu0 0.0
  %116 = vmatpush1.msra.mxu0 %v23
  %117 = vmatprep.subr.mxu0 0.0
  %118 = vmatpush1.msra.mxu0 %v24
  %119 = vmatprep.subr.mxu0 0.0
  %120 = vmatpush1.msra.mxu0 %v25
  %121 = vmatprep.subr.mxu0 0.0
  %122 = vmatpush1.msra.mxu0 %v26
  %123 = vmatprep.subr.mxu0 0.0
  %124 = vmatpush1.msra.mxu0 %v27
  %125 = vmatprep.subr.mxu0 0.0
  %126 = vmatpush1.msra.mxu0 %v28
  %127 = vmatprep.subr.mxu0 0.0
  %128 = vmatpush1.msra.mxu0 %v29
  %129 = vmatprep.subr.mxu0 0.0
  %130 = vmatpush1.msra.mxu0 %v30
  %131 = vmatprep.subr.mxu0 0.0
  %132 = vmatpush1.msra.mxu0 %v31
  %133 = vmatprep.subr.mxu0 0.0
  %134 = vmatpush1.msra.mxu0 %v32
  %135 = vmatprep.subr.mxu0 0.0
  %136 = vmatpush1.msra.mxu0 %v33
  %137 = vmatprep.subr.mxu0 0.0
  %138 = vmatpush1.msra.mxu0 %v34
  %139 = vmatprep.subr.mxu0 0.0
  %140 = vmatpush1.msra.mxu0 %v35
  %141 = vmatprep.subr.mxu0 0.0
  %142 = vmatpush1.msra.mxu0 %v36
  %143 = vmatprep.subr.mxu0 0.0
  %144 = vmatpush1.msra.mxu0 %v37
  %145 = vmatprep.subr.mxu0 0.0
  %146 = vmatpush1.msra.mxu0 %v38
  %147 = vmatprep.subr.mxu0 0.0
  %148 = vmatpush1.msra.mxu0 %v39
  %149 = vmatprep.subr.mxu0 0.0
  %150 = vmatpush1.msra.mxu0 %v40
  %151 = vmatprep.subr.mxu0 0.0
  %152 = vmatpush1.msra.mxu0 %v41
  %153 = vmatprep.subr.mxu0 0.0
  %154 = vmatpush1.msra.mxu0 %v42
  %155 = vmatprep.subr.mxu0 0.0
  %156 = vmatpush1.msra.mxu0 %v43
  %157 = vmatprep.subr.mxu0 0.0
  %158 = vmatpush1.msra.mxu0 %v44
  %159 = vmatprep.subr.mxu0 0.0
  %160 = vmatpush1.msra.mxu0 %v45
  %161 = vmatprep.subr.mxu0 0.0
  %162 = vmatpush1.msra.mxu0 %v46
  %163 = vmatprep.subr.mxu0 0.0
  %164 = vmatpush1.msra.mxu0 %v47
  %165 = vmatprep.subr.mxu0 0.0
  %166 = vmatpush1.msra.mxu0 %v48
  %167 = vmatprep.subr.mxu0 0.0
  %168 = vmatpush1.msra.mxu0 %v49
  %169 = vmatprep.subr.mxu0 0.0
  %170 = vmatpush1.msra.mxu0 %v50
  %171 = vmatprep.subr.mxu0 0.0
  %172 = vmatpush1.msra.mxu0 %v51
  %173 = vmatprep.subr.mxu0 0.0
  %174 = vmatpush1.msra.mxu0 %v52
  %175 = vmatprep.subr.mxu0 0.0
  %176 = vmatpush1.msra.mxu0 %v53
  %177 = vmatprep.subr.mxu0 0.0
  %178 = vmatpush1.msra.mxu0 %v54
  %179 = vmatprep.mubr.f32.mxu0 %v88
  %180 = vmatmul.mubr.f32.gmra.mrb[0].mxu0 %v87
  %v181 = vpop.f32.mrb[0].mxu0
  %v182 = vadd.f32 0.0, %v181
  %v183 = vpop.f32.mrb[0].mxu0
  %184 = vmatprep.mubr.f32.mxu0 %v92
  %185 = vmatmul.mubr.f32.gmra.mrb[0].mxu0 %v91
  %v186 = vpop.f32.mrb[0].mxu0
  %v187 = vadd.f32 0.0, %v186
  %v188 = vpop.f32.mrb[0].mxu0
  %189 = vmatprep.mubr.f32.mxu0 %v96
  %190 = vmatmul.mubr.f32.gmra.mrb[0].mxu0 %v95
  %v191 = vpop.f32.mrb[0].mxu0
  %v192 = vadd.f32 0.0, %v191
  %v193 = vpop.f32.mrb[0].mxu0
  %194 = vmatprep.mubr.f32.mxu0 %v100
  %195 = vmatmul.mubr.f32.gmra.mrb[0].mxu0 %v99
  %v196 = vpop.f32.mrb[0].mxu0
  %v197 = vadd.f32 0.0, %v196
  %v198 = vpop.f32.mrb[0].mxu0
  %199 = vmatprep.mubr.f32.mxu0 %v104
  %200 = vmatmul.mubr.f32.gmra.mrb[0].mxu0 %v103
  %v201 = vpop.f32.mrb[0].mxu0
  %v202 = vadd.f32 0.0, %v201
  %v203 = vpop.f32.mrb[0].mxu0
  %204 = vmatprep.mubr.f32.mxu0 %v108
  %205 = vmatmul.mubr.f32.gmra.mrb[0].mxu0 %v107
  %v206 = vpop.f32.mrb[0].mxu0
  %v207 = vadd.f32 0.0, %v206
  %v208 = vpop.f32.mrb[0].mxu0
  %209 = vmatprep.mubr.f32.mxu0 %v112
  %210 = vmatmul.mubr.f32.gmra.mrb[0].mxu0 %v111
  %v211 = vpop.f32.mrb[0].mxu0
  %v212 = vadd.f32 0.0, %v211
  %v213 = vpop.f32.mrb[0].mxu0
  %214 = vdwg.mxu0
  %215 = vmatprep.subr.mxu0 0.0
  %216 = vmatpush1.msra.mxu0 %v55
  %217 = vmatprep.subr.mxu0 0.0
  %218 = vmatpush1.msra.mxu0 %v56
  %219 = vmatprep.subr.mxu0 0.0
  %220 = vmatpush1.msra.mxu0 %v57
  %221 = vmatprep.subr.mxu0 0.0
  %222 = vmatpush1.msra.mxu0 %v58
  %223 = vmatprep.subr.mxu0 0.0
  %224 = vmatpush1.msra.mxu0 %v59
  %225 = vmatprep.subr.mxu0 0.0
  %226 = vmatpush1.msra.mxu0 %v60
  %227 = vmatprep.subr.mxu0 0.0
  %228 = vmatpush1.msra.mxu0 %v61
  %229 = vmatprep.subr.mxu0 0.0
  %230 = vmatpush1.msra.mxu0 %v62
  %231 = vmatprep.subr.mxu0 0.0
  %232 = vmatpush1.msra.mxu0 %v63
  %233 = vmatprep.subr.mxu0 0.0
  %234 = vmatpush1.msra.mxu0 %v64
  %235 = vmatprep.subr.mxu0 0.0
  %236 = vmatpush1.msra.mxu0 %v65
  %237 = vmatprep.subr.mxu0 0.0
  %238 = vmatpush1.msra.mxu0 %v66
  %239 = vmatprep.subr.mxu0 0.0
  %240 = vmatpush1.msra.mxu0 %v67
  %241 = vmatprep.subr.mxu0 0.0
  %242 = vmatpush1.msra.mxu0 %v68
  %243 = vmatprep.subr.mxu0 0.0
  %244 = vmatpush1.msra.mxu0 %v69
  %245 = vmatprep.subr.mxu0 0.0
  %246 = vmatpush1.msra.mxu0 %v70
  %247 = vmatprep.subr.mxu0 0.0
  %248 = vmatpush1.msra.mxu0 %v71
  %249 = vmatprep.subr.mxu0 0.0
  %250 = vmatpush1.msra.mxu0 %v72
  %251 = vmatprep.subr.mxu0 0.0
  %252 = vmatpush1.msra.mxu0 %v73
  %253 = vmatprep.subr.mxu0 0.0
  %254 = vmatpush1.msra.mxu0 %v74
  %255 = vmatprep.subr.mxu0 0.0
  %256 = vmatpush1.msra.mxu0 %v75
  %257 = vmatprep.subr.mxu0 0.0
  %258 = vmatpush1.msra.mxu0 %v76
  %259 = vmatprep.subr.mxu0 0.0
  %260 = vmatpush1.msra.mxu0 %v77
  %261 = vmatprep.subr.mxu0 0.0
  %262 = vmatpush1.msra.mxu0 %v78
  %263 = vmatprep.subr.mxu0 0.0
  %264 = vmatpush1.msra.mxu0 %v79
  %265 = vmatprep.subr.mxu0 0.0
  %266 = vmatpush1.msra.mxu0 %v80
  %267 = vmatprep.subr.mxu0 0.0
  %268 = vmatpush1.msra.mxu0 %v81
  %269 = vmatprep.subr.mxu0 0.0
  %270 = vmatpush1.msra.mxu0 %v82
  %271 = vmatprep.subr.mxu0 0.0
  %272 = vmatpush1.msra.mxu0 %v83
  %273 = vmatprep.subr.mxu0 0.0
  %274 = vmatpush1.msra.mxu0 %v84
  %275 = vmatprep.subr.mxu0 0.0
  %276 = vmatpush1.msra.mxu0 %v85
  %277 = vmatprep.subr.mxu0 0.0
  %278 = vmatpush1.msra.mxu0 %v86
  %279 = vmatprep.mubr.f32.mxu0 %v90
  %280 = vmatmul.mubr.f32.gmra.mrb[0].mxu0 %v89
  %v281 = vpop.f32.mrb[0].mxu0
  %v282 = vadd.f32 %v182, %v281
  %v283 = vpop.f32.mrb[0].mxu0
  %284 = vmatprep.mubr.f32.mxu0 %v94
  %285 = vmatmul.mubr.f32.gmra.mrb[0].mxu0 %v93
  %v286 = vpop.f32.mrb[0].mxu0
  %v287 = vadd.f32 %v187, %v286
  %v288 = vpop.f32.mrb[0].mxu0
  %289 = vmatprep.mubr.f32.mxu0 %v98
  %290 = vmatmul.mubr.f32.gmra.mrb[0].mxu0 %v97
  %v291 = vpop.f32.mrb[0].mxu0
  %v292 = vadd.f32 %v192, %v291
  %v293 = vpop.f32.mrb[0].mxu0
  %294 = vmatprep.mubr.f32.mxu0 %v102
  %295 = vmatmul.mubr.f32.gmra.mrb[0].mxu0 %v101
  %v296 = vpop.f32.mrb[0].mxu0
  %v297 = vadd.f32 %v197, %v296
  %v298 = vpop.f32.mrb[0].mxu0
  %299 = vmatprep.mubr.f32.mxu0 %v106
  %300 = vmatmul.mubr.f32.gmra.mrb[0].mxu0 %v105
  %v301 = vpop.f32.mrb[0].mxu0
  %v302 = vadd.f32 %v202, %v301
  %v303 = vpop.f32.mrb[0].mxu0
  %304 = vmatprep.mubr.f32.mxu0 %v110
  %305 = vmatmul.mubr.f32.gmra.mrb[0].mxu0 %v109
  %v306 = vpop.f32.mrb[0].mxu0
  %v307 = vadd.f32 %v207, %v306
  %v308 = vpop.f32.mrb[0].mxu0
  %309 = vmatprep.mubr.f32.mxu0 %v114
  %310 = vmatmul.mubr.f32.gmra.mrb[0].mxu0 %v113
  %v311 = vpop.f32.mrb[0].mxu0
  %v312 = vadd.f32 %v212, %v311
  %v313 = vpop.f32.mrb[0].mxu0
  %314 = vdwg.mxu0
  %v315 = vld [vmem:[%s1] sm:$0xff]
  %v316 = vld [vmem:[%s1 + $0x8] sm:$0xff]
  %v317 = vld [vmem:[%s1 + $0x10] sm:$0xff]
  %v318 = vld [vmem:[%s1 + $0x18] sm:$0xff]
  %v319 = vld [vmem:[%s1 + $0x20] sm:$0xff]
  %v320 = vld [vmem:[%s1 + $0x28] sm:$0xff]
  %v321 = vld [vmem:[%s1 + $0x30] sm:$0xff]
  %v322 = vld [vmem:[%s1 + $0x38] sm:$0xff]
  %v323 = vld [vmem:[%s1 + $0x40] sm:$0xff]
  %v324 = vld [vmem:[%s1 + $0x48] sm:$0xff]
  %v325 = vld [vmem:[%s1 + $0x50] sm:$0xff]
  %v326 = vld [vmem:[%s1 + $0x58] sm:$0xff]
  %v327 = vld [vmem:[%s1 + $0x60] sm:$0xff]
  %v328 = vld [vmem:[%s1 + $0x68] sm:$0xff]
  %v329 = vld [vmem:[%s1 + $0x70] sm:$0xff]
  %v330 = vld [vmem:[%s1 + $0x78] sm:$0xff]
  %v331 = vld [vmem:[%s1 + $0x80] sm:$0xff]
  %v332 = vld [vmem:[%s1 + $0x88] sm:$0xff]
  %v333 = vld [vmem:[%s1 + $0x90] sm:$0xff]
  %v334 = vld [vmem:[%s1 + $0x98] sm:$0xff]
  %v335 = vld [vmem:[%s1 + $0xa0] sm:$0xff]
  %v336 = vld [vmem:[%s1 + $0xa8] sm:$0xff]
  %v337 = vld [vmem:[%s1 + $0xb0] sm:$0xff]
  %v338 = vld [vmem:[%s1 + $0xb8] sm:$0xff]
  %v339 = vld [vmem:[%s1 + $0xc0] sm:$0x3]
  %v340 = vld [vmem:[%s1 + $0xc8] sm:$0x3]
  %v341 = vld [vmem:[%s1 + $0xd0] sm:$0x3]
  %v342 = vld [vmem:[%s1 + $0xd8] sm:$0x3]
  %343 = vmatprep.subr.mxu0 0.0
  %344 = vmatpush1.msra.mxu0 %v23
  %345 = vmatprep.subr.mxu0 0.0
  %346 = vmatpush1.msra.mxu0 %v24
  %347 = vmatprep.subr.mxu0 0.0
  %348 = vmatpush1.msra.mxu0 %v25
  %349 = vmatprep.subr.mxu0 0.0
  %350 = vmatpush1.msra.mxu0 %v26
  %351 = vmatprep.subr.mxu0 0.0
  %352 = vmatpush1.msra.mxu0 %v27
  %353 = vmatprep.subr.mxu0 0.0
  %354 = vmatpush1.msra.mxu0 %v28
  %355 = vmatprep.subr.mxu0 0.0
  %356 = vmatpush1.msra.mxu0 %v29
  %357 = vmatprep.subr.mxu0 0.0
  %358 = vmatpush1.msra.mxu0 %v30
  %359 = vmatprep.subr.mxu0 0.0
  %360 = vmatpush1.msra.mxu0 %v31
  %361 = vmatprep.subr.mxu0 0.0
  %362 = vmatpush1.msra.mxu0 %v32
  %363 = vmatprep.subr.mxu0 0.0
  %364 = vmatpush1.msra.mxu0 %v33
  %365 = vmatprep.subr.mxu0 0.0
  %366 = vmatpush1.msra.mxu0 %v34
  %367 = vmatprep.subr.mxu0 0.0
  %368 = vmatpush1.msra.mxu0 %v35
  %369 = vmatprep.subr.mxu0 0.0
  %370 = vmatpush1.msra.mxu0 %v36
  %371 = vmatprep.subr.mxu0 0.0
  %372 = vmatpush1.msra.mxu0 %v37
  %373 = vmatprep.subr.mxu0 0.0
  %374 = vmatpush1.msra.mxu0 %v38
  %375 = vmatprep.subr.mxu0 0.0
  %376 = vmatpush1.msra.mxu0 %v39
  %377 = vmatprep.subr.mxu0 0.0
  %378 = vmatpush1.msra.mxu0 %v40
  %379 = vmatprep.subr.mxu0 0.0
  %380 = vmatpush1.msra.mxu0 %v41
  %381 = vmatprep.subr.mxu0 0.0
  %382 = vmatpush1.msra.mxu0 %v42
  %383 = vmatprep.subr.mxu0 0.0
  %384 = vmatpush1.msra.mxu0 %v43
  %385 = vmatprep.subr.mxu0 0.0
  %386 = vmatpush1.msra.mxu0 %v44
  %387 = vmatprep.subr.mxu0 0.0
  %388 = vmatpush1.msra.mxu0 %v45
  %389 = vmatprep.subr.mxu0 0.0
  %390 = vmatpush1.msra.mxu0 %v46
  %391 = vmatprep.subr.mxu0 0.0
  %392 = vmatpush1.msra.mxu0 %v47
  %393 = vmatprep.subr.mxu0 0.0
  %394 = vmatpush1.msra.mxu0 %v48
  %395 = vmatprep.subr.mxu0 0.0
  %396 = vmatpush1.msra.mxu0 %v49
  %397 = vmatprep.subr.mxu0 0.0
  %398 = vmatpush1.msra.mxu0 %v50
  %399 = vmatprep.subr.mxu0 0.0
  %400 = vmatpush1.msra.mxu0 %v51
  %401 = vmatprep.subr.mxu0 0.0
  %402 = vmatpush1.msra.mxu0 %v52
  %403 = vmatprep.subr.mxu0 0.0
  %404 = vmatpush1.msra.mxu0 %v53
  %405 = vmatprep.subr.mxu0 0.0
  %406 = vmatpush1.msra.mxu0 %v54
  %407 = vmatprep.mubr.f32.mxu0 %v316
  %408 = vmatmul.mubr.f32.gmra.mrb[0].mxu0 %v315
  %v409 = vpop.f32.mrb[0].mxu0
  %v410 = vadd.f32 0.0, %v409
  %v411 = vpop.f32.mrb[0].mxu0
  %412 = vmatprep.mubr.f32.mxu0 %v320
  %413 = vmatmul.mubr.f32.gmra.mrb[0].mxu0 %v319
  %v414 = vpop.f32.mrb[0].mxu0
  %v415 = vadd.f32 0.0, %v414
  %v416 = vpop.f32.mrb[0].mxu0
  %417 = vmatprep.mubr.f32.mxu0 %v324
  %418 = vmatmul.mubr.f32.gmra.mrb[0].mxu0 %v323
  %v419 = vpop.f32.mrb[0].mxu0
  %v420 = vadd.f32 0.0, %v419
  %v421 = vpop.f32.mrb[0].mxu0
  %422 = vmatprep.mubr.f32.mxu0 %v328
  %423 = vmatmul.mubr.f32.gmra.mrb[0].mxu0 %v327
  %v424 = vpop.f32.mrb[0].mxu0
  %v425 = vadd.f32 0.0, %v424
  %v426 = vpop.f32.mrb[0].mxu0
  %427 = vmatprep.mubr.f32.mxu0 %v332
  %428 = vmatmul.mubr.f32.gmra.mrb[0].mxu0 %v331
  %v429 = vpop.f32.mrb[0].mxu0
  %v430 = vadd.f32 0.0, %v429
  %v431 = vpop.f32.mrb[0].mxu0
  %432 = vmatprep.mubr.f32.mxu0 %v336
  %433 = vmatmul.mubr.f32.gmra.mrb[0].mxu0 %v335
  %v434 = vpop.f32.mrb[0].mxu0
  %v435 = vadd.f32 0.0, %v434
  %v436 = vpop.f32.mrb[0].mxu0
  %437 = vmatprep.mubr.f32.mxu0 %v340
  %438 = vmatmul.mubr.f32.gmra.mrb[0].mxu0 %v339
  %v439 = vpop.f32.mrb[0].mxu0
  %v440 = vadd.f32 0.0, %v439
  %v441 = vpop.f32.mrb[0].mxu0
  %442 = vdwg.mxu0
  %443 = vmatprep.subr.mxu0 0.0
  %444 = vmatpush1.msra.mxu0 %v55
  %445 = vmatprep.subr.mxu0 0.0
  %446 = vmatpush1.msra.mxu0 %v56
  %447 = vmatprep.subr.mxu0 0.0
  %448 = vmatpush1.msra.mxu0 %v57
  %449 = vmatprep.subr.mxu0 0.0
  %450 = vmatpush1.msra.mxu0 %v58
  %451 = vmatprep.subr.mxu0 0.0
  %452 = vmatpush1.msra.mxu0 %v59
  %453 = vmatprep.subr.mxu0 0.0
  %454 = vmatpush1.msra.mxu0 %v60
  %455 = vmatprep.subr.mxu0 0.0
  %456 = vmatpush1.msra.mxu0 %v61
  %457 = vmatprep.subr.mxu0 0.0
  %458 = vmatpush1.msra.mxu0 %v62
  %459 = vmatprep.subr.mxu0 0.0
  %460 = vmatpush1.msra.mxu0 %v63
  %461 = vmatprep.subr.mxu0 0.0
  %462 = vmatpush1.msra.mxu0 %v64
  %463 = vmatprep.subr.mxu0 0.0
  %464 = vmatpush1.msra.mxu0 %v65
  %465 = vmatprep.subr.mxu0 0.0
  %466 = vmatpush1.msra.mxu0 %v66
  %467 = vmatprep.subr.mxu0 0.0
  %468 = vmatpush1.msra.mxu0 %v67
  %469 = vmatprep.subr.mxu0 0.0
  %470 = vmatpush1.msra.mxu0 %v68
  %471 = vmatprep.subr.mxu0 0.0
  %472 = vmatpush1.msra.mxu0 %v69
  %473 = vmatprep.subr.mxu0 0.0
  %474 = vmatpush1.msra.mxu0 %v70
  %475 = vmatprep.subr.mxu0 0.0
  %476 = vmatpush1.msra.mxu0 %v71
  %477 = vmatprep.subr.mxu0 0.0
  %478 = vmatpush1.msra.mxu0 %v72
  %479 = vmatprep.subr.mxu0 0.0
  %480 = vmatpush1.msra.mxu0 %v73
  %481 = vmatprep.subr.mxu0 0.0
  %482 = vmatpush1.msra.mxu0 %v74
  %483 = vmatprep.subr.mxu0 0.0
  %484 = vmatpush1.msra.mxu0 %v75
  %485 = vmatprep.subr.mxu0 0.0
  %486 = vmatpush1.msra.mxu0 %v76
  %487 = vmatprep.subr.mxu0 0.0
  %488 = vmatpush1.msra.mxu0 %v77
  %489 = vmatprep.subr.mxu0 0.0
  %490 = vmatpush1.msra.mxu0 %v78
  %491 = vmatprep.subr.mxu0 0.0
  %492 = vmatpush1.msra.mxu0 %v79
  %493 = vmatprep.subr.mxu0 0.0
  %494 = vmatpush1.msra.mxu0 %v80
  %495 = vmatprep.subr.mxu0 0.0
  %496 = vmatpush1.msra.mxu0 %v81
  %497 = vmatprep.subr.mxu0 0.0
  %498 = vmatpush1.msra.mxu0 %v82
  %499 = vmatprep.subr.mxu0 0.0
  %500 = vmatpush1.msra.mxu0 %v83
  %501 = vmatprep.subr.mxu0 0.0
  %502 = vmatpush1.msra.mxu0 %v84
  %503 = vmatprep.subr.mxu0 0.0
  %504 = vmatpush1.msra.mxu0 %v85
  %505 = vmatprep.subr.mxu0 0.0
  %506 = vmatpush1.msra.mxu0 %v86
  %507 = vmatprep.mubr.f32.mxu0 %v318
  %508 = vmatmul.mubr.f32.gmra.mrb[0].mxu0 %v317
  %v509 = vpop.f32.mrb[0].mxu0
  %v510 = vadd.f32 %v410, %v509
  %v511 = vpop.f32.mrb[0].mxu0
  %512 = vmatprep.mubr.f32.mxu0 %v322
  %513 = vmatmul.mubr.f32.gmra.mrb[0].mxu0 %v321
  %v514 = vpop.f32.mrb[0].mxu0
  %v515 = vadd.f32 %v415, %v514
  %v516 = vpop.f32.mrb[0].mxu0
  %517 = vmatprep.mubr.f32.mxu0 %v326
  %518 = vmatmul.mubr.f32.gmra.mrb[0].mxu0 %v325
  %v519 = vpop.f32.mrb[0].mxu0
  %v520 = vadd.f32 %v420, %v519
  %v521 = vpop.f32.mrb[0].mxu0
  %522 = vmatprep.mubr.f32.mxu0 %v330
  %523 = vmatmul.mubr.f32.gmra.mrb[0].mxu0 %v329
  %v524 = vpop.f32.mrb[0].mxu0
  %v525 = vadd.f32 %v425, %v524
  %v526 = vpop.f32.mrb[0].mxu0
  %527 = vmatprep.mubr.f32.mxu0 %v334
  %528 = vmatmul.mubr.f32.gmra.mrb[0].mxu0 %v333
  %v529 = vpop.f32.mrb[0].mxu0
  %v530 = vadd.f32 %v430, %v529
  %v531 = vpop.f32.mrb[0].mxu0
  %532 = vmatprep.mubr.f32.mxu0 %v338
  %533 = vmatmul.mubr.f32.gmra.mrb[0].mxu0 %v337
  %v534 = vpop.f32.mrb[0].mxu0
  %v535 = vadd.f32 %v435, %v534
  %v536 = vpop.f32.mrb[0].mxu0
  %537 = vmatprep.mubr.f32.mxu0 %v342
  %538 = vmatmul.mubr.f32.gmra.mrb[0].mxu0 %v341
  %v539 = vpop.f32.mrb[0].mxu0
  %v540 = vadd.f32 %v440, %v539
  %v541 = vpop.f32.mrb[0].mxu0
  %542 = vdwg.mxu0
  %v543 = vld [vmem:[%s2] sm:$0xff]
  %v544 = vld [vmem:[%s2 + $0x8] sm:$0xff]
  %v545 = vld [vmem:[%s2 + $0x10] sm:$0xff]
  %v546 = vld [vmem:[%s2 + $0x18] sm:$0xff]
  %v547 = vld [vmem:[%s2 + $0x20] sm:$0xff]
  %v548 = vld [vmem:[%s2 + $0x28] sm:$0xff]
  %v549 = vld [vmem:[%s2 + $0x30] sm:$0xff]
  %v550 = vld [vmem:[%s2 + $0x38] sm:$0xff]
  %v551 = vld [vmem:[%s2 + $0x40] sm:$0xff]
  %v552 = vld [vmem:[%s2 + $0x48] sm:$0xff]
  %v553 = vld [vmem:[%s2 + $0x50] sm:$0xff]
  %v554 = vld [vmem:[%s2 + $0x58] sm:$0xff]
  %v555 = vld [vmem:[%s2 + $0x60] sm:$0xff]
  %v556 = vld [vmem:[%s2 + $0x68] sm:$0xff]
  %v557 = vld [vmem:[%s2 + $0x70] sm:$0xff]
  %v558 = vld [vmem:[%s2 + $0x78] sm:$0xff]
  %v559 = vld [vmem:[%s2 + $0x80] sm:$0xff]
  %v560 = vld [vmem:[%s2 + $0x88] sm:$0xff]
  %v561 = vld [vmem:[%s2 + $0x90] sm:$0xff]
  %v562 = vld [vmem:[%s2 + $0x98] sm:$0xff]
  %v563 = vld [vmem:[%s2 + $0xa0] sm:$0xff]
  %v564 = vld [vmem:[%s2 + $0xa8] sm:$0xff]
  %v565 = vld [vmem:[%s2 + $0xb0] sm:$0xff]
  %v566 = vld [vmem:[%s2 + $0xb8] sm:$0xff]
  %v567 = vld [vmem:[%s2 + $0xc0] sm:$0x3]
  %v568 = vld [vmem:[%s2 + $0xc8] sm:$0x3]
  %v569 = vld [vmem:[%s2 + $0xd0] sm:$0x3]
  %v570 = vld [vmem:[%s2 + $0xd8] sm:$0x3]
  %571 = vmatprep.subr.mxu0 0.0
  %572 = vmatpush1.msra.mxu0 %v23
  %573 = vmatprep.subr.mxu0 0.0
  %574 = vmatpush1.msra.mxu0 %v24
  %575 = vmatprep.subr.mxu0 0.0
  %576 = vmatpush1.msra.mxu0 %v25
  %577 = vmatprep.subr.mxu0 0.0
  %578 = vmatpush1.msra.mxu0 %v26
  %579 = vmatprep.subr.mxu0 0.0
  %580 = vmatpush1.msra.mxu0 %v27
  %581 = vmatprep.subr.mxu0 0.0
  %582 = vmatpush1.msra.mxu0 %v28
  %583 = vmatprep.subr.mxu0 0.0
  %584 = vmatpush1.msra.mxu0 %v29
  %585 = vmatprep.subr.mxu0 0.0
  %586 = vmatpush1.msra.mxu0 %v30
  %587 = vmatprep.subr.mxu0 0.0
  %588 = vmatpush1.msra.mxu0 %v31
  %589 = vmatprep.subr.mxu0 0.0
  %590 = vmatpush1.msra.mxu0 %v32
  %591 = vmatprep.subr.mxu0 0.0
  %592 = vmatpush1.msra.mxu0 %v33
  %593 = vmatprep.subr.mxu0 0.0
  %594 = vmatpush1.msra.mxu0 %v34
  %595 = vmatprep.subr.mxu0 0.0
  %596 = vmatpush1.msra.mxu0 %v35
  %597 = vmatprep.subr.mxu0 0.0
  %598 = vmatpush1.msra.mxu0 %v36
  %599 = vmatprep.subr.mxu0 0.0
  %600 = vmatpush1.msra.mxu0 %v37
  %601 = vmatprep.subr.mxu0 0.0
  %602 = vmatpush1.msra.mxu0 %v38
  %603 = vmatprep.subr.mxu0 0.0
  %604 = vmatpush1.msra.mxu0 %v39
  %605 = vmatprep.subr.mxu0 0.0
  %606 = vmatpush1.msra.mxu0 %v40
  %607 = vmatprep.subr.mxu0 0.0
  %608 = vmatpush1.msra.mxu0 %v41
  %609 = vmatprep.subr.mxu0 0.0
  %610 = vmatpush1.msra.mxu0 %v42
  %611 = vmatprep.subr.mxu0 0.0
  %612 = vmatpush1.msra.mxu0 %v43
  %613 = vmatprep.subr.mxu0 0.0
  %614 = vmatpush1.msra.mxu0 %v44
  %615 = vmatprep.subr.mxu0 0.0
  %616 = vmatpush1.msra.mxu0 %v45
  %617 = vmatprep.subr.mxu0 0.0
  %618 = vmatpush1.msra.mxu0 %v46
  %619 = vmatprep.subr.mxu0 0.0
  %620 = vmatpush1.msra.mxu0 %v47
  %621 = vmatprep.subr.mxu0 0.0
  %622 = vmatpush1.msra.mxu0 %v48
  %623 = vmatprep.subr.mxu0 0.0
  %624 = vmatpush1.msra.mxu0 %v49
  %625 = vmatprep.subr.mxu0 0.0
  %626 = vmatpush1.msra.mxu0 %v50
  %627 = vmatprep.subr.mxu0 0.0
  %628 = vmatpush1.msra.mxu0 %v51
  %629 = vmatprep.subr.mxu0 0.0
  %630 = vmatpush1.msra.mxu0 %v52
  %631 = vmatprep.subr.mxu0 0.0
  %632 = vmatpush1.msra.mxu0 %v53
  %633 = vmatprep.subr.mxu0 0.0
  %634 = vmatpush1.msra.mxu0 %v54
  %635 = vmatprep.mubr.f32.mxu0 %v544
  %636 = vmatmul.mubr.f32.gmra.mrb[0].mxu0 %v543
  %v637 = vpop.f32.mrb[0].mxu0
  %v638 = vadd.f32 0.0, %v637
  %v639 = vpop.f32.mrb[0].mxu0
  %640 = vmatprep.mubr.f32.mxu0 %v548
  %641 = vmatmul.mubr.f32.gmra.mrb[0].mxu0 %v547
  %v642 = vpop.f32.mrb[0].mxu0
  %v643 = vadd.f32 0.0, %v642
  %v644 = vpop.f32.mrb[0].mxu0
  %645 = vmatprep.mubr.f32.mxu0 %v552
  %646 = vmatmul.mubr.f32.gmra.mrb[0].mxu0 %v551
  %v647 = vpop.f32.mrb[0].mxu0
  %v648 = vadd.f32 0.0, %v647
  %v649 = vpop.f32.mrb[0].mxu0
  %650 = vmatprep.mubr.f32.mxu0 %v556
  %651 = vmatmul.mubr.f32.gmra.mrb[0].mxu0 %v555
  %v652 = vpop.f32.mrb[0].mxu0
  %v653 = vadd.f32 0.0, %v652
  %v654 = vpop.f32.mrb[0].mxu0
  %655 = vmatprep.mubr.f32.mxu0 %v560
  %656 = vmatmul.mubr.f32.gmra.mrb[0].mxu0 %v559
  %v657 = vpop.f32.mrb[0].mxu0
  %v658 = vadd.f32 0.0, %v657
  %v659 = vpop.f32.mrb[0].mxu0
  %660 = vmatprep.mubr.f32.mxu0 %v564
  %661 = vmatmul.mubr.f32.gmra.mrb[0].mxu0 %v563
  %v662 = vpop.f32.mrb[0].mxu0
  %v663 = vadd.f32 0.0, %v662
  %v664 = vpop.f32.mrb[0].mxu0
  %665 = vmatprep.mubr.f32.mxu0 %v568
  %666 = vmatmul.mubr.f32.gmra.mrb[0].mxu0 %v567
  %v667 = vpop.f32.mrb[0].mxu0
  %v668 = vadd.f32 0.0, %v667
  %v669 = vpop.f32.mrb[0].mxu0
  %670 = vdwg.mxu0
  %671 = vmatprep.subr.mxu0 0.0
  %672 = vmatpush1.msra.mxu0 %v55
  %673 = vmatprep.subr.mxu0 0.0
  %674 = vmatpush1.msra.mxu0 %v56
  %675 = vmatprep.subr.mxu0 0.0
  %676 = vmatpush1.msra.mxu0 %v57
  %677 = vmatprep.subr.mxu0 0.0
  %678 = vmatpush1.msra.mxu0 %v58
  %679 = vmatprep.subr.mxu0 0.0
  %680 = vmatpush1.msra.mxu0 %v59
  %681 = vmatprep.subr.mxu0 0.0
  %682 = vmatpush1.msra.mxu0 %v60
  %683 = vmatprep.subr.mxu0 0.0
  %684 = vmatpush1.msra.mxu0 %v61
  %685 = vmatprep.subr.mxu0 0.0
  %686 = vmatpush1.msra.mxu0 %v62
  %687 = vmatprep.subr.mxu0 0.0
  %688 = vmatpush1.msra.mxu0 %v63
  %689 = vmatprep.subr.mxu0 0.0
  %690 = vmatpush1.msra.mxu0 %v64
  %691 = vmatprep.subr.mxu0 0.0
  %692 = vmatpush1.msra.mxu0 %v65
  %693 = vmatprep.subr.mxu0 0.0
  %694 = vmatpush1.msra.mxu0 %v66
  %695 = vmatprep.subr.mxu0 0.0
  %696 = vmatpush1.msra.mxu0 %v67
  %697 = vmatprep.subr.mxu0 0.0
  %698 = vmatpush1.msra.mxu0 %v68
  %699 = vmatprep.subr.mxu0 0.0
  %700 = vmatpush1.msra.mxu0 %v69
  %701 = vmatprep.subr.mxu0 0.0
  %702 = vmatpush1.msra.mxu0 %v70
  %703 = vmatprep.subr.mxu0 0.0
  %704 = vmatpush1.msra.mxu0 %v71
  %705 = vmatprep.subr.mxu0 0.0
  %706 = vmatpush1.msra.mxu0 %v72
  %707 = vmatprep.subr.mxu0 0.0
  %708 = vmatpush1.msra.mxu0 %v73
  %709 = vmatprep.subr.mxu0 0.0
  %710 = vmatpush1.msra.mxu0 %v74
  %711 = vmatprep.subr.mxu0 0.0
  %712 = vmatpush1.msra.mxu0 %v75
  %713 = vmatprep.subr.mxu0 0.0
  %714 = vmatpush1.msra.mxu0 %v76
  %715 = vmatprep.subr.mxu0 0.0
  %716 = vmatpush1.msra.mxu0 %v77
  %717 = vmatprep.subr.mxu0 0.0
  %718 = vmatpush1.msra.mxu0 %v78
  %719 = vmatprep.subr.mxu0 0.0
  %720 = vmatpush1.msra.mxu0 %v79
  %721 = vmatprep.subr.mxu0 0.0
  %722 = vmatpush1.msra.mxu0 %v80
  %723 = vmatprep.subr.mxu0 0.0
  %724 = vmatpush1.msra.mxu0 %v81
  %725 = vmatprep.subr.mxu0 0.0
  %726 = vmatpush1.msra.mxu0 %v82
  %727 = vmatprep.subr.mxu0 0.0
  %728 = vmatpush1.msra.mxu0 %v83
  %729 = vmatprep.subr.mxu0 0.0
  %730 = vmatpush1.msra.mxu0 %v84
  %731 = vmatprep.subr.mxu0 0.0
  %732 = vmatpush1.msra.mxu0 %v85
  %733 = vmatprep.subr.mxu0 0.0
  %734 = vmatpush1.msra.mxu0 %v86
  %735 = vmatprep.mubr.f32.mxu0 %v546
  %736 = vmatmul.mubr.f32.gmra.mrb[0].mxu0 %v545
  %v737 = vpop.f32.mrb[0].mxu0
  %v738 = vadd.f32 %v638, %v737
  %v739 = vpop.f32.mrb[0].mxu0
  %740 = vmatprep.mubr.f32.mxu0 %v550
  %741 = vmatmul.mubr.f32.gmra.mrb[0].mxu0 %v549
  %v742 = vpop.f32.mrb[0].mxu0
  %v743 = vadd.f32 %v643, %v742
  %v744 = vpop.f32.mrb[0].mxu0
  %745 = vmatprep.mubr.f32.mxu0 %v554
  %746 = vmatmul.mubr.f32.gmra.mrb[0].mxu0 %v553
  %v747 = vpop.f32.mrb[0].mxu0
  %v748 = vadd.f32 %v648, %v747
  %v749 = vpop.f32.mrb[0].mxu0
  %750 = vmatprep.mubr.f32.mxu0 %v558
  %751 = vmatmul.mubr.f32.gmra.mrb[0].mxu0 %v557
  %v752 = vpop.f32.mrb[0].mxu0
  %v753 = vadd.f32 %v653, %v752
  %v754 = vpop.f32.mrb[0].mxu0
  %755 = vmatprep.mubr.f32.mxu0 %v562
  %756 = vmatmul.mubr.f32.gmra.mrb[0].mxu0 %v561
  %v757 = vpop.f32.mrb[0].mxu0
  %v758 = vadd.f32 %v658, %v757
  %v759 = vpop.f32.mrb[0].mxu0
  %760 = vmatprep.mubr.f32.mxu0 %v566
  %761 = vmatmul.mubr.f32.gmra.mrb[0].mxu0 %v565
  %v762 = vpop.f32.mrb[0].mxu0
  %v763 = vadd.f32 %v663, %v762
  %v764 = vpop.f32.mrb[0].mxu0
  %765 = vmatprep.mubr.f32.mxu0 %v570
  %766 = vmatmul.mubr.f32.gmra.mrb[0].mxu0 %v569
  %v767 = vpop.f32.mrb[0].mxu0
  %v768 = vadd.f32 %v668, %v767
  %v769 = vpop.f32.mrb[0].mxu0
  %770 = vdwg.mxu0
  %v771 = vld [vmem:[%s3] sm:$0xff]
  %v772 = vld [vmem:[%s3 + $0x8] sm:$0xff]
  %v773 = vld [vmem:[%s3 + $0x10] sm:$0xff]
  %v774 = vld [vmem:[%s3 + $0x18] sm:$0xff]
  %v775 = vld [vmem:[%s3 + $0x20] sm:$0xff]
  %v776 = vld [vmem:[%s3 + $0x28] sm:$0xff]
  %v777 = vld [vmem:[%s3 + $0x30] sm:$0xff]
  %v778 = vld [vmem:[%s3 + $0x38] sm:$0xff]
  %v779 = vld [vmem:[%s3 + $0x40] sm:$0xff]
  %v780 = vld [vmem:[%s3 + $0x48] sm:$0xff]
  %v781 = vld [vmem:[%s3 + $0x50] sm:$0xff]
  %v782 = vld [vmem:[%s3 + $0x58] sm:$0xff]
  %v783 = vld [vmem:[%s3 + $0x60] sm:$0xff]
  %v784 = vld [vmem:[%s3 + $0x68] sm:$0xff]
  %v785 = vld [vmem:[%s3 + $0x70] sm:$0xff]
  %v786 = vld [vmem:[%s3 + $0x78] sm:$0xff]
  %v787 = vld [vmem:[%s3 + $0x80] sm:$0xff]
  %v788 = vld [vmem:[%s3 + $0x88] sm:$0xff]
  %v789 = vld [vmem:[%s3 + $0x90] sm:$0xff]
  %v790 = vld [vmem:[%s3 + $0x98] sm:$0xff]
  %v791 = vld [vmem:[%s3 + $0xa0] sm:$0xff]
  %v792 = vld [vmem:[%s3 + $0xa8] sm:$0xff]
  %v793 = vld [vmem:[%s3 + $0xb0] sm:$0xff]
  %v794 = vld [vmem:[%s3 + $0xb8] sm:$0xff]
  %v795 = vld [vmem:[%s3 + $0xc0] sm:$0x3]
  %v796 = vld [vmem:[%s3 + $0xc8] sm:$0x3]
  %v797 = vld [vmem:[%s3 + $0xd0] sm:$0x3]
  %v798 = vld [vmem:[%s3 + $0xd8] sm:$0x3]
  %799 = vmatprep.subr.mxu0 0.0
  %800 = vmatpush1.msra.mxu0 %v23
  %801 = vmatprep.subr.mxu0 0.0
  %802 = vmatpush1.msra.mxu0 %v24
  %803 = vmatprep.subr.mxu0 0.0
  %804 = vmatpush1.msra.mxu0 %v25
  %805 = vmatprep.subr.mxu0 0.0
  %806 = vmatpush1.msra.mxu0 %v26
  %807 = vmatprep.subr.mxu0 0.0
  %808 = vmatpush1.msra.mxu0 %v27
  %809 = vmatprep.subr.mxu0 0.0
  %810 = vmatpush1.msra.mxu0 %v28
  %811 = vmatprep.subr.mxu0 0.0
  %812 = vmatpush1.msra.mxu0 %v29
  %813 = vmatprep.subr.mxu0 0.0
  %814 = vmatpush1.msra.mxu0 %v30
  %815 = vmatprep.subr.mxu0 0.0
  %816 = vmatpush1.msra.mxu0 %v31
  %817 = vmatprep.subr.mxu0 0.0
  %818 = vmatpush1.msra.mxu0 %v32
  %819 = vmatprep.subr.mxu0 0.0
  %820 = vmatpush1.msra.mxu0 %v33
  %821 = vmatprep.subr.mxu0 0.0
  %822 = vmatpush1.msra.mxu0 %v34
  %823 = vmatprep.subr.mxu0 0.0
  %824 = vmatpush1.msra.mxu0 %v35
  %825 = vmatprep.subr.mxu0 0.0
  %826 = vmatpush1.msra.mxu0 %v36
  %827 = vmatprep.subr.mxu0 0.0
  %828 = vmatpush1.msra.mxu0 %v37
  %829 = vmatprep.subr.mxu0 0.0
  %830 = vmatpush1.msra.mxu0 %v38
  %831 = vmatprep.subr.mxu0 0.0
  %832 = vmatpush1.msra.mxu0 %v39
  %833 = vmatprep.subr.mxu0 0.0
  %834 = vmatpush1.msra.mxu0 %v40
  %835 = vmatprep.subr.mxu0 0.0
  %836 = vmatpush1.msra.mxu0 %v41
  %837 = vmatprep.subr.mxu0 0.0
  %838 = vmatpush1.msra.mxu0 %v42
  %839 = vmatprep.subr.mxu0 0.0
  %840 = vmatpush1.msra.mxu0 %v43
  %841 = vmatprep.subr.mxu0 0.0
  %842 = vmatpush1.msra.mxu0 %v44
  %843 = vmatprep.subr.mxu0 0.0
  %844 = vmatpush1.msra.mxu0 %v45
  %845 = vmatprep.subr.mxu0 0.0
  %846 = vmatpush1.msra.mxu0 %v46
  %847 = vmatprep.subr.mxu0 0.0
  %848 = vmatpush1.msra.mxu0 %v47
  %849 = vmatprep.subr.mxu0 0.0
  %850 = vmatpush1.msra.mxu0 %v48
  %851 = vmatprep.subr.mxu0 0.0
  %852 = vmatpush1.msra.mxu0 %v49
  %853 = vmatprep.subr.mxu0 0.0
  %854 = vmatpush1.msra.mxu0 %v50
  %855 = vmatprep.subr.mxu0 0.0
  %856 = vmatpush1.msra.mxu0 %v51
  %857 = vmatprep.subr.mxu0 0.0
  %858 = vmatpush1.msra.mxu0 %v52
  %859 = vmatprep.subr.mxu0 0.0
  %860 = vmatpush1.msra.mxu0 %v53
  %861 = vmatprep.subr.mxu0 0.0
  %862 = vmatpush1.msra.mxu0 %v54
  %863 = vmatprep.mubr.f32.mxu0 %v772
  %864 = vmatmul.mubr.f32.gmra.mrb[0].mxu0 %v771
  %v865 = vpop.f32.mrb[0].mxu0
  %v866 = vadd.f32 0.0, %v865
  %v867 = vpop.f32.mrb[0].mxu0
  %868 = vmatprep.mubr.f32.mxu0 %v776
  %869 = vmatmul.mubr.f32.gmra.mrb[0].mxu0 %v775
  %v870 = vpop.f32.mrb[0].mxu0
  %v871 = vadd.f32 0.0, %v870
  %v872 = vpop.f32.mrb[0].mxu0
  %873 = vmatprep.mubr.f32.mxu0 %v780
  %874 = vmatmul.mubr.f32.gmra.mrb[0].mxu0 %v779
  %v875 = vpop.f32.mrb[0].mxu0
  %v876 = vadd.f32 0.0, %v875
  %v877 = vpop.f32.mrb[0].mxu0
  %878 = vmatprep.mubr.f32.mxu0 %v784
  %879 = vmatmul.mubr.f32.gmra.mrb[0].mxu0 %v783
  %v880 = vpop.f32.mrb[0].mxu0
  %v881 = vadd.f32 0.0, %v880
  %v882 = vpop.f32.mrb[0].mxu0
  %883 = vmatprep.mubr.f32.mxu0 %v788
  %884 = vmatmul.mubr.f32.gmra.mrb[0].mxu0 %v787
  %v885 = vpop.f32.mrb[0].mxu0
  %v886 = vadd.f32 0.0, %v885
  %v887 = vpop.f32.mrb[0].mxu0
  %888 = vmatprep.mubr.f32.mxu0 %v792
  %889 = vmatmul.mubr.f32.gmra.mrb[0].mxu0 %v791
  %v890 = vpop.f32.mrb[0].mxu0
  %v891 = vadd.f32 0.0, %v890
  %v892 = vpop.f32.mrb[0].mxu0
  %893 = vmatprep.mubr.f32.mxu0 %v796
  %894 = vmatmul.mubr.f32.gmra.mrb[0].mxu0 %v795
  %v895 = vpop.f32.mrb[0].mxu0
  %v896 = vadd.f32 0.0, %v895
  %v897 = vpop.f32.mrb[0].mxu0
  %898 = vdwg.mxu0
  %899 = vmatprep.subr.mxu0 0.0
  %900 = vmatpush1.msra.mxu0 %v55
  %901 = vmatprep.subr.mxu0 0.0
  %902 = vmatpush1.msra.mxu0 %v56
  %903 = vmatprep.subr.mxu0 0.0
  %904 = vmatpush1.msra.mxu0 %v57
  %905 = vmatprep.subr.mxu0 0.0
  %906 = vmatpush1.msra.mxu0 %v58
  %907 = vmatprep.subr.mxu0 0.0
  %908 = vmatpush1.msra.mxu0 %v59
  %909 = vmatprep.subr.mxu0 0.0
  %910 = vmatpush1.msra.mxu0 %v60
  %911 = vmatprep.subr.mxu0 0.0
  %912 = vmatpush1.msra.mxu0 %v61
  %913 = vmatprep.subr.mxu0 0.0
  %914 = vmatpush1.msra.mxu0 %v62
  %915 = vmatprep.subr.mxu0 0.0
  %916 = vmatpush1.msra.mxu0 %v63
  %917 = vmatprep.subr.mxu0 0.0
  %918 = vmatpush1.msra.mxu0 %v64
  %919 = vmatprep.subr.mxu0 0.0
  %920 = vmatpush1.msra.mxu0 %v65
  %921 = vmatprep.subr.mxu0 0.0
  %922 = vmatpush1.msra.mxu0 %v66
  %923 = vmatprep.subr.mxu0 0.0
  %924 = vmatpush1.msra.mxu0 %v67
  %925 = vmatprep.subr.mxu0 0.0
  %926 = vmatpush1.msra.mxu0 %v68
  %927 = vmatprep.subr.mxu0 0.0
  %928 = vmatpush1.msra.mxu0 %v69
  %929 = vmatprep.subr.mxu0 0.0
  %930 = vmatpush1.msra.mxu0 %v70
  %931 = vmatprep.subr.mxu0 0.0
  %932 = vmatpush1.msra.mxu0 %v71
  %933 = vmatprep.subr.mxu0 0.0
  %934 = vmatpush1.msra.mxu0 %v72
  %935 = vmatprep.subr.mxu0 0.0
  %936 = vmatpush1.msra.mxu0 %v73
  %937 = vmatprep.subr.mxu0 0.0
  %938 = vmatpush1.msra.mxu0 %v74
  %939 = vmatprep.subr.mxu0 0.0
  %940 = vmatpush1.msra.mxu0 %v75
  %941 = vmatprep.subr.mxu0 0.0
  %942 = vmatpush1.msra.mxu0 %v76
  %943 = vmatprep.subr.mxu0 0.0
  %944 = vmatpush1.msra.mxu0 %v77
  %945 = vmatprep.subr.mxu0 0.0
  %946 = vmatpush1.msra.mxu0 %v78
  %947 = vmatprep.subr.mxu0 0.0
  %948 = vmatpush1.msra.mxu0 %v79
  %949 = vmatprep.subr.mxu0 0.0
  %950 = vmatpush1.msra.mxu0 %v80
  %951 = vmatprep.subr.mxu0 0.0
  %952 = vmatpush1.msra.mxu0 %v81
  %953 = vmatprep.subr.mxu0 0.0
  %954 = vmatpush1.msra.mxu0 %v82
  %955 = vmatprep.subr.mxu0 0.0
  %956 = vmatpush1.msra.mxu0 %v83
  %957 = vmatprep.subr.mxu0 0.0
  %958 = vmatpush1.msra.mxu0 %v84
  %959 = vmatprep.subr.mxu0 0.0
  %960 = vmatpush1.msra.mxu0 %v85
  %961 = vmatprep.subr.mxu0 0.0
  %962 = vmatpush1.msra.mxu0 %v86
  %963 = vmatprep.mubr.f32.mxu0 %v774
  %964 = vmatmul.mubr.f32.gmra.mrb[0].mxu0 %v773
  %v965 = vpop.f32.mrb[0].mxu0
  %v966 = vadd.f32 %v866, %v965
  %v967 = vpop.f32.mrb[0].mxu0
  %968 = vmatprep.mubr.f32.mxu0 %v778
  %969 = vmatmul.mubr.f32.gmra.mrb[0].mxu0 %v777
  %v970 = vpop.f32.mrb[0].mxu0
  %v971 = vadd.f32 %v871, %v970
  %v972 = vpop.f32.mrb[0].mxu0
  %973 = vmatprep.mubr.f32.mxu0 %v782
  %974 = vmatmul.mubr.f32.gmra.mrb[0].mxu0 %v781
  %v975 = vpop.f32.mrb[0].mxu0
  %v976 = vadd.f32 %v876, %v975
  %v977 = vpop.f32.mrb[0].mxu0
  %978 = vmatprep.mubr.f32.mxu0 %v786
  %979 = vmatmul.mubr.f32.gmra.mrb[0].mxu0 %v785
  %v980 = vpop.f32.mrb[0].mxu0
  %v981 = vadd.f32 %v881, %v980
  %v982 = vpop.f32.mrb[0].mxu0
  %983 = vmatprep.mubr.f32.mxu0 %v790
  %984 = vmatmul.mubr.f32.gmra.mrb[0].mxu0 %v789
  %v985 = vpop.f32.mrb[0].mxu0
  %v986 = vadd.f32 %v886, %v985
  %v987 = vpop.f32.mrb[0].mxu0
  %988 = vmatprep.mubr.f32.mxu0 %v794
  %989 = vmatmul.mubr.f32.gmra.mrb[0].mxu0 %v793
  %v990 = vpop.f32.mrb[0].mxu0
  %v991 = vadd.f32 %v891, %v990
  %v992 = vpop.f32.mrb[0].mxu0
  %993 = vmatprep.mubr.f32.mxu0 %v798
  %994 = vmatmul.mubr.f32.gmra.mrb[0].mxu0 %v797
  %v995 = vpop.f32.mrb[0].mxu0
  %v996 = vadd.f32 %v896, %v995
  %v997 = vpop.f32.mrb[0].mxu0
  %998 = vdwg.mxu0
  %v999 = vmax.f32 %v282, %v510
  %v1000 = vmax.f32 %v287, %v515
  %v1001 = vmax.f32 %v292, %v520
  %v1002 = vmax.f32 %v297, %v525
  %v1003 = vmax.f32 %v302, %v530
  %v1004 = vmax.f32 %v307, %v535
  %v1005 = vmax.f32 %v312, %v540
  %v1006 = vmax.f32 %v738, %v966
  %v1007 = vmax.f32 %v743, %v971
  %v1008 = vmax.f32 %v748, %v976
  %v1009 = vmax.f32 %v753, %v981
  %v1010 = vmax.f32 %v758, %v986
  %v1011 = vmax.f32 %v763, %v991
  %v1012 = vmax.f32 %v768, %v996
  %v1013 = vmax.f32 %v999, %v1006
  %v1014 = vmax.f32 %v1000, %v1007
  %v1015 = vmax.f32 %v1001, %v1008
  %v1016 = vmax.f32 %v1002, %v1009
  %v1017 = vmax.f32 %v1003, %v1010
  %v1018 = vmax.f32 %v1004, %v1011
  %v1019 = vmax.f32 %v1005, %v1012
  %v1020 = vld [vmem:[%s5] sm:$0x1]
  %v1022 = vlaneseq
  %v1023 = vshrl.u32 %v1022, 7
  %v1024 = vsub.s32 0, %v1023
  %v1025 = vrot.slane %v1020, %v1024
  %v1027 = vadd.f32 %v1013, %v1025
  %v1028 = vadd.f32 %v1014, %v1025
  %v1029 = vadd.f32 %v1015, %v1025
  %v1030 = vadd.f32 %v1016, %v1025
  %v1031 = vadd.f32 %v1017, %v1025
  %v1032 = vadd.f32 %v1018, %v1025
  %v1033 = vadd.f32 %v1019, %v1025
  %v1034 = vmax.f32 %v1027, 0.0
  %v1035 = vmax.f32 %v1028, 0.0
  %v1036 = vmax.f32 %v1029, 0.0
  %v1037 = vmax.f32 %v1030, 0.0
  %v1038 = vmax.f32 %v1031, 0.0
  %v1039 = vmax.f32 %v1032, 0.0
  %v1040 = vmax.f32 %v1033, 0.0
  %1041 = vst [vmem:[%s6] sm:$0xff] %v1034
  %1042 = vst [vmem:[%s6 + $0x8] sm:$0xff] %v1035
  %1043 = vst [vmem:[%s6 + $0x10] sm:$0xff] %v1036
  %1044 = vst [vmem:[%s6 + $0x18] sm:$0xff] %v1037
  %1045 = vst [vmem:[%s6 + $0x20] sm:$0xff] %v1038
  %1046 = vst [vmem:[%s6 + $0x28] sm:$0xff] %v1039
  %1047 = vst [vmem:[%s6 + $0x30] sm:$0x3] %v1040
  // Predicated region
  $region26: #{cnn_target_forward.4} parent=0 // pred_check
    _
  $region27: #{cnn_target_forward.4} parent=0 // pred_check_branch
    %1049 = sbr.rel (0) target = $region29
  $region28: #{cnn_target_forward.4} parent=0 // pred_region
    _
  $region29: #{cnn_target_forward.4} parent=0 // pred_fallthru
    _
  // Predicated region
  $region30: #{cnn_target_forward.4} parent=0 // pred_check
    _
  $region31: #{cnn_target_forward.4} parent=0 // pred_check_branch
    %1051 = sbr.rel (0) target = $region33
  $region32: #{cnn_target_forward.4} parent=0 // pred_region
    _
  $region33: #{cnn_target_forward.4} parent=0 // pred_fallthru
    _

// kernel: cnn_target_forward.5
$region0: #{cnn_target_forward.5}
  #allocation0 [shape = 'u32[]', space=smem, size = 0x4, offset = 0x4, fixed_abs, tag = 'smem constant byte address 0x4 - core index']
  #allocation1 [shape = 'u32[144,128]{1,0:T(1,128)}', space=vmem, size = 0x12000, scoped, tag = 'internal scratch']
  %s0 = inlined_call_operand.vmem [shape: f32[2,3200], index: 0, kind: input, shape index: {}]
  %s1 = inlined_call_operand.vmem [shape: f32[3200,128], index: 1, kind: input, shape index: {}]
  %s2 = inlined_call_operand.vmem [shape: f32[1,128], index: 2, kind: input, shape index: {}]
  %s3 = inlined_call_operand.vmem [shape: f32[128,128], index: 3, kind: input, shape index: {}]
  %s4 = inlined_call_operand.vmem [shape: f32[1,128], index: 4, kind: input, shape index: {}]
  %s5 = inlined_call_operand.vmem [shape: f32[128,128], index: 5, kind: input, shape index: {}]
  %s6 = inlined_call_operand.vmem [shape: f32[1,128], index: 6, kind: input, shape index: {}]
  %s7 = inlined_call_operand.hbm [shape: f32[2,128], index: 7, kind: output, shape index: {}]
  %s8 = sld [smem:[#allocation0]]
  $region38: #{cnn_target_forward.5} parent=0
    _
  %s10 = ssub.s32 1, %s8
  %s11 = scalar_select 0, %s10, %s8
  $region1: #{cnn_target_forward.5} parent=0
    #allocation2 [shape = 'u8[1024]{0}', space=vmem, size = 0x400, scoped, tag = 'output window, operand 0, single buffered']
    #allocation3 [shape = 's32[1]{0}', space=sflag, size = 0x4, scoped, tag = 'scoped memory for cnn_target_forward.5']
    %12 = vsyncpa [#allocation3], 0
    // Predicated region
    $region2: #{cnn_target_forward.5} parent=1 // pred_check
      _
    $region3: #{cnn_target_forward.5} parent=1 // pred_check_branch
      %14 = sbr.rel (0) target = $region5
    $region4: #{cnn_target_forward.5} parent=1 // pred_region
      _
    $region5: #{cnn_target_forward.5} parent=1 // pred_fallthru
      _
    // Predicated region
    $region6: #{cnn_target_forward.5} parent=1 // pred_check
      _
    $region7: #{cnn_target_forward.5} parent=1 // pred_check_branch
      %16 = sbr.rel (0) target = $region9
    $region8: #{cnn_target_forward.5} parent=1 // pred_region
      _
    $region9: #{cnn_target_forward.5} parent=1 // pred_fallthru
      _
    // Predicated region
    $region10: #{cnn_target_forward.5} parent=1 // pred_check
      _
    $region11: #{cnn_target_forward.5} parent=1 // pred_check_branch
      %18 = sbr.rel (0) target = $region13
    $region12: #{cnn_target_forward.5} parent=1 // pred_region
      _
    $region13: #{cnn_target_forward.5} parent=1 // pred_fallthru
      _
    // Predicated region
    $region14: #{cnn_target_forward.5} parent=1 // pred_check
      _
    $region15: #{cnn_target_forward.5} parent=1 // pred_check_branch
      %20 = sbr.rel (0) target = $region17
    $region16: #{cnn_target_forward.5} parent=1 // pred_region
      _
    $region17: #{cnn_target_forward.5} parent=1 // pred_fallthru
      _
    // Predicated region
    $region18: #{cnn_target_forward.5} parent=1 // pred_check
      _
    $region19: #{cnn_target_forward.5} parent=1 // pred_check_branch
      %22 = sbr.rel (0) target = $region21
    $region20: #{cnn_target_forward.5} parent=1 // pred_region
      _
    $region21: #{cnn_target_forward.5} parent=1 // pred_fallthru
      _
    // Predicated region
    $region22: #{cnn_target_forward.5} parent=1 // pred_check
      _
    $region23: #{cnn_target_forward.5} parent=1 // pred_check_branch
      %24 = sbr.rel (0) target = $region25
    $region24: #{cnn_target_forward.5} parent=1 // pred_region
      _
    $region25: #{cnn_target_forward.5} parent=1 // pred_fallthru
      _
    // Predicated region
    $region26: #{cnn_target_forward.5} parent=1 // pred_check
      _
    $region27: #{cnn_target_forward.5} parent=1 // pred_check_branch
      %26 = sbr.rel (0) target = $region29
    $region28: #{cnn_target_forward.5} parent=1 // pred_region
      _
    $region29: #{cnn_target_forward.5} parent=1 // pred_fallthru
      _
    %v27 = vld [vmem:[%s0] sm:$0xff]
    %v28 = vld [vmem:[%s0 + $0x8] sm:$0xff]
    %v29 = vld [vmem:[%s0 + $0x10] sm:$0xff]
    %v30 = vld [vmem:[%s0 + $0x18] sm:$0xff]
    %v31 = vld [vmem:[%s0 + $0x20] sm:$0xff]
    %v32 = vld [vmem:[%s0 + $0x28] sm:$0xff]
    %v33 = vld [vmem:[%s0 + $0x30] sm:$0x3]
    %v34 = vld [vmem:[%s1] sm:$0xff]
    %v35 = vld [vmem:[%s1 + $0x8] sm:$0xff]
    %v36 = vld [vmem:[%s1 + $0x10] sm:$0xff]
    %v37 = vld [vmem:[%s1 + $0x18] sm:$0xff]
    %v38 = vld [vmem:[%s1 + $0x20] sm:$0xff]
    %v39 = vld [vmem:[%s1 + $0x28] sm:$0xff]
    %v40 = vld [vmem:[%s1 + $0x30] sm:$0xff]
    %v41 = vld [vmem:[%s1 + $0x38] sm:$0xff]
    %v42 = vld [vmem:[%s1 + $0x40] sm:$0xff]
    %v43 = vld [vmem:[%s1 + $0x48] sm:$0xff]
    %v44 = vld [vmem:[%s1 + $0x50] sm:$0xff]
    %v45 = vld [vmem:[%s1 + $0x58] sm:$0xff]
    %v46 = vld [vmem:[%s1 + $0x60] sm:$0xff]
    %v47 = vld [vmem:[%s1 + $0x68] sm:$0xff]
    %v48 = vld [vmem:[%s1 + $0x70] sm:$0xff]
    %v49 = vld [vmem:[%s1 + $0x78] sm:$0xff]
    %v50 = vld [vmem:[%s1 + $0x80] sm:$0xff]
    %v51 = vld [vmem:[%s1 + $0x88] sm:$0xff]
    %v52 = vld [vmem:[%s1 + $0x90] sm:$0xff]
    %v53 = vld [vmem:[%s1 + $0x98] sm:$0xff]
    %v54 = vld [vmem:[%s1 + $0xa0] sm:$0xff]
    %v55 = vld [vmem:[%s1 + $0xa8] sm:$0xff]
    %v56 = vld [vmem:[%s1 + $0xb0] sm:$0xff]
    %v57 = vld [vmem:[%s1 + $0xb8] sm:$0xff]
    %v58 = vld [vmem:[%s1 + $0xc0] sm:$0xff]
    %v59 = vld [vmem:[%s1 + $0xc8] sm:$0xff]
    %v60 = vld [vmem:[%s1 + $0xd0] sm:$0xff]
    %v61 = vld [vmem:[%s1 + $0xd8] sm:$0xff]
    %v62 = vld [vmem:[%s1 + $0xe0] sm:$0xff]
    %v63 = vld [vmem:[%s1 + $0xe8] sm:$0xff]
    %v64 = vld [vmem:[%s1 + $0xf0] sm:$0xff]
    %v65 = vld [vmem:[%s1 + $0xf8] sm:$0xff]
    %v66 = vld [vmem:[%s1 + $0x100] sm:$0xff]
    %v67 = vld [vmem:[%s1 + $0x108] sm:$0xff]
    %v68 = vld [vmem:[%s1 + $0x110] sm:$0xff]
    %v69 = vld [vmem:[%s1 + $0x118] sm:$0xff]
    %v70 = vld [vmem:[%s1 + $0x120] sm:$0xff]
    %v71 = vld [vmem:[%s1 + $0x128] sm:$0xff]
    %v72 = vld [vmem:[%s1 + $0x130] sm:$0xff]
    %v73 = vld [vmem:[%s1 + $0x138] sm:$0xff]
    %v74 = vld [vmem:[%s1 + $0x140] sm:$0xff]
    %v75 = vld [vmem:[%s1 + $0x148] sm:$0xff]
    %v76 = vld [vmem:[%s1 + $0x150] sm:$0xff]
    %v77 = vld [vmem:[%s1 + $0x158] sm:$0xff]
    %v78 = vld [vmem:[%s1 + $0x160] sm:$0xff]
    %v79 = vld [vmem:[%s1 + $0x168] sm:$0xff]
    %v80 = vld [vmem:[%s1 + $0x170] sm:$0xff]
    %v81 = vld [vmem:[%s1 + $0x178] sm:$0xff]
    %v82 = vld [vmem:[%s1 + $0x180] sm:$0xff]
    %v83 = vld [vmem:[%s1 + $0x188] sm:$0xff]
    %v84 = vld [vmem:[%s1 + $0x190] sm:$0xff]
    %v85 = vld [vmem:[%s1 + $0x198] sm:$0xff]
    %v86 = vld [vmem:[%s1 + $0x1a0] sm:$0xff]
    %v87 = vld [vmem:[%s1 + $0x1a8] sm:$0xff]
    %v88 = vld [vmem:[%s1 + $0x1b0] sm:$0xff]
    %v89 = vld [vmem:[%s1 + $0x1b8] sm:$0xff]
    %v90 = vld [vmem:[%s1 + $0x1c0] sm:$0xff]
    %v91 = vld [vmem:[%s1 + $0x1c8] sm:$0xff]
    %v92 = vld [vmem:[%s1 + $0x1d0] sm:$0xff]
    %v93 = vld [vmem:[%s1 + $0x1d8] sm:$0xff]
    %v94 = vld [vmem:[%s1 + $0x1e0] sm:$0xff]
    %v95 = vld [vmem:[%s1 + $0x1e8] sm:$0xff]
    %v96 = vld [vmem:[%s1 + $0x1f0] sm:$0xff]
    %v97 = vld [vmem:[%s1 + $0x1f8] sm:$0xff]
    %v98 = vld [vmem:[%s1 + $0x200] sm:$0xff]
    %v99 = vld [vmem:[%s1 + $0x208] sm:$0xff]
    %v100 = vld [vmem:[%s1 + $0x210] sm:$0xff]
    %v101 = vld [vmem:[%s1 + $0x218] sm:$0xff]
    %v102 = vld [vmem:[%s1 + $0x220] sm:$0xff]
    %v103 = vld [vmem:[%s1 + $0x228] sm:$0xff]
    %v104 = vld [vmem:[%s1 + $0x230] sm:$0xff]
    %v105 = vld [vmem:[%s1 + $0x238] sm:$0xff]
    %v106 = vld [vmem:[%s1 + $0x240] sm:$0xff]
    %v107 = vld [vmem:[%s1 + $0x248] sm:$0xff]
    %v108 = vld [vmem:[%s1 + $0x250] sm:$0xff]
    %v109 = vld [vmem:[%s1 + $0x258] sm:$0xff]
    %v110 = vld [vmem:[%s1 + $0x260] sm:$0xff]
    %v111 = vld [vmem:[%s1 + $0x268] sm:$0xff]
    %v112 = vld [vmem:[%s1 + $0x270] sm:$0xff]
    %v113 = vld [vmem:[%s1 + $0x278] sm:$0xff]
    %v114 = vld [vmem:[%s1 + $0x280] sm:$0xff]
    %v115 = vld [vmem:[%s1 + $0x288] sm:$0xff]
    %v116 = vld [vmem:[%s1 + $0x290] sm:$0xff]
    %v117 = vld [vmem:[%s1 + $0x298] sm:$0xff]
    %v118 = vld [vmem:[%s1 + $0x2a0] sm:$0xff]
    %v119 = vld [vmem:[%s1 + $0x2a8] sm:$0xff]
    %v120 = vld [vmem:[%s1 + $0x2b0] sm:$0xff]
    %v121 = vld [vmem:[%s1 + $0x2b8] sm:$0xff]
    %v122 = vld [vmem:[%s1 + $0x2c0] sm:$0xff]
    %v123 = vld [vmem:[%s1 + $0x2c8] sm:$0xff]
    %v124 = vld [vmem:[%s1 + $0x2d0] sm:$0xff]
    %v125 = vld [vmem:[%s1 + $0x2d8] sm:$0xff]
    %v126 = vld [vmem:[%s1 + $0x2e0] sm:$0xff]
    %v127 = vld [vmem:[%s1 + $0x2e8] sm:$0xff]
    %v128 = vld [vmem:[%s1 + $0x2f0] sm:$0xff]
    %v129 = vld [vmem:[%s1 + $0x2f8] sm:$0xff]
    %v130 = vld [vmem:[%s1 + $0x300] sm:$0xff]
    %v131 = vld [vmem:[%s1 + $0x308] sm:$0xff]
    %v132 = vld [vmem:[%s1 + $0x310] sm:$0xff]
    %v133 = vld [vmem:[%s1 + $0x318] sm:$0xff]
    %v134 = vld [vmem:[%s1 + $0x320] sm:$0xff]
    %v135 = vld [vmem:[%s1 + $0x328] sm:$0xff]
    %v136 = vld [vmem:[%s1 + $0x330] sm:$0xff]
    %v137 = vld [vmem:[%s1 + $0x338] sm:$0xff]
    %v138 = vld [vmem:[%s1 + $0x340] sm:$0xff]
    %v139 = vld [vmem:[%s1 + $0x348] sm:$0xff]
    %v140 = vld [vmem:[%s1 + $0x350] sm:$0xff]
    %v141 = vld [vmem:[%s1 + $0x358] sm:$0xff]
    %v142 = vld [vmem:[%s1 + $0x360] sm:$0xff]
    %v143 = vld [vmem:[%s1 + $0x368] sm:$0xff]
    %v144 = vld [vmem:[%s1 + $0x370] sm:$0xff]
    %v145 = vld [vmem:[%s1 + $0x378] sm:$0xff]
    %v146 = vld [vmem:[%s1 + $0x380] sm:$0xff]
    %v147 = vld [vmem:[%s1 + $0x388] sm:$0xff]
    %v148 = vld [vmem:[%s1 + $0x390] sm:$0xff]
    %v149 = vld [vmem:[%s1 + $0x398] sm:$0xff]
    %v150 = vld [vmem:[%s1 + $0x3a0] sm:$0xff]
    %v151 = vld [vmem:[%s1 + $0x3a8] sm:$0xff]
    %v152 = vld [vmem:[%s1 + $0x3b0] sm:$0xff]
    %v153 = vld [vmem:[%s1 + $0x3b8] sm:$0xff]
    %v154 = vld [vmem:[%s1 + $0x3c0] sm:$0xff]
    %v155 = vld [vmem:[%s1 + $0x3c8] sm:$0xff]
    %v156 = vld [vmem:[%s1 + $0x3d0] sm:$0xff]
    %v157 = vld [vmem:[%s1 + $0x3d8] sm:$0xff]
    %v158 = vld [vmem:[%s1 + $0x3e0] sm:$0xff]
    %v159 = vld [vmem:[%s1 + $0x3e8] sm:$0xff]
    %v160 = vld [vmem:[%s1 + $0x3f0] sm:$0xff]
    %v161 = vld [vmem:[%s1 + $0x3f8] sm:$0xff]
    %v162 = vld [vmem:[%s1 + $0x400] sm:$0xff]
    %v163 = vld [vmem:[%s1 + $0x408] sm:$0xff]
    %v164 = vld [vmem:[%s1 + $0x410] sm:$0xff]
    %v165 = vld [vmem:[%s1 + $0x418] sm:$0xff]
    %v166 = vld [vmem:[%s1 + $0x420] sm:$0xff]
    %v167 = vld [vmem:[%s1 + $0x428] sm:$0xff]
    %v168 = vld [vmem:[%s1 + $0x430] sm:$0xff]
    %v169 = vld [vmem:[%s1 + $0x438] sm:$0xff]
    %v170 = vld [vmem:[%s1 + $0x440] sm:$0xff]
    %v171 = vld [vmem:[%s1 + $0x448] sm:$0xff]
    %v172 = vld [vmem:[%s1 + $0x450] sm:$0xff]
    %v173 = vld [vmem:[%s1 + $0x458] sm:$0xff]
    %v174 = vld [vmem:[%s1 + $0x460] sm:$0xff]
    %v175 = vld [vmem:[%s1 + $0x468] sm:$0xff]
    %v176 = vld [vmem:[%s1 + $0x470] sm:$0xff]
    %v177 = vld [vmem:[%s1 + $0x478] sm:$0xff]
    %v178 = vld [vmem:[%s1 + $0x480] sm:$0xff]
    %v179 = vld [vmem:[%s1 + $0x488] sm:$0xff]
    %v180 = vld [vmem:[%s1 + $0x490] sm:$0xff]
    %v181 = vld [vmem:[%s1 + $0x498] sm:$0xff]
    %v182 = vld [vmem:[%s1 + $0x4a0] sm:$0xff]
    %v183 = vld [vmem:[%s1 + $0x4a8] sm:$0xff]
    %v184 = vld [vmem:[%s1 + $0x4b0] sm:$0xff]
    %v185 = vld [vmem:[%s1 + $0x4b8] sm:$0xff]
    %v186 = vld [vmem:[%s1 + $0x4c0] sm:$0xff]
    %v187 = vld [vmem:[%s1 + $0x4c8] sm:$0xff]
    %v188 = vld [vmem:[%s1 + $0x4d0] sm:$0xff]
    %v189 = vld [vmem:[%s1 + $0x4d8] sm:$0xff]
    %v190 = vld [vmem:[%s1 + $0x4e0] sm:$0xff]
    %v191 = vld [vmem:[%s1 + $0x4e8] sm:$0xff]
    %v192 = vld [vmem:[%s1 + $0x4f0] sm:$0xff]
    %v193 = vld [vmem:[%s1 + $0x4f8] sm:$0xff]
    %v194 = vld [vmem:[%s1 + $0x500] sm:$0xff]
    %v195 = vld [vmem:[%s1 + $0x508] sm:$0xff]
    %v196 = vld [vmem:[%s1 + $0x510] sm:$0xff]
    %v197 = vld [vmem:[%s1 + $0x518] sm:$0xff]
    %v198 = vld [vmem:[%s1 + $0x520] sm:$0xff]
    %v199 = vld [vmem:[%s1 + $0x528] sm:$0xff]
    %v200 = vld [vmem:[%s1 + $0x530] sm:$0xff]
    %v201 = vld [vmem:[%s1 + $0x538] sm:$0xff]
    %v202 = vld [vmem:[%s1 + $0x540] sm:$0xff]
    %v203 = vld [vmem:[%s1 + $0x548] sm:$0xff]
    %v204 = vld [vmem:[%s1 + $0x550] sm:$0xff]
    %v205 = vld [vmem:[%s1 + $0x558] sm:$0xff]
    %v206 = vld [vmem:[%s1 + $0x560] sm:$0xff]
    %v207 = vld [vmem:[%s1 + $0x568] sm:$0xff]
    %v208 = vld [vmem:[%s1 + $0x570] sm:$0xff]
    %v209 = vld [vmem:[%s1 + $0x578] sm:$0xff]
    %v210 = vld [vmem:[%s1 + $0x580] sm:$0xff]
    %v211 = vld [vmem:[%s1 + $0x588] sm:$0xff]
    %v212 = vld [vmem:[%s1 + $0x590] sm:$0xff]
    %v213 = vld [vmem:[%s1 + $0x598] sm:$0xff]
    %v214 = vld [vmem:[%s1 + $0x5a0] sm:$0xff]
    %v215 = vld [vmem:[%s1 + $0x5a8] sm:$0xff]
    %v216 = vld [vmem:[%s1 + $0x5b0] sm:$0xff]
    %v217 = vld [vmem:[%s1 + $0x5b8] sm:$0xff]
    %v218 = vld [vmem:[%s1 + $0x5c0] sm:$0xff]
    %v219 = vld [vmem:[%s1 + $0x5c8] sm:$0xff]
    %v220 = vld [vmem:[%s1 + $0x5d0] sm:$0xff]
    %v221 = vld [vmem:[%s1 + $0x5d8] sm:$0xff]
    %v222 = vld [vmem:[%s1 + $0x5e0] sm:$0xff]
    %v223 = vld [vmem:[%s1 + $0x5e8] sm:$0xff]
    %v224 = vld [vmem:[%s1 + $0x5f0] sm:$0xff]
    %v225 = vld [vmem:[%s1 + $0x5f8] sm:$0xff]
    %v226 = vld [vmem:[%s1 + $0x600] sm:$0xff]
    %v227 = vld [vmem:[%s1 + $0x608] sm:$0xff]
    %v228 = vld [vmem:[%s1 + $0x610] sm:$0xff]
    %v229 = vld [vmem:[%s1 + $0x618] sm:$0xff]
    %v230 = vld [vmem:[%s1 + $0x620] sm:$0xff]
    %v231 = vld [vmem:[%s1 + $0x628] sm:$0xff]
    %v232 = vld [vmem:[%s1 + $0x630] sm:$0xff]
    %v233 = vld [vmem:[%s1 + $0x638] sm:$0xff]
    %v234 = vld [vmem:[%s1 + $0x640] sm:$0xff]
    %v235 = vld [vmem:[%s1 + $0x648] sm:$0xff]
    %v236 = vld [vmem:[%s1 + $0x650] sm:$0xff]
    %v237 = vld [vmem:[%s1 + $0x658] sm:$0xff]
    %v238 = vld [vmem:[%s1 + $0x660] sm:$0xff]
    %v239 = vld [vmem:[%s1 + $0x668] sm:$0xff]
    %v240 = vld [vmem:[%s1 + $0x670] sm:$0xff]
    %v241 = vld [vmem:[%s1 + $0x678] sm:$0xff]
    %v242 = vld [vmem:[%s1 + $0x680] sm:$0xff]
    %v243 = vld [vmem:[%s1 + $0x688] sm:$0xff]
    %v244 = vld [vmem:[%s1 + $0x690] sm:$0xff]
    %v245 = vld [vmem:[%s1 + $0x698] sm:$0xff]
    %v246 = vld [vmem:[%s1 + $0x6a0] sm:$0xff]
    %v247 = vld [vmem:[%s1 + $0x6a8] sm:$0xff]
    %v248 = vld [vmem:[%s1 + $0x6b0] sm:$0xff]
    %v249 = vld [vmem:[%s1 + $0x6b8] sm:$0xff]
    %v250 = vld [vmem:[%s1 + $0x6c0] sm:$0xff]
    %v251 = vld [vmem:[%s1 + $0x6c8] sm:$0xff]
    %v252 = vld [vmem:[%s1 + $0x6d0] sm:$0xff]
    %v253 = vld [vmem:[%s1 + $0x6d8] sm:$0xff]
    %v254 = vld [vmem:[%s1 + $0x6e0] sm:$0xff]
    %v255 = vld [vmem:[%s1 + $0x6e8] sm:$0xff]
    %v256 = vld [vmem:[%s1 + $0x6f0] sm:$0xff]
    %v257 = vld [vmem:[%s1 + $0x6f8] sm:$0xff]
    %v258 = vld [vmem:[%s1 + $0x700] sm:$0xff]
    %v259 = vld [vmem:[%s1 + $0x708] sm:$0xff]
    %v260 = vld [vmem:[%s1 + $0x710] sm:$0xff]
    %v261 = vld [vmem:[%s1 + $0x718] sm:$0xff]
    %v262 = vld [vmem:[%s1 + $0x720] sm:$0xff]
    %v263 = vld [vmem:[%s1 + $0x728] sm:$0xff]
    %v264 = vld [vmem:[%s1 + $0x730] sm:$0xff]
    %v265 = vld [vmem:[%s1 + $0x738] sm:$0xff]
    %v266 = vld [vmem:[%s1 + $0x740] sm:$0xff]
    %v267 = vld [vmem:[%s1 + $0x748] sm:$0xff]
    %v268 = vld [vmem:[%s1 + $0x750] sm:$0xff]
    %v269 = vld [vmem:[%s1 + $0x758] sm:$0xff]
    %v270 = vld [vmem:[%s1 + $0x760] sm:$0xff]
    %v271 = vld [vmem:[%s1 + $0x768] sm:$0xff]
    %v272 = vld [vmem:[%s1 + $0x770] sm:$0xff]
    %v273 = vld [vmem:[%s1 + $0x778] sm:$0xff]
    %v274 = vld [vmem:[%s1 + $0x780] sm:$0xff]
    %v275 = vld [vmem:[%s1 + $0x788] sm:$0xff]
    %v276 = vld [vmem:[%s1 + $0x790] sm:$0xff]
    %v277 = vld [vmem:[%s1 + $0x798] sm:$0xff]
    %v278 = vld [vmem:[%s1 + $0x7a0] sm:$0xff]
    %v279 = vld [vmem:[%s1 + $0x7a8] sm:$0xff]
    %v280 = vld [vmem:[%s1 + $0x7b0] sm:$0xff]
    %v281 = vld [vmem:[%s1 + $0x7b8] sm:$0xff]
    %v282 = vld [vmem:[%s1 + $0x7c0] sm:$0xff]
    %v283 = vld [vmem:[%s1 + $0x7c8] sm:$0xff]
    %v284 = vld [vmem:[%s1 + $0x7d0] sm:$0xff]
    %v285 = vld [vmem:[%s1 + $0x7d8] sm:$0xff]
    %v286 = vld [vmem:[%s1 + $0x7e0] sm:$0xff]
    %v287 = vld [vmem:[%s1 + $0x7e8] sm:$0xff]
    %v288 = vld [vmem:[%s1 + $0x7f0] sm:$0xff]
    %v289 = vld [vmem:[%s1 + $0x7f8] sm:$0xff]
    %v290 = vld [vmem:[%s1 + $0x800] sm:$0xff]
    %v291 = vld [vmem:[%s1 + $0x808] sm:$0xff]
    %v292 = vld [vmem:[%s1 + $0x810] sm:$0xff]
    %v293 = vld [vmem:[%s1 + $0x818] sm:$0xff]
    %v294 = vld [vmem:[%s1 + $0x820] sm:$0xff]
    %v295 = vld [vmem:[%s1 + $0x828] sm:$0xff]
    %v296 = vld [vmem:[%s1 + $0x830] sm:$0xff]
    %v297 = vld [vmem:[%s1 + $0x838] sm:$0xff]
    %v298 = vld [vmem:[%s1 + $0x840] sm:$0xff]
    %v299 = vld [vmem:[%s1 + $0x848] sm:$0xff]
    %v300 = vld [vmem:[%s1 + $0x850] sm:$0xff]
    %v301 = vld [vmem:[%s1 + $0x858] sm:$0xff]
    %v302 = vld [vmem:[%s1 + $0x860] sm:$0xff]
    %v303 = vld [vmem:[%s1 + $0x868] sm:$0xff]
    %v304 = vld [vmem:[%s1 + $0x870] sm:$0xff]
    %v305 = vld [vmem:[%s1 + $0x878] sm:$0xff]
    %v306 = vld [vmem:[%s1 + $0x880] sm:$0xff]
    %v307 = vld [vmem:[%s1 + $0x888] sm:$0xff]
    %v308 = vld [vmem:[%s1 + $0x890] sm:$0xff]
    %v309 = vld [vmem:[%s1 + $0x898] sm:$0xff]
    %v310 = vld [vmem:[%s1 + $0x8a0] sm:$0xff]
    %v311 = vld [vmem:[%s1 + $0x8a8] sm:$0xff]
    %v312 = vld [vmem:[%s1 + $0x8b0] sm:$0xff]
    %v313 = vld [vmem:[%s1 + $0x8b8] sm:$0xff]
    %v314 = vld [vmem:[%s1 + $0x8c0] sm:$0xff]
    %v315 = vld [vmem:[%s1 + $0x8c8] sm:$0xff]
    %v316 = vld [vmem:[%s1 + $0x8d0] sm:$0xff]
    %v317 = vld [vmem:[%s1 + $0x8d8] sm:$0xff]
    %v318 = vld [vmem:[%s1 + $0x8e0] sm:$0xff]
    %v319 = vld [vmem:[%s1 + $0x8e8] sm:$0xff]
    %v320 = vld [vmem:[%s1 + $0x8f0] sm:$0xff]
    %v321 = vld [vmem:[%s1 + $0x8f8] sm:$0xff]
    %v322 = vld [vmem:[%s1 + $0x900] sm:$0xff]
    %v323 = vld [vmem:[%s1 + $0x908] sm:$0xff]
    %v324 = vld [vmem:[%s1 + $0x910] sm:$0xff]
    %v325 = vld [vmem:[%s1 + $0x918] sm:$0xff]
    %v326 = vld [vmem:[%s1 + $0x920] sm:$0xff]
    %v327 = vld [vmem:[%s1 + $0x928] sm:$0xff]
    %v328 = vld [vmem:[%s1 + $0x930] sm:$0xff]
    %v329 = vld [vmem:[%s1 + $0x938] sm:$0xff]
    %v330 = vld [vmem:[%s1 + $0x940] sm:$0xff]
    %v331 = vld [vmem:[%s1 + $0x948] sm:$0xff]
    %v332 = vld [vmem:[%s1 + $0x950] sm:$0xff]
    %v333 = vld [vmem:[%s1 + $0x958] sm:$0xff]
    %v334 = vld [vmem:[%s1 + $0x960] sm:$0xff]
    %v335 = vld [vmem:[%s1 + $0x968] sm:$0xff]
    %v336 = vld [vmem:[%s1 + $0x970] sm:$0xff]
    %v337 = vld [vmem:[%s1 + $0x978] sm:$0xff]
    %v338 = vld [vmem:[%s1 + $0x980] sm:$0xff]
    %v339 = vld [vmem:[%s1 + $0x988] sm:$0xff]
    %v340 = vld [vmem:[%s1 + $0x990] sm:$0xff]
    %v341 = vld [vmem:[%s1 + $0x998] sm:$0xff]
    %v342 = vld [vmem:[%s1 + $0x9a0] sm:$0xff]
    %v343 = vld [vmem:[%s1 + $0x9a8] sm:$0xff]
    %v344 = vld [vmem:[%s1 + $0x9b0] sm:$0xff]
    %v345 = vld [vmem:[%s1 + $0x9b8] sm:$0xff]
    %v346 = vld [vmem:[%s1 + $0x9c0] sm:$0xff]
    %v347 = vld [vmem:[%s1 + $0x9c8] sm:$0xff]
    %v348 = vld [vmem:[%s1 + $0x9d0] sm:$0xff]
    %v349 = vld [vmem:[%s1 + $0x9d8] sm:$0xff]
    %v350 = vld [vmem:[%s1 + $0x9e0] sm:$0xff]
    %v351 = vld [vmem:[%s1 + $0x9e8] sm:$0xff]
    %v352 = vld [vmem:[%s1 + $0x9f0] sm:$0xff]
    %v353 = vld [vmem:[%s1 + $0x9f8] sm:$0xff]
    %v354 = vld [vmem:[%s1 + $0xa00] sm:$0xff]
    %v355 = vld [vmem:[%s1 + $0xa08] sm:$0xff]
    %v356 = vld [vmem:[%s1 + $0xa10] sm:$0xff]
    %v357 = vld [vmem:[%s1 + $0xa18] sm:$0xff]
    %v358 = vld [vmem:[%s1 + $0xa20] sm:$0xff]
    %v359 = vld [vmem:[%s1 + $0xa28] sm:$0xff]
    %v360 = vld [vmem:[%s1 + $0xa30] sm:$0xff]
    %v361 = vld [vmem:[%s1 + $0xa38] sm:$0xff]
    %v362 = vld [vmem:[%s1 + $0xa40] sm:$0xff]
    %v363 = vld [vmem:[%s1 + $0xa48] sm:$0xff]
    %v364 = vld [vmem:[%s1 + $0xa50] sm:$0xff]
    %v365 = vld [vmem:[%s1 + $0xa58] sm:$0xff]
    %v366 = vld [vmem:[%s1 + $0xa60] sm:$0xff]
    %v367 = vld [vmem:[%s1 + $0xa68] sm:$0xff]
    %v368 = vld [vmem:[%s1 + $0xa70] sm:$0xff]
    %v369 = vld [vmem:[%s1 + $0xa78] sm:$0xff]
    %v370 = vld [vmem:[%s1 + $0xa80] sm:$0xff]
    %v371 = vld [vmem:[%s1 + $0xa88] sm:$0xff]
    %v372 = vld [vmem:[%s1 + $0xa90] sm:$0xff]
    %v373 = vld [vmem:[%s1 + $0xa98] sm:$0xff]
    %v374 = vld [vmem:[%s1 + $0xaa0] sm:$0xff]
    %v375 = vld [vmem:[%s1 + $0xaa8] sm:$0xff]
    %v376 = vld [vmem:[%s1 + $0xab0] sm:$0xff]
    %v377 = vld [vmem:[%s1 + $0xab8] sm:$0xff]
    %v378 = vld [vmem:[%s1 + $0xac0] sm:$0xff]
    %v379 = vld [vmem:[%s1 + $0xac8] sm:$0xff]
    %v380 = vld [vmem:[%s1 + $0xad0] sm:$0xff]
    %v381 = vld [vmem:[%s1 + $0xad8] sm:$0xff]
    %v382 = vld [vmem:[%s1 + $0xae0] sm:$0xff]
    %v383 = vld [vmem:[%s1 + $0xae8] sm:$0xff]
    %v384 = vld [vmem:[%s1 + $0xaf0] sm:$0xff]
    %v385 = vld [vmem:[%s1 + $0xaf8] sm:$0xff]
    %v386 = vld [vmem:[%s1 + $0xb00] sm:$0xff]
    %v387 = vld [vmem:[%s1 + $0xb08] sm:$0xff]
    %v388 = vld [vmem:[%s1 + $0xb10] sm:$0xff]
    %v389 = vld [vmem:[%s1 + $0xb18] sm:$0xff]
    %v390 = vld [vmem:[%s1 + $0xb20] sm:$0xff]
    %v391 = vld [vmem:[%s1 + $0xb28] sm:$0xff]
    %v392 = vld [vmem:[%s1 + $0xb30] sm:$0xff]
    %v393 = vld [vmem:[%s1 + $0xb38] sm:$0xff]
    %v394 = vld [vmem:[%s1 + $0xb40] sm:$0xff]
    %v395 = vld [vmem:[%s1 + $0xb48] sm:$0xff]
    %v396 = vld [vmem:[%s1 + $0xb50] sm:$0xff]
    %v397 = vld [vmem:[%s1 + $0xb58] sm:$0xff]
    %v398 = vld [vmem:[%s1 + $0xb60] sm:$0xff]
    %v399 = vld [vmem:[%s1 + $0xb68] sm:$0xff]
    %v400 = vld [vmem:[%s1 + $0xb70] sm:$0xff]
    %v401 = vld [vmem:[%s1 + $0xb78] sm:$0xff]
    %v402 = vld [vmem:[%s1 + $0xb80] sm:$0xff]
    %v403 = vld [vmem:[%s1 + $0xb88] sm:$0xff]
    %v404 = vld [vmem:[%s1 + $0xb90] sm:$0xff]
    %v405 = vld [vmem:[%s1 + $0xb98] sm:$0xff]
    %v406 = vld [vmem:[%s1 + $0xba0] sm:$0xff]
    %v407 = vld [vmem:[%s1 + $0xba8] sm:$0xff]
    %v408 = vld [vmem:[%s1 + $0xbb0] sm:$0xff]
    %v409 = vld [vmem:[%s1 + $0xbb8] sm:$0xff]
    %v410 = vld [vmem:[%s1 + $0xbc0] sm:$0xff]
    %v411 = vld [vmem:[%s1 + $0xbc8] sm:$0xff]
    %v412 = vld [vmem:[%s1 + $0xbd0] sm:$0xff]
    %v413 = vld [vmem:[%s1 + $0xbd8] sm:$0xff]
    %v414 = vld [vmem:[%s1 + $0xbe0] sm:$0xff]
    %v415 = vld [vmem:[%s1 + $0xbe8] sm:$0xff]
    %v416 = vld [vmem:[%s1 + $0xbf0] sm:$0xff]
    %v417 = vld [vmem:[%s1 + $0xbf8] sm:$0xff]
    %v418 = vld [vmem:[%s1 + $0xc00] sm:$0xff]
    %v419 = vld [vmem:[%s1 + $0xc08] sm:$0xff]
    %v420 = vld [vmem:[%s1 + $0xc10] sm:$0xff]
    %v421 = vld [vmem:[%s1 + $0xc18] sm:$0xff]
    %v422 = vld [vmem:[%s1 + $0xc20] sm:$0xff]
    %v423 = vld [vmem:[%s1 + $0xc28] sm:$0xff]
    %v424 = vld [vmem:[%s1 + $0xc30] sm:$0xff]
    %v425 = vld [vmem:[%s1 + $0xc38] sm:$0xff]
    %v426 = vld [vmem:[%s1 + $0xc40] sm:$0xff]
    %v427 = vld [vmem:[%s1 + $0xc48] sm:$0xff]
    %v428 = vld [vmem:[%s1 + $0xc50] sm:$0xff]
    %v429 = vld [vmem:[%s1 + $0xc58] sm:$0xff]
    %v430 = vld [vmem:[%s1 + $0xc60] sm:$0xff]
    %v431 = vld [vmem:[%s1 + $0xc68] sm:$0xff]
    %v432 = vld [vmem:[%s1 + $0xc70] sm:$0xff]
    %v433 = vld [vmem:[%s1 + $0xc78] sm:$0xff]
    %v434 = vld [vmem:[%s2] sm:$0x1]
    %v436 = vlaneseq
    %v437 = vshrl.u32 %v436, 7
    %v438 = vsub.s32 0, %v437
    %v439 = vrot.slane %v434, %v438
    %v448 = vcombine.high %v27, %v27
    %v450 = vunpack.c.l.s4 1983009808
    %v451 = vunpack.c.0.s8 %v450
    %v452 = vlaneseq
    %v453 = vshrl.u32 %v452, 7
    %v454 = vsub.s32 %v451, %v453
    %v455 = vrot.slane %v27, %v454
    %v457 = vunpack.c.l.s4 1983009808
    %v458 = vunpack.c.0.s8 %v457
    %v459 = vlaneseq
    %v460 = vshrl.u32 %v459, 7
    %v461 = vsub.s32 %v458, %v460
    %v462 = vrot.slane %v448, %v461
    %v463 = vcombine.high %v455, %v455
    %v464 = vcombine.high %v462, %v462
    %v465 = vcombine.high %v28, %v28
    %v467 = vunpack.c.l.s4 1983009808
    %v468 = vunpack.c.0.s8 %v467
    %v469 = vlaneseq
    %v470 = vshrl.u32 %v469, 7
    %v471 = vsub.s32 %v468, %v470
    %v472 = vrot.slane %v28, %v471
    %v474 = vunpack.c.l.s4 1983009808
    %v475 = vunpack.c.0.s8 %v474
    %v476 = vlaneseq
    %v477 = vshrl.u32 %v476, 7
    %v478 = vsub.s32 %v475, %v477
    %v479 = vrot.slane %v465, %v478
    %v480 = vcombine.high %v472, %v472
    %v481 = vcombine.high %v479, %v479
    %v482 = vcombine.high %v29, %v29
    %v484 = vunpack.c.l.s4 1983009808
    %v485 = vunpack.c.0.s8 %v484
    %v486 = vlaneseq
    %v487 = vshrl.u32 %v486, 7
    %v488 = vsub.s32 %v485, %v487
    %v489 = vrot.slane %v29, %v488
    %v491 = vunpack.c.l.s4 1983009808
    %v492 = vunpack.c.0.s8 %v491
    %v493 = vlaneseq
    %v494 = vshrl.u32 %v493, 7
    %v495 = vsub.s32 %v492, %v494
    %v496 = vrot.slane %v482, %v495
    %v497 = vcombine.high %v489, %v489
    %v498 = vcombine.high %v496, %v496
    %v499 = vcombine.high %v30, %v30
    %v501 = vunpack.c.l.s4 1983009808
    %v502 = vunpack.c.0.s8 %v501
    %v503 = vlaneseq
    %v504 = vshrl.u32 %v503, 7
    %v505 = vsub.s32 %v502, %v504
    %v506 = vrot.slane %v30, %v505
    %v508 = vunpack.c.l.s4 1983009808
    %v509 = vunpack.c.0.s8 %v508
    %v510 = vlaneseq
    %v511 = vshrl.u32 %v510, 7
    %v512 = vsub.s32 %v509, %v511
    %v513 = vrot.slane %v499, %v512
    %v514 = vcombine.high %v506, %v506
    %v515 = vcombine.high %v513, %v513
    %v516 = vcombine.high %v31, %v31
    %v518 = vunpack.c.l.s4 1983009808
    %v519 = vunpack.c.0.s8 %v518
    %v520 = vlaneseq
    %v521 = vshrl.u32 %v520, 7
    %v522 = vsub.s32 %v519, %v521
    %v523 = vrot.slane %v31, %v522
    %v525 = vunpack.c.l.s4 1983009808
    %v526 = vunpack.c.0.s8 %v525
    %v527 = vlaneseq
    %v528 = vshrl.u32 %v527, 7
    %v529 = vsub.s32 %v526, %v528
    %v530 = vrot.slane %v516, %v529
    %v531 = vcombine.high %v523, %v523
    %v532 = vcombine.high %v530, %v530
    %v533 = vcombine.high %v32, %v32
    %v535 = vunpack.c.l.s4 1983009808
    %v536 = vunpack.c.0.s8 %v535
    %v537 = vlaneseq
    %v538 = vshrl.u32 %v537, 7
    %v539 = vsub.s32 %v536, %v538
    %v540 = vrot.slane %v32, %v539
    %v542 = vunpack.c.l.s4 1983009808
    %v543 = vunpack.c.0.s8 %v542
    %v544 = vlaneseq
    %v545 = vshrl.u32 %v544, 7
    %v546 = vsub.s32 %v543, %v545
    %v547 = vrot.slane %v533, %v546
    %v548 = vcombine.high %v540, %v540
    %v549 = vcombine.high %v547, %v547
    %v551 = vunpack.c.l.s4 1983009808
    %v552 = vunpack.c.0.s8 %v551
    %v553 = vlaneseq
    %v554 = vshrl.u32 %v553, 7
    %v555 = vsub.s32 %v552, %v554
    %v556 = vrot.slane %v33, %v555
    %582 = vmatprep.subr.mxu0 0.0
    %583 = vmatpush1.msra.mxu0 %v34
    %584 = vmatprep.subr.mxu0 0.0
    %585 = vmatpush1.msra.mxu0 %v35
    %586 = vmatprep.subr.mxu0 0.0
    %587 = vmatpush1.msra.mxu0 %v36
    %588 = vmatprep.subr.mxu0 0.0
    %589 = vmatpush1.msra.mxu0 %v37
    %590 = vmatprep.subr.mxu0 0.0
    %591 = vmatpush1.msra.mxu0 %v38
    %592 = vmatprep.subr.mxu0 0.0
    %593 = vmatpush1.msra.mxu0 %v39
    %594 = vmatprep.subr.mxu0 0.0
    %595 = vmatpush1.msra.mxu0 %v40
    %596 = vmatprep.subr.mxu0 0.0
    %597 = vmatpush1.msra.mxu0 %v41
    %598 = vmatprep.subr.mxu0 0.0
    %599 = vmatpush1.msra.mxu0 %v42
    %600 = vmatprep.subr.mxu0 0.0
    %601 = vmatpush1.msra.mxu0 %v43
    %602 = vmatprep.subr.mxu0 0.0
    %603 = vmatpush1.msra.mxu0 %v44
    %604 = vmatprep.subr.mxu0 0.0
    %605 = vmatpush1.msra.mxu0 %v45
    %606 = vmatprep.subr.mxu0 0.0
    %607 = vmatpush1.msra.mxu0 %v46
    %608 = vmatprep.subr.mxu0 0.0
    %609 = vmatpush1.msra.mxu0 %v47
    %610 = vmatprep.subr.mxu0 0.0
    %611 = vmatpush1.msra.mxu0 %v48
    %612 = vmatprep.subr.mxu0 0.0
    %613 = vmatpush1.msra.mxu0 %v49
    %614 = vmatprep.subr.mxu0 0.0
    %615 = vmatpush1.msra.mxu0 %v50
    %616 = vmatprep.subr.mxu0 0.0
    %617 = vmatpush1.msra.mxu0 %v51
    %618 = vmatprep.subr.mxu0 0.0
    %619 = vmatpush1.msra.mxu0 %v52
    %620 = vmatprep.subr.mxu0 0.0
    %621 = vmatpush1.msra.mxu0 %v53
    %622 = vmatprep.subr.mxu0 0.0
    %623 = vmatpush1.msra.mxu0 %v54
    %624 = vmatprep.subr.mxu0 0.0
    %625 = vmatpush1.msra.mxu0 %v55
    %626 = vmatprep.subr.mxu0 0.0
    %627 = vmatpush1.msra.mxu0 %v56
    %628 = vmatprep.subr.mxu0 0.0
    %629 = vmatpush1.msra.mxu0 %v57
    %630 = vmatprep.subr.mxu0 0.0
    %631 = vmatpush1.msra.mxu0 %v58
    %632 = vmatprep.subr.mxu0 0.0
    %633 = vmatpush1.msra.mxu0 %v59
    %634 = vmatprep.subr.mxu0 0.0
    %635 = vmatpush1.msra.mxu0 %v60
    %636 = vmatprep.subr.mxu0 0.0
    %637 = vmatpush1.msra.mxu0 %v61
    %638 = vmatprep.subr.mxu0 0.0
    %639 = vmatpush1.msra.mxu0 %v62
    %640 = vmatprep.subr.mxu0 0.0
    %641 = vmatpush1.msra.mxu0 %v63
    %642 = vmatprep.subr.mxu0 0.0
    %643 = vmatpush1.msra.mxu0 %v64
    %644 = vmatprep.subr.mxu0 0.0
    %645 = vmatpush1.msra.mxu0 %v65
    %646 = vmatprep.mubr.f32.mxu0 %v463
    %647 = vmatmul.mubr.f32.gmra.mrb[0].mxu0 %v455
    %v648 = vpop.f32.mrb[0].mxu0
    %v649 = vadd.f32 %v439, %v648
    %v650 = vpop.f32.mrb[0].mxu0
    %651 = vdwg.mxu0
    %652 = vmatprep.subr.mxu0 0.0
    %653 = vmatpush1.msra.mxu0 %v66
    %654 = vmatprep.subr.mxu0 0.0
    %655 = vmatpush1.msra.mxu0 %v67
    %656 = vmatprep.subr.mxu0 0.0
    %657 = vmatpush1.msra.mxu0 %v68
    %658 = vmatprep.subr.mxu0 0.0
    %659 = vmatpush1.msra.mxu0 %v69
    %660 = vmatprep.subr.mxu0 0.0
    %661 = vmatpush1.msra.mxu0 %v70
    %662 = vmatprep.subr.mxu0 0.0
    %663 = vmatpush1.msra.mxu0 %v71
    %664 = vmatprep.subr.mxu0 0.0
    %665 = vmatpush1.msra.mxu0 %v72
    %666 = vmatprep.subr.mxu0 0.0
    %667 = vmatpush1.msra.mxu0 %v73
    %668 = vmatprep.subr.mxu0 0.0
    %669 = vmatpush1.msra.mxu0 %v74
    %670 = vmatprep.subr.mxu0 0.0
    %671 = vmatpush1.msra.mxu0 %v75
    %672 = vmatprep.subr.mxu0 0.0
    %673 = vmatpush1.msra.mxu0 %v76
    %674 = vmatprep.subr.mxu0 0.0
    %675 = vmatpush1.msra.mxu0 %v77
    %676 = vmatprep.subr.mxu0 0.0
    %677 = vmatpush1.msra.mxu0 %v78
    %678 = vmatprep.subr.mxu0 0.0
    %679 = vmatpush1.msra.mxu0 %v79
    %680 = vmatprep.subr.mxu0 0.0
    %681 = vmatpush1.msra.mxu0 %v80
    %682 = vmatprep.subr.mxu0 0.0
    %683 = vmatpush1.msra.mxu0 %v81
    %684 = vmatprep.subr.mxu0 0.0
    %685 = vmatpush1.msra.mxu0 %v82
    %686 = vmatprep.subr.mxu0 0.0
    %687 = vmatpush1.msra.mxu0 %v83
    %688 = vmatprep.subr.mxu0 0.0
    %689 = vmatpush1.msra.mxu0 %v84
    %690 = vmatprep.subr.mxu0 0.0
    %691 = vmatpush1.msra.mxu0 %v85
    %692 = vmatprep.subr.mxu0 0.0
    %693 = vmatpush1.msra.mxu0 %v86
    %694 = vmatprep.subr.mxu0 0.0
    %695 = vmatpush1.msra.mxu0 %v87
    %696 = vmatprep.subr.mxu0 0.0
    %697 = vmatpush1.msra.mxu0 %v88
    %698 = vmatprep.subr.mxu0 0.0
    %699 = vmatpush1.msra.mxu0 %v89
    %700 = vmatprep.subr.mxu0 0.0
    %701 = vmatpush1.msra.mxu0 %v90
    %702 = vmatprep.subr.mxu0 0.0
    %703 = vmatpush1.msra.mxu0 %v91
    %704 = vmatprep.subr.mxu0 0.0
    %705 = vmatpush1.msra.mxu0 %v92
    %706 = vmatprep.subr.mxu0 0.0
    %707 = vmatpush1.msra.mxu0 %v93
    %708 = vmatprep.subr.mxu0 0.0
    %709 = vmatpush1.msra.mxu0 %v94
    %710 = vmatprep.subr.mxu0 0.0
    %711 = vmatpush1.msra.mxu0 %v95
    %712 = vmatprep.subr.mxu0 0.0
    %713 = vmatpush1.msra.mxu0 %v96
    %714 = vmatprep.subr.mxu0 0.0
    %715 = vmatpush1.msra.mxu0 %v97
    %716 = vmatprep.mubr.f32.mxu0 %v464
    %717 = vmatmul.mubr.f32.gmra.mrb[0].mxu0 %v462
    %v718 = vpop.f32.mrb[0].mxu0
    %v719 = vadd.f32 %v649, %v718
    %v720 = vpop.f32.mrb[0].mxu0
    %721 = vdwg.mxu0
    %722 = vmatprep.subr.mxu0 0.0
    %723 = vmatpush1.msra.mxu0 %v98
    %724 = vmatprep.subr.mxu0 0.0
    %725 = vmatpush1.msra.mxu0 %v99
    %726 = vmatprep.subr.mxu0 0.0
    %727 = vmatpush1.msra.mxu0 %v100
    %728 = vmatprep.subr.mxu0 0.0
    %729 = vmatpush1.msra.mxu0 %v101
    %730 = vmatprep.subr.mxu0 0.0
    %731 = vmatpush1.msra.mxu0 %v102
    %732 = vmatprep.subr.mxu0 0.0
    %733 = vmatpush1.msra.mxu0 %v103
    %734 = vmatprep.subr.mxu0 0.0
    %735 = vmatpush1.msra.mxu0 %v104
    %736 = vmatprep.subr.mxu0 0.0
    %737 = vmatpush1.msra.mxu0 %v105
    %738 = vmatprep.subr.mxu0 0.0
    %739 = vmatpush1.msra.mxu0 %v106
    %740 = vmatprep.subr.mxu0 0.0
    %741 = vmatpush1.msra.mxu0 %v107
    %742 = vmatprep.subr.mxu0 0.0
    %743 = vmatpush1.msra.mxu0 %v108
    %744 = vmatprep.subr.mxu0 0.0
    %745 = vmatpush1.msra.mxu0 %v109
    %746 = vmatprep.subr.mxu0 0.0
    %747 = vmatpush1.msra.mxu0 %v110
    %748 = vmatprep.subr.mxu0 0.0
    %749 = vmatpush1.msra.mxu0 %v111
    %750 = vmatprep.subr.mxu0 0.0
    %751 = vmatpush1.msra.mxu0 %v112
    %752 = vmatprep.subr.mxu0 0.0
    %753 = vmatpush1.msra.mxu0 %v113
    %754 = vmatprep.subr.mxu0 0.0
    %755 = vmatpush1.msra.mxu0 %v114
    %756 = vmatprep.subr.mxu0 0.0
    %757 = vmatpush1.msra.mxu0 %v115
    %758 = vmatprep.subr.mxu0 0.0
    %759 = vmatpush1.msra.mxu0 %v116
    %760 = vmatprep.subr.mxu0 0.0
    %761 = vmatpush1.msra.mxu0 %v117
    %762 = vmatprep.subr.mxu0 0.0
    %763 = vmatpush1.msra.mxu0 %v118
    %764 = vmatprep.subr.mxu0 0.0
    %765 = vmatpush1.msra.mxu0 %v119
    %766 = vmatprep.subr.mxu0 0.0
    %767 = vmatpush1.msra.mxu0 %v120
    %768 = vmatprep.subr.mxu0 0.0
    %769 = vmatpush1.msra.mxu0 %v121
    %770 = vmatprep.subr.mxu0 0.0
    %771 = vmatpush1.msra.mxu0 %v122
    %772 = vmatprep.subr.mxu0 0.0
    %773 = vmatpush1.msra.mxu0 %v123
    %774 = vmatprep.subr.mxu0 0.0
    %775 = vmatpush1.msra.mxu0 %v124
    %776 = vmatprep.subr.mxu0 0.0
    %777 = vmatpush1.msra.mxu0 %v125
    %778 = vmatprep.subr.mxu0 0.0
    %779 = vmatpush1.msra.mxu0 %v126
    %780 = vmatprep.subr.mxu0 0.0
    %781 = vmatpush1.msra.mxu0 %v127
    %782 = vmatprep.subr.mxu0 0.0
    %783 = vmatpush1.msra.mxu0 %v128
    %784 = vmatprep.subr.mxu0 0.0
    %785 = vmatpush1.msra.mxu0 %v129
    %786 = vmatprep.mubr.f32.mxu0 %v480
    %787 = vmatmul.mubr.f32.gmra.mrb[0].mxu0 %v472
    %v788 = vpop.f32.mrb[0].mxu0
    %v789 = vadd.f32 %v719, %v788
    %v790 = vpop.f32.mrb[0].mxu0
    %791 = vdwg.mxu0
    %792 = vmatprep.subr.mxu0 0.0
    %793 = vmatpush1.msra.mxu0 %v130
    %794 = vmatprep.subr.mxu0 0.0
    %795 = vmatpush1.msra.mxu0 %v131
    %796 = vmatprep.subr.mxu0 0.0
    %797 = vmatpush1.msra.mxu0 %v132
    %798 = vmatprep.subr.mxu0 0.0
    %799 = vmatpush1.msra.mxu0 %v133
    %800 = vmatprep.subr.mxu0 0.0
    %801 = vmatpush1.msra.mxu0 %v134
    %802 = vmatprep.subr.mxu0 0.0
    %803 = vmatpush1.msra.mxu0 %v135
    %804 = vmatprep.subr.mxu0 0.0
    %805 = vmatpush1.msra.mxu0 %v136
    %806 = vmatprep.subr.mxu0 0.0
    %807 = vmatpush1.msra.mxu0 %v137
    %808 = vmatprep.subr.mxu0 0.0
    %809 = vmatpush1.msra.mxu0 %v138
    %810 = vmatprep.subr.mxu0 0.0
    %811 = vmatpush1.msra.mxu0 %v139
    %812 = vmatprep.subr.mxu0 0.0
    %813 = vmatpush1.msra.mxu0 %v140
    %814 = vmatprep.subr.mxu0 0.0
    %815 = vmatpush1.msra.mxu0 %v141
    %816 = vmatprep.subr.mxu0 0.0
    %817 = vmatpush1.msra.mxu0 %v142
    %818 = vmatprep.subr.mxu0 0.0
    %819 = vmatpush1.msra.mxu0 %v143
    %820 = vmatprep.subr.mxu0 0.0
    %821 = vmatpush1.msra.mxu0 %v144
    %822 = vmatprep.subr.mxu0 0.0
    %823 = vmatpush1.msra.mxu0 %v145
    %824 = vmatprep.subr.mxu0 0.0
    %825 = vmatpush1.msra.mxu0 %v146
    %826 = vmatprep.subr.mxu0 0.0
    %827 = vmatpush1.msra.mxu0 %v147
    %828 = vmatprep.subr.mxu0 0.0
    %829 = vmatpush1.msra.mxu0 %v148
    %830 = vmatprep.subr.mxu0 0.0
    %831 = vmatpush1.msra.mxu0 %v149
    %832 = vmatprep.subr.mxu0 0.0
    %833 = vmatpush1.msra.mxu0 %v150
    %834 = vmatprep.subr.mxu0 0.0
    %835 = vmatpush1.msra.mxu0 %v151
    %836 = vmatprep.subr.mxu0 0.0
    %837 = vmatpush1.msra.mxu0 %v152
    %838 = vmatprep.subr.mxu0 0.0
    %839 = vmatpush1.msra.mxu0 %v153
    %840 = vmatprep.subr.mxu0 0.0
    %841 = vmatpush1.msra.mxu0 %v154
    %842 = vmatprep.subr.mxu0 0.0
    %843 = vmatpush1.msra.mxu0 %v155
    %844 = vmatprep.subr.mxu0 0.0
    %845 = vmatpush1.msra.mxu0 %v156
    %846 = vmatprep.subr.mxu0 0.0
    %847 = vmatpush1.msra.mxu0 %v157
    %848 = vmatprep.subr.mxu0 0.0
    %849 = vmatpush1.msra.mxu0 %v158
    %850 = vmatprep.subr.mxu0 0.0
    %851 = vmatpush1.msra.mxu0 %v159
    %852 = vmatprep.subr.mxu0 0.0
    %853 = vmatpush1.msra.mxu0 %v160
    %854 = vmatprep.subr.mxu0 0.0
    %855 = vmatpush1.msra.mxu0 %v161
    %856 = vmatprep.mubr.f32.mxu0 %v481
    %857 = vmatmul.mubr.f32.gmra.mrb[0].mxu0 %v479
    %v858 = vpop.f32.mrb[0].mxu0
    %v859 = vadd.f32 %v789, %v858
    %v860 = vpop.f32.mrb[0].mxu0
    %861 = vdwg.mxu0
    %862 = vmatprep.subr.mxu0 0.0
    %863 = vmatpush1.msra.mxu0 %v162
    %864 = vmatprep.subr.mxu0 0.0
    %865 = vmatpush1.msra.mxu0 %v163
    %866 = vmatprep.subr.mxu0 0.0
    %867 = vmatpush1.msra.mxu0 %v164
    %868 = vmatprep.subr.mxu0 0.0
    %869 = vmatpush1.msra.mxu0 %v165
    %870 = vmatprep.subr.mxu0 0.0
    %871 = vmatpush1.msra.mxu0 %v166
    %872 = vmatprep.subr.mxu0 0.0
    %873 = vmatpush1.msra.mxu0 %v167
    %874 = vmatprep.subr.mxu0 0.0
    %875 = vmatpush1.msra.mxu0 %v168
    %876 = vmatprep.subr.mxu0 0.0
    %877 = vmatpush1.msra.mxu0 %v169
    %878 = vmatprep.subr.mxu0 0.0
    %879 = vmatpush1.msra.mxu0 %v170
    %880 = vmatprep.subr.mxu0 0.0
    %881 = vmatpush1.msra.mxu0 %v171
    %882 = vmatprep.subr.mxu0 0.0
    %883 = vmatpush1.msra.mxu0 %v172
    %884 = vmatprep.subr.mxu0 0.0
    %885 = vmatpush1.msra.mxu0 %v173
    %886 = vmatprep.subr.mxu0 0.0
    %887 = vmatpush1.msra.mxu0 %v174
    %888 = vmatprep.subr.mxu0 0.0
    %889 = vmatpush1.msra.mxu0 %v175
    %890 = vmatprep.subr.mxu0 0.0
    %891 = vmatpush1.msra.mxu0 %v176
    %892 = vmatprep.subr.mxu0 0.0
    %893 = vmatpush1.msra.mxu0 %v177
    %894 = vmatprep.subr.mxu0 0.0
    %895 = vmatpush1.msra.mxu0 %v178
    %896 = vmatprep.subr.mxu0 0.0
    %897 = vmatpush1.msra.mxu0 %v179
    %898 = vmatprep.subr.mxu0 0.0
    %899 = vmatpush1.msra.mxu0 %v180
    %900 = vmatprep.subr.mxu0 0.0
    %901 = vmatpush1.msra.mxu0 %v181
    %902 = vmatprep.subr.mxu0 0.0
    %903 = vmatpush1.msra.mxu0 %v182
    %904 = vmatprep.subr.mxu0 0.0
    %905 = vmatpush1.msra.mxu0 %v183
    %906 = vmatprep.subr.mxu0 0.0
    %907 = vmatpush1.msra.mxu0 %v184
    %908 = vmatprep.subr.mxu0 0.0
    %909 = vmatpush1.msra.mxu0 %v185
    %910 = vmatprep.subr.mxu0 0.0
    %911 = vmatpush1.msra.mxu0 %v186
    %912 = vmatprep.subr.mxu0 0.0
    %913 = vmatpush1.msra.mxu0 %v187
    %914 = vmatprep.subr.mxu0 0.0
    %915 = vmatpush1.msra.mxu0 %v188
    %916 = vmatprep.subr.mxu0 0.0
    %917 = vmatpush1.msra.mxu0 %v189
    %918 = vmatprep.subr.mxu0 0.0
    %919 = vmatpush1.msra.mxu0 %v190
    %920 = vmatprep.subr.mxu0 0.0
    %921 = vmatpush1.msra.mxu0 %v191
    %922 = vmatprep.subr.mxu0 0.0
    %923 = vmatpush1.msra.mxu0 %v192
    %924 = vmatprep.subr.mxu0 0.0
    %925 = vmatpush1.msra.mxu0 %v193
    %926 = vmatprep.mubr.f32.mxu0 %v497
    %927 = vmatmul.mubr.f32.gmra.mrb[0].mxu0 %v489
    %v928 = vpop.f32.mrb[0].mxu0
    %v929 = vadd.f32 %v859, %v928
    %v930 = vpop.f32.mrb[0].mxu0
    %931 = vdwg.mxu0
    %932 = vmatprep.subr.mxu0 0.0
    %933 = vmatpush1.msra.mxu0 %v194
    %934 = vmatprep.subr.mxu0 0.0
    %935 = vmatpush1.msra.mxu0 %v195
    %936 = vmatprep.subr.mxu0 0.0
    %937 = vmatpush1.msra.mxu0 %v196
    %938 = vmatprep.subr.mxu0 0.0
    %939 = vmatpush1.msra.mxu0 %v197
    %940 = vmatprep.subr.mxu0 0.0
    %941 = vmatpush1.msra.mxu0 %v198
    %942 = vmatprep.subr.mxu0 0.0
    %943 = vmatpush1.msra.mxu0 %v199
    %944 = vmatprep.subr.mxu0 0.0
    %945 = vmatpush1.msra.mxu0 %v200
    %946 = vmatprep.subr.mxu0 0.0
    %947 = vmatpush1.msra.mxu0 %v201
    %948 = vmatprep.subr.mxu0 0.0
    %949 = vmatpush1.msra.mxu0 %v202
    %950 = vmatprep.subr.mxu0 0.0
    %951 = vmatpush1.msra.mxu0 %v203
    %952 = vmatprep.subr.mxu0 0.0
    %953 = vmatpush1.msra.mxu0 %v204
    %954 = vmatprep.subr.mxu0 0.0
    %955 = vmatpush1.msra.mxu0 %v205
    %956 = vmatprep.subr.mxu0 0.0
    %957 = vmatpush1.msra.mxu0 %v206
    %958 = vmatprep.subr.mxu0 0.0
    %959 = vmatpush1.msra.mxu0 %v207
    %960 = vmatprep.subr.mxu0 0.0
    %961 = vmatpush1.msra.mxu0 %v208
    %962 = vmatprep.subr.mxu0 0.0
    %963 = vmatpush1.msra.mxu0 %v209
    %964 = vmatprep.subr.mxu0 0.0
    %965 = vmatpush1.msra.mxu0 %v210
    %966 = vmatprep.subr.mxu0 0.0
    %967 = vmatpush1.msra.mxu0 %v211
    %968 = vmatprep.subr.mxu0 0.0
    %969 = vmatpush1.msra.mxu0 %v212
    %970 = vmatprep.subr.mxu0 0.0
    %971 = vmatpush1.msra.mxu0 %v213
    %972 = vmatprep.subr.mxu0 0.0
    %973 = vmatpush1.msra.mxu0 %v214
    %974 = vmatprep.subr.mxu0 0.0
    %975 = vmatpush1.msra.mxu0 %v215
    %976 = vmatprep.subr.mxu0 0.0
    %977 = vmatpush1.msra.mxu0 %v216
    %978 = vmatprep.subr.mxu0 0.0
    %979 = vmatpush1.msra.mxu0 %v217
    %980 = vmatprep.subr.mxu0 0.0
    %981 = vmatpush1.msra.mxu0 %v218
    %982 = vmatprep.subr.mxu0 0.0
    %983 = vmatpush1.msra.mxu0 %v219
    %984 = vmatprep.subr.mxu0 0.0
    %985 = vmatpush1.msra.mxu0 %v220
    %986 = vmatprep.subr.mxu0 0.0
    %987 = vmatpush1.msra.mxu0 %v221
    %988 = vmatprep.subr.mxu0 0.0
    %989 = vmatpush1.msra.mxu0 %v222
    %990 = vmatprep.subr.mxu0 0.0
    %991 = vmatpush1.msra.mxu0 %v223
    %992 = vmatprep.subr.mxu0 0.0
    %993 = vmatpush1.msra.mxu0 %v224
    %994 = vmatprep.subr.mxu0 0.0
    %995 = vmatpush1.msra.mxu0 %v225
    %996 = vmatprep.mubr.f32.mxu0 %v498
    %997 = vmatmul.mubr.f32.gmra.mrb[0].mxu0 %v496
    %v998 = vpop.f32.mrb[0].mxu0
    %v999 = vadd.f32 %v929, %v998
    %v1000 = vpop.f32.mrb[0].mxu0
    %1001 = vdwg.mxu0
    %1002 = vmatprep.subr.mxu0 0.0
    %1003 = vmatpush1.msra.mxu0 %v226
    %1004 = vmatprep.subr.mxu0 0.0
    %1005 = vmatpush1.msra.mxu0 %v227
    %1006 = vmatprep.subr.mxu0 0.0
    %1007 = vmatpush1.msra.mxu0 %v228
    %1008 = vmatprep.subr.mxu0 0.0
    %1009 = vmatpush1.msra.mxu0 %v229
    %1010 = vmatprep.subr.mxu0 0.0
    %1011 = vmatpush1.msra.mxu0 %v230
    %1012 = vmatprep.subr.mxu0 0.0
    %1013 = vmatpush1.msra.mxu0 %v231
    %1014 = vmatprep.subr.mxu0 0.0
    %1015 = vmatpush1.msra.mxu0 %v232
    %1016 = vmatprep.subr.mxu0 0.0
    %1017 = vmatpush1.msra.mxu0 %v233
    %1018 = vmatprep.subr.mxu0 0.0
    %1019 = vmatpush1.msra.mxu0 %v234
    %1020 = vmatprep.subr.mxu0 0.0
    %1021 = vmatpush1.msra.mxu0 %v235
    %1022 = vmatprep.subr.mxu0 0.0
    %1023 = vmatpush1.msra.mxu0 %v236
    %1024 = vmatprep.subr.mxu0 0.0
    %1025 = vmatpush1.msra.mxu0 %v237
    %1026 = vmatprep.subr.mxu0 0.0
    %1027 = vmatpush1.msra.mxu0 %v238
    %1028 = vmatprep.subr.mxu0 0.0
    %1029 = vmatpush1.msra.mxu0 %v239
    %1030 = vmatprep.subr.mxu0 0.0
    %1031 = vmatpush1.msra.mxu0 %v240
    %1032 = vmatprep.subr.mxu0 0.0
    %1033 = vmatpush1.msra.mxu0 %v241
    %1034 = vmatprep.subr.mxu0 0.0
    %1035 = vmatpush1.msra.mxu0 %v242
    %1036 = vmatprep.subr.mxu0 0.0
    %1037 = vmatpush1.msra.mxu0 %v243
    %1038 = vmatprep.subr.mxu0 0.0
    %1039 = vmatpush1.msra.mxu0 %v244
    %1040 = vmatprep.subr.mxu0 0.0
    %1041 = vmatpush1.msra.mxu0 %v245
    %1042 = vmatprep.subr.mxu0 0.0
    %1043 = vmatpush1.msra.mxu0 %v246
    %1044 = vmatprep.subr.mxu0 0.0
    %1045 = vmatpush1.msra.mxu0 %v247
    %1046 = vmatprep.subr.mxu0 0.0
    %1047 = vmatpush1.msra.mxu0 %v248
    %1048 = vmatprep.subr.mxu0 0.0
    %1049 = vmatpush1.msra.mxu0 %v249
    %1050 = vmatprep.subr.mxu0 0.0
    %1051 = vmatpush1.msra.mxu0 %v250
    %1052 = vmatprep.subr.mxu0 0.0
    %1053 = vmatpush1.msra.mxu0 %v251
    %1054 = vmatprep.subr.mxu0 0.0
    %1055 = vmatpush1.msra.mxu0 %v252
    %1056 = vmatprep.subr.mxu0 0.0
    %1057 = vmatpush1.msra.mxu0 %v253
    %1058 = vmatprep.subr.mxu0 0.0
    %1059 = vmatpush1.msra.mxu0 %v254
    %1060 = vmatprep.subr.mxu0 0.0
    %1061 = vmatpush1.msra.mxu0 %v255
    %1062 = vmatprep.subr.mxu0 0.0
    %1063 = vmatpush1.msra.mxu0 %v256
    %1064 = vmatprep.subr.mxu0 0.0
    %1065 = vmatpush1.msra.mxu0 %v257
    %1066 = vmatprep.mubr.f32.mxu0 %v514
    %1067 = vmatmul.mubr.f32.gmra.mrb[0].mxu0 %v506
    %v1068 = vpop.f32.mrb[0].mxu0
    %v1069 = vadd.f32 %v999, %v1068
    %v1070 = vpop.f32.mrb[0].mxu0
    %1071 = vdwg.mxu0
    %1072 = vmatprep.subr.mxu0 0.0
    %1073 = vmatpush1.msra.mxu0 %v258
    %1074 = vmatprep.subr.mxu0 0.0
    %1075 = vmatpush1.msra.mxu0 %v259
    %1076 = vmatprep.subr.mxu0 0.0
    %1077 = vmatpush1.msra.mxu0 %v260
    %1078 = vmatprep.subr.mxu0 0.0
    %1079 = vmatpush1.msra.mxu0 %v261
    %1080 = vmatprep.subr.mxu0 0.0
    %1081 = vmatpush1.msra.mxu0 %v262
    %1082 = vmatprep.subr.mxu0 0.0
    %1083 = vmatpush1.msra.mxu0 %v263
    %1084 = vmatprep.subr.mxu0 0.0
    %1085 = vmatpush1.msra.mxu0 %v264
    %1086 = vmatprep.subr.mxu0 0.0
    %1087 = vmatpush1.msra.mxu0 %v265
    %1088 = vmatprep.subr.mxu0 0.0
    %1089 = vmatpush1.msra.mxu0 %v266
    %1090 = vmatprep.subr.mxu0 0.0
    %1091 = vmatpush1.msra.mxu0 %v267
    %1092 = vmatprep.subr.mxu0 0.0
    %1093 = vmatpush1.msra.mxu0 %v268
    %1094 = vmatprep.subr.mxu0 0.0
    %1095 = vmatpush1.msra.mxu0 %v269
    %1096 = vmatprep.subr.mxu0 0.0
    %1097 = vmatpush1.msra.mxu0 %v270
    %1098 = vmatprep.subr.mxu0 0.0
    %1099 = vmatpush1.msra.mxu0 %v271
    %1100 = vmatprep.subr.mxu0 0.0
    %1101 = vmatpush1.msra.mxu0 %v272
    %1102 = vmatprep.subr.mxu0 0.0
    %1103 = vmatpush1.msra.mxu0 %v273
    %1104 = vmatprep.subr.mxu0 0.0
    %1105 = vmatpush1.msra.mxu0 %v274
    %1106 = vmatprep.subr.mxu0 0.0
    %1107 = vmatpush1.msra.mxu0 %v275
    %1108 = vmatprep.subr.mxu0 0.0
    %1109 = vmatpush1.msra.mxu0 %v276
    %1110 = vmatprep.subr.mxu0 0.0
    %1111 = vmatpush1.msra.mxu0 %v277
    %1112 = vmatprep.subr.mxu0 0.0
    %1113 = vmatpush1.msra.mxu0 %v278
    %1114 = vmatprep.subr.mxu0 0.0
    %1115 = vmatpush1.msra.mxu0 %v279
    %1116 = vmatprep.subr.mxu0 0.0
    %1117 = vmatpush1.msra.mxu0 %v280
    %1118 = vmatprep.subr.mxu0 0.0
    %1119 = vmatpush1.msra.mxu0 %v281
    %1120 = vmatprep.subr.mxu0 0.0
    %1121 = vmatpush1.msra.mxu0 %v282
    %1122 = vmatprep.subr.mxu0 0.0
    %1123 = vmatpush1.msra.mxu0 %v283
    %1124 = vmatprep.subr.mxu0 0.0
    %1125 = vmatpush1.msra.mxu0 %v284
    %1126 = vmatprep.subr.mxu0 0.0
    %1127 = vmatpush1.msra.mxu0 %v285
    %1128 = vmatprep.subr.mxu0 0.0
    %1129 = vmatpush1.msra.mxu0 %v286
    %1130 = vmatprep.subr.mxu0 0.0
    %1131 = vmatpush1.msra.mxu0 %v287
    %1132 = vmatprep.subr.mxu0 0.0
    %1133 = vmatpush1.msra.mxu0 %v288
    %1134 = vmatprep.subr.mxu0 0.0
    %1135 = vmatpush1.msra.mxu0 %v289
    %1136 = vmatprep.mubr.f32.mxu0 %v515
    %1137 = vmatmul.mubr.f32.gmra.mrb[0].mxu0 %v513
    %v1138 = vpop.f32.mrb[0].mxu0
    %v1139 = vadd.f32 %v1069, %v1138
    %v1140 = vpop.f32.mrb[0].mxu0
    %1141 = vdwg.mxu0
    %1142 = vmatprep.subr.mxu0 0.0
    %1143 = vmatpush1.msra.mxu0 %v290
    %1144 = vmatprep.subr.mxu0 0.0
    %1145 = vmatpush1.msra.mxu0 %v291
    %1146 = vmatprep.subr.mxu0 0.0
    %1147 = vmatpush1.msra.mxu0 %v292
    %1148 = vmatprep.subr.mxu0 0.0
    %1149 = vmatpush1.msra.mxu0 %v293
    %1150 = vmatprep.subr.mxu0 0.0
    %1151 = vmatpush1.msra.mxu0 %v294
    %1152 = vmatprep.subr.mxu0 0.0
    %1153 = vmatpush1.msra.mxu0 %v295
    %1154 = vmatprep.subr.mxu0 0.0
    %1155 = vmatpush1.msra.mxu0 %v296
    %1156 = vmatprep.subr.mxu0 0.0
    %1157 = vmatpush1.msra.mxu0 %v297
    %1158 = vmatprep.subr.mxu0 0.0
    %1159 = vmatpush1.msra.mxu0 %v298
    %1160 = vmatprep.subr.mxu0 0.0
    %1161 = vmatpush1.msra.mxu0 %v299
    %1162 = vmatprep.subr.mxu0 0.0
    %1163 = vmatpush1.msra.mxu0 %v300
    %1164 = vmatprep.subr.mxu0 0.0
    %1165 = vmatpush1.msra.mxu0 %v301
    %1166 = vmatprep.subr.mxu0 0.0
    %1167 = vmatpush1.msra.mxu0 %v302
    %1168 = vmatprep.subr.mxu0 0.0
    %1169 = vmatpush1.msra.mxu0 %v303
    %1170 = vmatprep.subr.mxu0 0.0
    %1171 = vmatpush1.msra.mxu0 %v304
    %1172 = vmatprep.subr.mxu0 0.0
    %1173 = vmatpush1.msra.mxu0 %v305
    %1174 = vmatprep.subr.mxu0 0.0
    %1175 = vmatpush1.msra.mxu0 %v306
    %1176 = vmatprep.subr.mxu0 0.0
    %1177 = vmatpush1.msra.mxu0 %v307
    %1178 = vmatprep.subr.mxu0 0.0
    %1179 = vmatpush1.msra.mxu0 %v308
    %1180 = vmatprep.subr.mxu0 0.0
    %1181 = vmatpush1.msra.mxu0 %v309
    %1182 = vmatprep.subr.mxu0 0.0
    %1183 = vmatpush1.msra.mxu0 %v310
    %1184 = vmatprep.subr.mxu0 0.0
    %1185 = vmatpush1.msra.mxu0 %v311
    %1186 = vmatprep.subr.mxu0 0.0
    %1187 = vmatpush1.msra.mxu0 %v312
    %1188 = vmatprep.subr.mxu0 0.0
    %1189 = vmatpush1.msra.mxu0 %v313
    %1190 = vmatprep.subr.mxu0 0.0
    %1191 = vmatpush1.msra.mxu0 %v314
    %1192 = vmatprep.subr.mxu0 0.0
    %1193 = vmatpush1.msra.mxu0 %v315
    %1194 = vmatprep.subr.mxu0 0.0
    %1195 = vmatpush1.msra.mxu0 %v316
    %1196 = vmatprep.subr.mxu0 0.0
    %1197 = vmatpush1.msra.mxu0 %v317
    %1198 = vmatprep.subr.mxu0 0.0
    %1199 = vmatpush1.msra.mxu0 %v318
    %1200 = vmatprep.subr.mxu0 0.0
    %1201 = vmatpush1.msra.mxu0 %v319
    %1202 = vmatprep.subr.mxu0 0.0
    %1203 = vmatpush1.msra.mxu0 %v320
    %1204 = vmatprep.subr.mxu0 0.0
    %1205 = vmatpush1.msra.mxu0 %v321
    %1206 = vmatprep.mubr.f32.mxu0 %v531
    %1207 = vmatmul.mubr.f32.gmra.mrb[0].mxu0 %v523
    %v1208 = vpop.f32.mrb[0].mxu0
    %v1209 = vadd.f32 %v1139, %v1208
    %v1210 = vpop.f32.mrb[0].mxu0
    %1211 = vdwg.mxu0
    %1212 = vmatprep.subr.mxu0 0.0
    %1213 = vmatpush1.msra.mxu0 %v322
    %1214 = vmatprep.subr.mxu0 0.0
    %1215 = vmatpush1.msra.mxu0 %v323
    %1216 = vmatprep.subr.mxu0 0.0
    %1217 = vmatpush1.msra.mxu0 %v324
    %1218 = vmatprep.subr.mxu0 0.0
    %1219 = vmatpush1.msra.mxu0 %v325
    %1220 = vmatprep.subr.mxu0 0.0
    %1221 = vmatpush1.msra.mxu0 %v326
    %1222 = vmatprep.subr.mxu0 0.0
    %1223 = vmatpush1.msra.mxu0 %v327
    %1224 = vmatprep.subr.mxu0 0.0
    %1225 = vmatpush1.msra.mxu0 %v328
    %1226 = vmatprep.subr.mxu0 0.0
    %1227 = vmatpush1.msra.mxu0 %v329
    %1228 = vmatprep.subr.mxu0 0.0
    %1229 = vmatpush1.msra.mxu0 %v330
    %1230 = vmatprep.subr.mxu0 0.0
    %1231 = vmatpush1.msra.mxu0 %v331
    %1232 = vmatprep.subr.mxu0 0.0
    %1233 = vmatpush1.msra.mxu0 %v332
    %1234 = vmatprep.subr.mxu0 0.0
    %1235 = vmatpush1.msra.mxu0 %v333
    %1236 = vmatprep.subr.mxu0 0.0
    %1237 = vmatpush1.msra.mxu0 %v334
    %1238 = vmatprep.subr.mxu0 0.0
    %1239 = vmatpush1.msra.mxu0 %v335
    %1240 = vmatprep.subr.mxu0 0.0
    %1241 = vmatpush1.msra.mxu0 %v336
    %1242 = vmatprep.subr.mxu0 0.0
    %1243 = vmatpush1.msra.mxu0 %v337
    %1244 = vmatprep.subr.mxu0 0.0
    %1245 = vmatpush1.msra.mxu0 %v338
    %1246 = vmatprep.subr.mxu0 0.0
    %1247 = vmatpush1.msra.mxu0 %v339
    %1248 = vmatprep.subr.mxu0 0.0
    %1249 = vmatpush1.msra.mxu0 %v340
    %1250 = vmatprep.subr.mxu0 0.0
    %1251 = vmatpush1.msra.mxu0 %v341
    %1252 = vmatprep.subr.mxu0 0.0
    %1253 = vmatpush1.msra.mxu0 %v342
    %1254 = vmatprep.subr.mxu0 0.0
    %1255 = vmatpush1.msra.mxu0 %v343
    %1256 = vmatprep.subr.mxu0 0.0
    %1257 = vmatpush1.msra.mxu0 %v344
    %1258 = vmatprep.subr.mxu0 0.0
    %1259 = vmatpush1.msra.mxu0 %v345
    %1260 = vmatprep.subr.mxu0 0.0
    %1261 = vmatpush1.msra.mxu0 %v346
    %1262 = vmatprep.subr.mxu0 0.0
    %1263 = vmatpush1.msra.mxu0 %v347
    %1264 = vmatprep.subr.mxu0 0.0
    %1265 = vmatpush1.msra.mxu0 %v348
    %1266 = vmatprep.subr.mxu0 0.0
    %1267 = vmatpush1.msra.mxu0 %v349
    %1268 = vmatprep.subr.mxu0 0.0
    %1269 = vmatpush1.msra.mxu0 %v350
    %1270 = vmatprep.subr.mxu0 0.0
    %1271 = vmatpush1.msra.mxu0 %v351
    %1272 = vmatprep.subr.mxu0 0.0
    %1273 = vmatpush1.msra.mxu0 %v352
    %1274 = vmatprep.subr.mxu0 0.0
    %1275 = vmatpush1.msra.mxu0 %v353
    %1276 = vmatprep.mubr.f32.mxu0 %v532
    %1277 = vmatmul.mubr.f32.gmra.mrb[0].mxu0 %v530
    %v1278 = vpop.f32.mrb[0].mxu0
    %v1279 = vadd.f32 %v1209, %v1278
    %v1280 = vpop.f32.mrb[0].mxu0
    %1281 = vdwg.mxu0
    %1282 = vmatprep.subr.mxu0 0.0
    %1283 = vmatpush1.msra.mxu0 %v354
    %1284 = vmatprep.subr.mxu0 0.0
    %1285 = vmatpush1.msra.mxu0 %v355
    %1286 = vmatprep.subr.mxu0 0.0
    %1287 = vmatpush1.msra.mxu0 %v356
    %1288 = vmatprep.subr.mxu0 0.0
    %1289 = vmatpush1.msra.mxu0 %v357
    %1290 = vmatprep.subr.mxu0 0.0
    %1291 = vmatpush1.msra.mxu0 %v358
    %1292 = vmatprep.subr.mxu0 0.0
    %1293 = vmatpush1.msra.mxu0 %v359
    %1294 = vmatprep.subr.mxu0 0.0
    %1295 = vmatpush1.msra.mxu0 %v360
    %1296 = vmatprep.subr.mxu0 0.0
    %1297 = vmatpush1.msra.mxu0 %v361
    %1298 = vmatprep.subr.mxu0 0.0
    %1299 = vmatpush1.msra.mxu0 %v362
    %1300 = vmatprep.subr.mxu0 0.0
    %1301 = vmatpush1.msra.mxu0 %v363
    %1302 = vmatprep.subr.mxu0 0.0
    %1303 = vmatpush1.msra.mxu0 %v364
    %1304 = vmatprep.subr.mxu0 0.0
    %1305 = vmatpush1.msra.mxu0 %v365
    %1306 = vmatprep.subr.mxu0 0.0
    %1307 = vmatpush1.msra.mxu0 %v366
    %1308 = vmatprep.subr.mxu0 0.0
    %1309 = vmatpush1.msra.mxu0 %v367
    %1310 = vmatprep.subr.mxu0 0.0
    %1311 = vmatpush1.msra.mxu0 %v368
    %1312 = vmatprep.subr.mxu0 0.0
    %1313 = vmatpush1.msra.mxu0 %v369
    %1314 = vmatprep.subr.mxu0 0.0
    %1315 = vmatpush1.msra.mxu0 %v370
    %1316 = vmatprep.subr.mxu0 0.0
    %1317 = vmatpush1.msra.mxu0 %v371
    %1318 = vmatprep.subr.mxu0 0.0
    %1319 = vmatpush1.msra.mxu0 %v372
    %1320 = vmatprep.subr.mxu0 0.0
    %1321 = vmatpush1.msra.mxu0 %v373
    %1322 = vmatprep.subr.mxu0 0.0
    %1323 = vmatpush1.msra.mxu0 %v374
    %1324 = vmatprep.subr.mxu0 0.0
    %1325 = vmatpush1.msra.mxu0 %v375
    %1326 = vmatprep.subr.mxu0 0.0
    %1327 = vmatpush1.msra.mxu0 %v376
    %1328 = vmatprep.subr.mxu0 0.0
    %1329 = vmatpush1.msra.mxu0 %v377
    %1330 = vmatprep.subr.mxu0 0.0
    %1331 = vmatpush1.msra.mxu0 %v378
    %1332 = vmatprep.subr.mxu0 0.0
    %1333 = vmatpush1.msra.mxu0 %v379
    %1334 = vmatprep.subr.mxu0 0.0
    %1335 = vmatpush1.msra.mxu0 %v380
    %1336 = vmatprep.subr.mxu0 0.0
    %1337 = vmatpush1.msra.mxu0 %v381
    %1338 = vmatprep.subr.mxu0 0.0
    %1339 = vmatpush1.msra.mxu0 %v382
    %1340 = vmatprep.subr.mxu0 0.0
    %1341 = vmatpush1.msra.mxu0 %v383
    %1342 = vmatprep.subr.mxu0 0.0
    %1343 = vmatpush1.msra.mxu0 %v384
    %1344 = vmatprep.subr.mxu0 0.0
    %1345 = vmatpush1.msra.mxu0 %v385
    %1346 = vmatprep.mubr.f32.mxu0 %v548
    %1347 = vmatmul.mubr.f32.gmra.mrb[0].mxu0 %v540
    %v1348 = vpop.f32.mrb[0].mxu0
    %v1349 = vadd.f32 %v1279, %v1348
    %v1350 = vpop.f32.mrb[0].mxu0
    %1351 = vdwg.mxu0
    %1352 = vmatprep.subr.mxu0 0.0
    %1353 = vmatpush1.msra.mxu0 %v386
    %1354 = vmatprep.subr.mxu0 0.0
    %1355 = vmatpush1.msra.mxu0 %v387
    %1356 = vmatprep.subr.mxu0 0.0
    %1357 = vmatpush1.msra.mxu0 %v388
    %1358 = vmatprep.subr.mxu0 0.0
    %1359 = vmatpush1.msra.mxu0 %v389
    %1360 = vmatprep.subr.mxu0 0.0
    %1361 = vmatpush1.msra.mxu0 %v390
    %1362 = vmatprep.subr.mxu0 0.0
    %1363 = vmatpush1.msra.mxu0 %v391
    %1364 = vmatprep.subr.mxu0 0.0
    %1365 = vmatpush1.msra.mxu0 %v392
    %1366 = vmatprep.subr.mxu0 0.0
    %1367 = vmatpush1.msra.mxu0 %v393
    %1368 = vmatprep.subr.mxu0 0.0
    %1369 = vmatpush1.msra.mxu0 %v394
    %1370 = vmatprep.subr.mxu0 0.0
    %1371 = vmatpush1.msra.mxu0 %v395
    %1372 = vmatprep.subr.mxu0 0.0
    %1373 = vmatpush1.msra.mxu0 %v396
    %1374 = vmatprep.subr.mxu0 0.0
    %1375 = vmatpush1.msra.mxu0 %v397
    %1376 = vmatprep.subr.mxu0 0.0
    %1377 = vmatpush1.msra.mxu0 %v398
    %1378 = vmatprep.subr.mxu0 0.0
    %1379 = vmatpush1.msra.mxu0 %v399
    %1380 = vmatprep.subr.mxu0 0.0
    %1381 = vmatpush1.msra.mxu0 %v400
    %1382 = vmatprep.subr.mxu0 0.0
    %1383 = vmatpush1.msra.mxu0 %v401
    %1384 = vmatprep.subr.mxu0 0.0
    %1385 = vmatpush1.msra.mxu0 %v402
    %1386 = vmatprep.subr.mxu0 0.0
    %1387 = vmatpush1.msra.mxu0 %v403
    %1388 = vmatprep.subr.mxu0 0.0
    %1389 = vmatpush1.msra.mxu0 %v404
    %1390 = vmatprep.subr.mxu0 0.0
    %1391 = vmatpush1.msra.mxu0 %v405
    %1392 = vmatprep.subr.mxu0 0.0
    %1393 = vmatpush1.msra.mxu0 %v406
    %1394 = vmatprep.subr.mxu0 0.0
    %1395 = vmatpush1.msra.mxu0 %v407
    %1396 = vmatprep.subr.mxu0 0.0
    %1397 = vmatpush1.msra.mxu0 %v408
    %1398 = vmatprep.subr.mxu0 0.0
    %1399 = vmatpush1.msra.mxu0 %v409
    %1400 = vmatprep.subr.mxu0 0.0
    %1401 = vmatpush1.msra.mxu0 %v410
    %1402 = vmatprep.subr.mxu0 0.0
    %1403 = vmatpush1.msra.mxu0 %v411
    %1404 = vmatprep.subr.mxu0 0.0
    %1405 = vmatpush1.msra.mxu0 %v412
    %1406 = vmatprep.subr.mxu0 0.0
    %1407 = vmatpush1.msra.mxu0 %v413
    %1408 = vmatprep.subr.mxu0 0.0
    %1409 = vmatpush1.msra.mxu0 %v414
    %1410 = vmatprep.subr.mxu0 0.0
    %1411 = vmatpush1.msra.mxu0 %v415
    %1412 = vmatprep.subr.mxu0 0.0
    %1413 = vmatpush1.msra.mxu0 %v416
    %1414 = vmatprep.subr.mxu0 0.0
    %1415 = vmatpush1.msra.mxu0 %v417
    %1416 = vmatprep.mubr.f32.mxu0 %v549
    %1417 = vmatmul.mubr.f32.gmra.mrb[0].mxu0 %v547
    %v1418 = vpop.f32.mrb[0].mxu0
    %v1419 = vadd.f32 %v1349, %v1418
    %v1420 = vpop.f32.mrb[0].mxu0
    %1421 = vdwg.mxu0
    %1422 = vmatprep.subr.mxu0 0.0
    %1423 = vmatpush1.msra.mxu0 %v418
    %1424 = vmatprep.subr.mxu0 0.0
    %1425 = vmatpush1.msra.mxu0 %v419
    %1426 = vmatprep.subr.mxu0 0.0
    %1427 = vmatpush1.msra.mxu0 %v420
    %1428 = vmatprep.subr.mxu0 0.0
    %1429 = vmatpush1.msra.mxu0 %v421
    %1430 = vmatprep.subr.mxu0 0.0
    %1431 = vmatpush1.msra.mxu0 %v422
    %1432 = vmatprep.subr.mxu0 0.0
    %1433 = vmatpush1.msra.mxu0 %v423
    %1434 = vmatprep.subr.mxu0 0.0
    %1435 = vmatpush1.msra.mxu0 %v424
    %1436 = vmatprep.subr.mxu0 0.0
    %1437 = vmatpush1.msra.mxu0 %v425
    %1438 = vmatprep.subr.mxu0 0.0
    %1439 = vmatpush1.msra.mxu0 %v426
    %1440 = vmatprep.subr.mxu0 0.0
    %1441 = vmatpush1.msra.mxu0 %v427
    %1442 = vmatprep.subr.mxu0 0.0
    %1443 = vmatpush1.msra.mxu0 %v428
    %1444 = vmatprep.subr.mxu0 0.0
    %1445 = vmatpush1.msra.mxu0 %v429
    %1446 = vmatprep.subr.mxu0 0.0
    %1447 = vmatpush1.msra.mxu0 %v430
    %1448 = vmatprep.subr.mxu0 0.0
    %1449 = vmatpush1.msra.mxu0 %v431
    %1450 = vmatprep.subr.mxu0 0.0
    %1451 = vmatpush1.msra.mxu0 %v432
    %1452 = vmatprep.subr.mxu0 0.0
    %1453 = vmatpush1.msra.mxu0 %v433
    %1454 = vmatprep.subr.mxu0 0.0
    %1455 = vmatpush1.msra.mxu0 0.0
    %1456 = vmatprep.subr.mxu0 0.0
    %1457 = vmatpush1.msra.mxu0 0.0
    %1458 = vmatprep.subr.mxu0 0.0
    %1459 = vmatpush1.msra.mxu0 0.0
    %1460 = vmatprep.subr.mxu0 0.0
    %1461 = vmatpush1.msra.mxu0 0.0
    %1462 = vmatprep.subr.mxu0 0.0
    %1463 = vmatpush1.msra.mxu0 0.0
    %1464 = vmatprep.subr.mxu0 0.0
    %1465 = vmatpush1.msra.mxu0 0.0
    %1466 = vmatprep.subr.mxu0 0.0
    %1467 = vmatpush1.msra.mxu0 0.0
    %1468 = vmatprep.subr.mxu0 0.0
    %1469 = vmatpush1.msra.mxu0 0.0
    %1470 = vmatprep.subr.mxu0 0.0
    %1471 = vmatpush1.msra.mxu0 0.0
    %1472 = vmatprep.subr.mxu0 0.0
    %1473 = vmatpush1.msra.mxu0 0.0
    %1474 = vmatprep.subr.mxu0 0.0
    %1475 = vmatpush1.msra.mxu0 0.0
    %1476 = vmatprep.subr.mxu0 0.0
    %1477 = vmatpush1.msra.mxu0 0.0
    %1478 = vmatprep.subr.mxu0 0.0
    %1479 = vmatpush1.msra.mxu0 0.0
    %1480 = vmatprep.subr.mxu0 0.0
    %1481 = vmatpush1.msra.mxu0 0.0
    %1482 = vmatprep.subr.mxu0 0.0
    %1483 = vmatpush1.msra.mxu0 0.0
    %1484 = vmatprep.subr.mxu0 0.0
    %1485 = vmatpush1.msra.mxu0 0.0
    %1486 = vmatprep.mubr.f32.mxu0 0.0
    %1487 = vmatmul.mubr.f32.gmra.mrb[0].mxu0 %v556
    %v1488 = vpop.f32.mrb[0].mxu0
    %v1489 = vadd.f32 %v1419, %v1488
    %v1490 = vpop.f32.mrb[0].mxu0
    %1491 = vdwg.mxu0
    %v1492 = vmax.f32 %v1489, 0.0
    %v1493 = vld [vmem:[%s3] sm:$0xff]
    %v1494 = vld [vmem:[%s3 + $0x8] sm:$0xff]
    %v1495 = vld [vmem:[%s3 + $0x10] sm:$0xff]
    %v1496 = vld [vmem:[%s3 + $0x18] sm:$0xff]
    %v1497 = vld [vmem:[%s3 + $0x20] sm:$0xff]
    %v1498 = vld [vmem:[%s3 + $0x28] sm:$0xff]
    %v1499 = vld [vmem:[%s3 + $0x30] sm:$0xff]
    %v1500 = vld [vmem:[%s3 + $0x38] sm:$0xff]
    %v1501 = vld [vmem:[%s3 + $0x40] sm:$0xff]
    %v1502 = vld [vmem:[%s3 + $0x48] sm:$0xff]
    %v1503 = vld [vmem:[%s3 + $0x50] sm:$0xff]
    %v1504 = vld [vmem:[%s3 + $0x58] sm:$0xff]
    %v1505 = vld [vmem:[%s3 + $0x60] sm:$0xff]
    %v1506 = vld [vmem:[%s3 + $0x68] sm:$0xff]
    %v1507 = vld [vmem:[%s3 + $0x70] sm:$0xff]
    %v1508 = vld [vmem:[%s3 + $0x78] sm:$0xff]
    %v1509 = vld [vmem:[%s4] sm:$0x1]
    %v1511 = vlaneseq
    %v1512 = vshrl.u32 %v1511, 7
    %v1513 = vsub.s32 0, %v1512
    %v1514 = vrot.slane %v1509, %v1513
    %1516 = vmatprep.subr.mxu0 0.0
    %1517 = vmatpush1.msra.mxu0 %v1493
    %1518 = vmatprep.subr.mxu0 0.0
    %1519 = vmatpush1.msra.mxu0 %v1494
    %1520 = vmatprep.subr.mxu0 0.0
    %1521 = vmatpush1.msra.mxu0 %v1495
    %1522 = vmatprep.subr.mxu0 0.0
    %1523 = vmatpush1.msra.mxu0 %v1496
    %1524 = vmatprep.subr.mxu0 0.0
    %1525 = vmatpush1.msra.mxu0 %v1497
    %1526 = vmatprep.subr.mxu0 0.0
    %1527 = vmatpush1.msra.mxu0 %v1498
    %1528 = vmatprep.subr.mxu0 0.0
    %1529 = vmatpush1.msra.mxu0 %v1499
    %1530 = vmatprep.subr.mxu0 0.0
    %1531 = vmatpush1.msra.mxu0 %v1500
    %1532 = vmatprep.subr.mxu0 0.0
    %1533 = vmatpush1.msra.mxu0 %v1501
    %1534 = vmatprep.subr.mxu0 0.0
    %1535 = vmatpush1.msra.mxu0 %v1502
    %1536 = vmatprep.subr.mxu0 0.0
    %1537 = vmatpush1.msra.mxu0 %v1503
    %1538 = vmatprep.subr.mxu0 0.0
    %1539 = vmatpush1.msra.mxu0 %v1504
    %1540 = vmatprep.subr.mxu0 0.0
    %1541 = vmatpush1.msra.mxu0 %v1505
    %1542 = vmatprep.subr.mxu0 0.0
    %1543 = vmatpush1.msra.mxu0 %v1506
    %1544 = vmatprep.subr.mxu0 0.0
    %1545 = vmatpush1.msra.mxu0 %v1507
    %1546 = vmatprep.subr.mxu0 0.0
    %1547 = vmatpush1.msra.mxu0 %v1508
    %1548 = vmatprep.subr.mxu0 0.0
    %1549 = vmatpush1.msra.mxu0 0.0
    %1550 = vmatprep.subr.mxu0 0.0
    %1551 = vmatpush1.msra.mxu0 0.0
    %1552 = vmatprep.subr.mxu0 0.0
    %1553 = vmatpush1.msra.mxu0 0.0
    %1554 = vmatprep.subr.mxu0 0.0
    %1555 = vmatpush1.msra.mxu0 0.0
    %1556 = vmatprep.subr.mxu0 0.0
    %1557 = vmatpush1.msra.mxu0 0.0
    %1558 = vmatprep.subr.mxu0 0.0
    %1559 = vmatpush1.msra.mxu0 0.0
    %1560 = vmatprep.subr.mxu0 0.0
    %1561 = vmatpush1.msra.mxu0 0.0
    %1562 = vmatprep.subr.mxu0 0.0
    %1563 = vmatpush1.msra.mxu0 0.0
    %1564 = vmatprep.subr.mxu0 0.0
    %1565 = vmatpush1.msra.mxu0 0.0
    %1566 = vmatprep.subr.mxu0 0.0
    %1567 = vmatpush1.msra.mxu0 0.0
    %1568 = vmatprep.subr.mxu0 0.0
    %1569 = vmatpush1.msra.mxu0 0.0
    %1570 = vmatprep.subr.mxu0 0.0
    %1571 = vmatpush1.msra.mxu0 0.0
    %1572 = vmatprep.subr.mxu0 0.0
    %1573 = vmatpush1.msra.mxu0 0.0
    %1574 = vmatprep.subr.mxu0 0.0
    %1575 = vmatpush1.msra.mxu0 0.0
    %1576 = vmatprep.subr.mxu0 0.0
    %1577 = vmatpush1.msra.mxu0 0.0
    %1578 = vmatprep.subr.mxu0 0.0
    %1579 = vmatpush1.msra.mxu0 0.0
    %1580 = vmatprep.mubr.f32.mxu0 0.0
    %1581 = vmatmul.mubr.f32.gmra.mrb[0].mxu0 %v1492
    %v1582 = vpop.f32.mrb[0].mxu0
    %v1583 = vadd.f32 %v1514, %v1582
    %v1584 = vpop.f32.mrb[0].mxu0
    %1585 = vdwg.mxu0
    %v1586 = vmax.f32 %v1583, 0.0
    %v1587 = vld [vmem:[%s5] sm:$0xff]
    %v1588 = vld [vmem:[%s5 + $0x8] sm:$0xff]
    %v1589 = vld [vmem:[%s5 + $0x10] sm:$0xff]
    %v1590 = vld [vmem:[%s5 + $0x18] sm:$0xff]
    %v1591 = vld [vmem:[%s5 + $0x20] sm:$0xff]
    %v1592 = vld [vmem:[%s5 + $0x28] sm:$0xff]
    %v1593 = vld [vmem:[%s5 + $0x30] sm:$0xff]
    %v1594 = vld [vmem:[%s5 + $0x38] sm:$0xff]
    %v1595 = vld [vmem:[%s5 + $0x40] sm:$0xff]
    %v1596 = vld [vmem:[%s5 + $0x48] sm:$0xff]
    %v1597 = vld [vmem:[%s5 + $0x50] sm:$0xff]
    %v1598 = vld [vmem:[%s5 + $0x58] sm:$0xff]
    %v1599 = vld [vmem:[%s5 + $0x60] sm:$0xff]
    %v1600 = vld [vmem:[%s5 + $0x68] sm:$0xff]
    %v1601 = vld [vmem:[%s5 + $0x70] sm:$0xff]
    %v1602 = vld [vmem:[%s5 + $0x78] sm:$0xff]
    %v1603 = vld [vmem:[%s6] sm:$0x1]
    %v1605 = vlaneseq
    %v1606 = vshrl.u32 %v1605, 7
    %v1607 = vsub.s32 0, %v1606
    %v1608 = vrot.slane %v1603, %v1607
    %1610 = vmatprep.subr.mxu0 0.0
    %1611 = vmatpush1.msra.mxu0 %v1587
    %1612 = vmatprep.subr.mxu0 0.0
    %1613 = vmatpush1.msra.mxu0 %v1588
    %1614 = vmatprep.subr.mxu0 0.0
    %1615 = vmatpush1.msra.mxu0 %v1589
    %1616 = vmatprep.subr.mxu0 0.0
    %1617 = vmatpush1.msra.mxu0 %v1590
    %1618 = vmatprep.subr.mxu0 0.0
    %1619 = vmatpush1.msra.mxu0 %v1591
    %1620 = vmatprep.subr.mxu0 0.0
    %1621 = vmatpush1.msra.mxu0 %v1592
    %1622 = vmatprep.subr.mxu0 0.0
    %1623 = vmatpush1.msra.mxu0 %v1593
    %1624 = vmatprep.subr.mxu0 0.0
    %1625 = vmatpush1.msra.mxu0 %v1594
    %1626 = vmatprep.subr.mxu0 0.0
    %1627 = vmatpush1.msra.mxu0 %v1595
    %1628 = vmatprep.subr.mxu0 0.0
    %1629 = vmatpush1.msra.mxu0 %v1596
    %1630 = vmatprep.subr.mxu0 0.0
    %1631 = vmatpush1.msra.mxu0 %v1597
    %1632 = vmatprep.subr.mxu0 0.0
    %1633 = vmatpush1.msra.mxu0 %v1598
    %1634 = vmatprep.subr.mxu0 0.0
    %1635 = vmatpush1.msra.mxu0 %v1599
    %1636 = vmatprep.subr.mxu0 0.0
    %1637 = vmatpush1.msra.mxu0 %v1600
    %1638 = vmatprep.subr.mxu0 0.0
    %1639 = vmatpush1.msra.mxu0 %v1601
    %1640 = vmatprep.subr.mxu0 0.0
    %1641 = vmatpush1.msra.mxu0 %v1602
    %1642 = vmatprep.subr.mxu0 0.0
    %1643 = vmatpush1.msra.mxu0 0.0
    %1644 = vmatprep.subr.mxu0 0.0
    %1645 = vmatpush1.msra.mxu0 0.0
    %1646 = vmatprep.subr.mxu0 0.0
    %1647 = vmatpush1.msra.mxu0 0.0
    %1648 = vmatprep.subr.mxu0 0.0
    %1649 = vmatpush1.msra.mxu0 0.0
    %1650 = vmatprep.subr.mxu0 0.0
    %1651 = vmatpush1.msra.mxu0 0.0
    %1652 = vmatprep.subr.mxu0 0.0
    %1653 = vmatpush1.msra.mxu0 0.0
    %1654 = vmatprep.subr.mxu0 0.0
    %1655 = vmatpush1.msra.mxu0 0.0
    %1656 = vmatprep.subr.mxu0 0.0
    %1657 = vmatpush1.msra.mxu0 0.0
    %1658 = vmatprep.subr.mxu0 0.0
    %1659 = vmatpush1.msra.mxu0 0.0
    %1660 = vmatprep.subr.mxu0 0.0
    %1661 = vmatpush1.msra.mxu0 0.0
    %1662 = vmatprep.subr.mxu0 0.0
    %1663 = vmatpush1.msra.mxu0 0.0
    %1664 = vmatprep.subr.mxu0 0.0
    %1665 = vmatpush1.msra.mxu0 0.0
    %1666 = vmatprep.subr.mxu0 0.0
    %1667 = vmatpush1.msra.mxu0 0.0
    %1668 = vmatprep.subr.mxu0 0.0
    %1669 = vmatpush1.msra.mxu0 0.0
    %1670 = vmatprep.subr.mxu0 0.0
    %1671 = vmatpush1.msra.mxu0 0.0
    %1672 = vmatprep.subr.mxu0 0.0
    %1673 = vmatpush1.msra.mxu0 0.0
    %1674 = vmatprep.mubr.f32.mxu0 0.0
    %1675 = vmatmul.mubr.f32.gmra.mrb[0].mxu0 %v1586
    %v1676 = vpop.f32.mrb[0].mxu0
    %v1677 = vadd.f32 %v1608, %v1676
    %v1678 = vpop.f32.mrb[0].mxu0
    %1679 = vdwg.mxu0
    %1680 = vst [vmem:[#allocation2] sm:$0x3] %v1677
    // Predicated region
    $region30: #{cnn_target_forward.5} parent=1 // pred_check
      _
    $region31: #{cnn_target_forward.5} parent=1 // pred_check_branch
      %1682 = sbr.rel (0) target = $region33
    $region32: #{cnn_target_forward.5} parent=1 // pred_region
      %s1684 = ssub.s32 32, 32
      %1685 = vsyncadd [#allocation3], %s1684
      %s1687 = sshll.u32 [#allocation2], 4
      %s1688 = int_to_ptr.vmem [resolvable:$true] %s1687
      %1690 = dma.vmem_to_hbm [thread:$0]  %s1688, 32, %s7, [#allocation3]
    $region33: #{cnn_target_forward.5} parent=1 // pred_fallthru
      _
    // Predicated region
    $region34: #{cnn_target_forward.5} parent=1 // pred_check
      _
    $region35: #{cnn_target_forward.5} parent=1 // pred_check_branch
      %1692 = sbr.rel (0) target = $region37
    $region36: #{cnn_target_forward.5} parent=1 // pred_region
      %1693 = dma.done [#allocation3], 32
    $region37: #{cnn_target_forward.5} parent=1 // pred_fallthru
      _
    %1694 = vsyncpa [#allocation3], 1

</llo_original>
